<compile_context>
chip_gen: v7x
topology: tpu7x:2x2x1
jax: 0.10.0
libtpu: 0.0.40
codegen_flags: <defaults>
</compile_context>

<pallas_src>
import functools

import jax
import jax.numpy as jnp
from jax.experimental import pallas as pl
from jax.experimental.pallas import tpu as pltpu


def _round_up(x, m):
    return (x + m - 1) // m * m


# ------------------------------ fused kernel --------------------------------

def _double_conv_kernel(H, W, We, patches_ref, w1_ref, wres_ref, bres_ref,
                        s1_ref, sh1_ref, s2_ref, sh2_ref,
                        w2_ref, wfc1_ref, wfc2_ref, o_ref):
    # patches_ref: (1, He*We, Kp) bf16   im2col patches on the halo domain
    # w1_ref/wres_ref: (Kp, Cp) bf16     conv1 / residual-1x1 weights
    # w2_ref: (3, 3, Cp, Cp) bf16        conv2 weights
    # bres/s1/sh1/s2/sh2: (1, Cp) f32    bias and folded-BN scale/shift
    # wfc1: (2*Cp, Cr) f32, wfc2: (Cr, Cp) f32   SE fc weights
    # o_ref: (1, H*W, Cp) f32            lane-dense output
    He = H + 2
    HW = H * W
    Cp = o_ref.shape[2]

    p = patches_ref[0]                                        # (He*We, Kp)

    # conv1 (3x3, bias-free) + folded BN + ReLU as ONE full-depth matmul,
    # evaluated on the extended halo domain.
    pre1 = jnp.dot(p, w1_ref[...], preferred_element_type=jnp.float32)
    y1 = jnp.maximum(pre1 * s1_ref[...] + sh1_ref[...], 0.0)  # (He*We, Cp)

    # residual 1x1 conv (+bias) reuses the same im2col LHS (weight embedded
    # in the centre-tap rows); keep only the interior pixels.
    id_ext = jnp.dot(p, wres_ref[...], preferred_element_type=jnp.float32)
    identity = (id_ext.reshape(He, We, Cp)[1:H + 1, 1:W + 1, :]
                .reshape(HW, Cp) + bres_ref[...])             # (HW, Cp)

    # Zero the halo of the extended conv1 output: this IS the zero-padded
    # conv2 input, so no VMEM halo buffer or unaligned store is needed.
    y1_img = y1.reshape(He, We, Cp)
    ii = jax.lax.broadcasted_iota(jnp.int32, (He, We, Cp), 0)
    jj = jax.lax.broadcasted_iota(jnp.int32, (He, We, Cp), 1)
    interior = (ii >= 1) & (ii <= H) & (jj >= 1) & (jj <= W)
    y1_img = jnp.where(interior, y1_img, 0.0)                 # f32

    # conv2 (3x3) as 9 shifted taps, each a full K=Cp(=128) MXU contraction.
    acc = jnp.zeros((HW, Cp), jnp.float32)
    for dy in range(3):
        for dx in range(3):
            tap = (y1_img[dy:dy + H, dx:dx + W, :]
                   .reshape(HW, Cp).astype(jnp.bfloat16))
            acc = acc + jnp.dot(tap, w2_ref[dy, dx],
                                preferred_element_type=jnp.float32)
    y2 = jnp.maximum(acc * s2_ref[...] + sh2_ref[...], 0.0)   # (HW, Cp)

    # SEBlock: global avg+max pool -> fc -> ReLU -> fc -> sigmoid -> scale.
    avg = jnp.mean(y2, axis=0, keepdims=True)                 # (1, Cp)
    mx = jnp.max(y2, axis=0, keepdims=True)                   # (1, Cp)
    ycat = jnp.concatenate([avg, mx], axis=1)                 # (1, 2*Cp)
    h = jnp.maximum(jnp.dot(ycat, wfc1_ref[...],
                            preferred_element_type=jnp.float32), 0.0)
    s = jax.nn.sigmoid(jnp.dot(h, wfc2_ref[...],
                               preferred_element_type=jnp.float32))  # (1, Cp)

    # out = relu(se(conv_out) + identity); lane-dense (HW, 128) store.
    o_ref[0] = jnp.maximum(y2 * s + identity, 0.0)


# ------------------------------- wrapper -------------------------------------

def double_conv_forward(x_nchw, p):
    """Fused DoubleConv forward.  Input/output NCHW (PyTorch convention)."""
    N, Cin, H, W = x_nchw.shape
    Cout = p["w1"].shape[-1]
    Cr = p["w_fc1"].shape[-1]
    HW = H * W
    He = H + 2
    We = _round_up(W + 2, 8)          # widen halo domain -> tile-aligned reshapes
    HWe = He * We
    Cp = _round_up(max(Cout, 128), 128)      # lane-dense channel padding
    Kp = _round_up(max(9 * Cin, 128), 128)   # lane-dense im2col depth

    x = jnp.transpose(x_nchw, (0, 2, 3, 1)).astype(jnp.float32)   # NHWC

    # im2col patches of x for conv1, evaluated on the (He, We) halo domain.
    xp2 = jnp.pad(x, ((0, 0), (2, 2), (2, We - W), (0, 0)))
    cols = [xp2[:, dy:dy + He, dx:dx + We, :].reshape(N, HWe, Cin)
            for dy in range(3) for dx in range(3)]
    patches = jnp.concatenate(cols, axis=-1)                      # (N,HWe,9Cin)
    patches = jnp.pad(patches, ((0, 0), (0, 0), (0, Kp - 9 * Cin)))
    patches = patches.astype(jnp.bfloat16)

    # Weights / folded-BN params, zero-padded to lane-dense shapes.
    w1r = jnp.zeros((Kp, Cp), jnp.float32)
    w1r = w1r.at[:9 * Cin, :Cout].set(p["w1"].reshape(9 * Cin, Cout))
    wres = jnp.zeros((Kp, Cp), jnp.float32)
    wres = wres.at[4 * Cin:5 * Cin, :Cout].set(p["w_res"])        # centre tap
    w2 = jnp.zeros((3, 3, Cp, Cp), jnp.float32)
    w2 = w2.at[:, :, :Cout, :Cout].set(p["w2"])
    w1r = w1r.astype(jnp.bfloat16)
    wres = wres.astype(jnp.bfloat16)
    w2 = w2.astype(jnp.bfloat16)

    def pad_c(v):    # (1, Cout) -> (1, Cp)
        return jnp.zeros((1, Cp), jnp.float32).at[:, :Cout].set(v)

    bres, s1, sh1 = pad_c(p["b_res"]), pad_c(p["scale1"]), pad_c(p["shift1"])
    s2, sh2 = pad_c(p["scale2"]), pad_c(p["shift2"])

    wfc1 = jnp.zeros((2 * Cp, Cr), jnp.float32)
    wfc1 = wfc1.at[:Cout, :].set(p["w_fc1"][:Cout])               # avg part
    wfc1 = wfc1.at[Cp:Cp + Cout, :].set(p["w_fc1"][Cout:])        # max part
    wfc2 = jnp.zeros((Cr, Cp), jnp.float32).at[:, :Cout].set(p["w_fc2"])

    flops = int(N * (2 * HWe * Kp * Cp * 2        # conv1 + residual matmuls
                     + 9 * 2 * HW * Cp * Cp       # conv2 taps
                     + 2 * 2 * Cp * Cr * 2))      # SE fc layers
    bytes_accessed = int(
        N * HWe * Kp * 2                          # patches (bf16)
        + (2 * Kp * Cp + 9 * Cp * Cp) * 2         # bf16 weights
        + (5 * Cp + 2 * Cp * Cr + Cr * Cp) * 4    # small f32 params
        + N * HW * Cp * 4)                        # output

    out = pl.pallas_call(
        functools.partial(_double_conv_kernel, H, W, We),
        out_shape=jax.ShapeDtypeStruct((N, HW, Cp), jnp.float32),
        grid=(N,),
        in_specs=[
            pl.BlockSpec((1, HWe, Kp), lambda n: (n, 0, 0)),
            pl.BlockSpec((Kp, Cp), lambda n: (0, 0)),
            pl.BlockSpec((Kp, Cp), lambda n: (0, 0)),
            pl.BlockSpec((1, Cp), lambda n: (0, 0)),
            pl.BlockSpec((1, Cp), lambda n: (0, 0)),
            pl.BlockSpec((1, Cp), lambda n: (0, 0)),
            pl.BlockSpec((1, Cp), lambda n: (0, 0)),
            pl.BlockSpec((1, Cp), lambda n: (0, 0)),
            pl.BlockSpec((3, 3, Cp, Cp), lambda n: (0, 0, 0, 0)),
            pl.BlockSpec((2 * Cp, Cr), lambda n: (0, 0)),
            pl.BlockSpec((Cr, Cp), lambda n: (0, 0)),
        ],
        out_specs=pl.BlockSpec((1, HW, Cp), lambda n: (n, 0, 0)),
        compiler_params=pltpu.CompilerParams(
            dimension_semantics=("parallel",)),
        cost_estimate=pl.CostEstimate(
            flops=flops, transcendentals=N * (Cp + Cr),
            bytes_accessed=bytes_accessed),
    )(patches, w1r, wres, bres, s1, sh1, s2, sh2, w2, wfc1, wfc2)

    out = out.reshape(N, H, W, Cp)[..., :Cout]
    return jnp.transpose(out, (0, 3, 1, 2))                       # NCHW


# --------------------------- pure-JAX reference ------------------------------

def reference_forward(x_nchw, p):
    x = jnp.transpose(x_nchw, (0, 2, 3, 1)).astype(jnp.float32)
    dn = ("NHWC", "HWIO", "NHWC")
    identity = jax.lax.conv_general_dilated(
        x, p["w_res"][None, None], (1, 1), "SAME",
        dimension_numbers=dn) + p["b_res"][0]
    out = jax.lax.conv_general_dilated(x, p["w1"], (1, 1), "SAME",
                                       dimension_numbers=dn)
    out = jnp.maximum(out * p["scale1"][0] + p["shift1"][0], 0.0)
    out = jax.lax.conv_general_dilated(out, p["w2"], (1, 1), "SAME",
                                       dimension_numbers=dn)
    out = jnp.maximum(out * p["scale2"][0] + p["shift2"][0], 0.0)
    avg = jnp.mean(out, axis=(1, 2))
    mx = jnp.max(out, axis=(1, 2))
    y = jnp.concatenate([avg, mx], axis=1)
    h = jnp.maximum(y @ p["w_fc1"], 0.0)
    s = jax.nn.sigmoid(h @ p["w_fc2"])
    res = jnp.maximum(out * s[:, None, None, :] + identity, 0.0)
    return jnp.transpose(res, (0, 3, 1, 2))


# --------------------------------- params ------------------------------------

def make_params(key, cin, cout, reduction=16):
    eps = 1e-5
    cr = cout // reduction
    ks = jax.random.split(key, 16)
    # conv weights stored in HWIO layout.
    w1 = jax.random.normal(ks[0], (3, 3, cin, cout), jnp.float32) * 0.1
    w2 = jax.random.normal(ks[1], (3, 3, cout, cout), jnp.float32) * 0.1
    # BatchNorm params (eval mode), folded into scale/shift.
    g1 = 1.0 + 0.1 * jax.random.normal(ks[2], (cout,), jnp.float32)
    b1 = 0.1 * jax.random.normal(ks[3], (cout,), jnp.float32)
    m1 = 0.1 * jax.random.normal(ks[4], (cout,), jnp.float32)
    v1 = jax.random.uniform(ks[5], (cout,), jnp.float32, 0.5, 1.5)
    g2 = 1.0 + 0.1 * jax.random.normal(ks[6], (cout,), jnp.float32)
    b2 = 0.1 * jax.random.normal(ks[7], (cout,), jnp.float32)
    m2 = 0.1 * jax.random.normal(ks[8], (cout,), jnp.float32)
    v2 = jax.random.uniform(ks[9], (cout,), jnp.float32, 0.5, 1.5)
    scale1 = (g1 / jnp.sqrt(v1 + eps))[None, :]
    shift1 = (b1 - m1 * g1 / jnp.sqrt(v1 + eps))[None, :]
    scale2 = (g2 / jnp.sqrt(v2 + eps))[None, :]
    shift2 = (b2 - m2 * g2 / jnp.sqrt(v2 + eps))[None, :]
    # SE fc weights (bias=False), stored as (in, out).
    w_fc1 = jax.random.normal(ks[10], (2 * cout, cr), jnp.float32) * 0.2
    w_fc2 = jax.random.normal(ks[11], (cr, cout), jnp.float32) * 0.2
    # residual 1x1 conv (with bias) since cin != cout.
    w_res = jax.random.normal(ks[12], (cin, cout), jnp.float32) * 0.1
    b_res = 0.1 * jax.random.normal(ks[13], (1, cout), jnp.float32)
    return dict(w1=w1, w2=w2, scale1=scale1, shift1=shift1,
                scale2=scale2, shift2=shift2,
                w_fc1=w_fc1, w_fc2=w_fc2, w_res=w_res, b_res=b_res)


# ---------------------------------- main --------------------------------------

if __name__ == "__main__":
    N, Cin, Cout, H, W = 2, 4, 32, 16, 16
    key = jax.random.PRNGKey(0)
    kx, kp = jax.random.split(key)
    x = jax.random.normal(kx, (N, Cin, H, W), jnp.float32)   # NCHW like torch
    params = make_params(kp, Cin, Cout)

    fwd = jax.jit(double_conv_forward)
    out = jax.block_until_ready(fwd(x, params))
    ref = jax.block_until_ready(reference_forward(x, params))

    assert out.shape == (N, Cout, H, W), out.shape
    # bf16 MXU operands with f32 accumulation -> slightly looser tolerance.
    assert jnp.allclose(out, ref, atol=5e-2, rtol=5e-2), (
        float(jnp.max(jnp.abs(out - ref))))
    print("KERNEL_OK")
</pallas_src>

<mosaic_0001>
module attributes {stable_mosaic.version = 11 : i64} {
  func.func @_double_conv_kernel(%arg0: i32, %arg1: memref<1x432x128xbf16, #tpu.memory_space<vmem>>, %arg2: memref<128x128xbf16, #tpu.memory_space<vmem>>, %arg3: memref<128x128xbf16, #tpu.memory_space<vmem>>, %arg4: memref<1x128xf32, #tpu.memory_space<vmem>>, %arg5: memref<1x128xf32, #tpu.memory_space<vmem>>, %arg6: memref<1x128xf32, #tpu.memory_space<vmem>>, %arg7: memref<1x128xf32, #tpu.memory_space<vmem>>, %arg8: memref<1x128xf32, #tpu.memory_space<vmem>>, %arg9: memref<3x3x128x128xbf16, #tpu.memory_space<vmem>>, %arg10: memref<256x2xf32, #tpu.memory_space<vmem>>, %arg11: memref<2x128xf32, #tpu.memory_space<vmem>>, %arg12: memref<1x256x128xf32, #tpu.memory_space<vmem>>) attributes {dimension_semantics = [#tpu.dimension_semantics<parallel>], iteration_bounds = array<i64: 2>, scalar_prefetch = 0 : i64, scratch_operands = 0 : i64, tpu.core_type = #tpu.core_type<tc>, window_params = [{transform_indices = @transform_0, window_bounds = array<i64: 1, 432, 128>}, {pipeline_mode = #tpu.pipeline_mode<synchronous>, transform_indices = @transform_1, window_bounds = array<i64: 128, 128>}, {pipeline_mode = #tpu.pipeline_mode<synchronous>, transform_indices = @transform_2, window_bounds = array<i64: 128, 128>}, {pipeline_mode = #tpu.pipeline_mode<synchronous>, transform_indices = @transform_3, window_bounds = array<i64: 1, 128>}, {pipeline_mode = #tpu.pipeline_mode<synchronous>, transform_indices = @transform_4, window_bounds = array<i64: 1, 128>}, {pipeline_mode = #tpu.pipeline_mode<synchronous>, transform_indices = @transform_5, window_bounds = array<i64: 1, 128>}, {pipeline_mode = #tpu.pipeline_mode<synchronous>, transform_indices = @transform_6, window_bounds = array<i64: 1, 128>}, {pipeline_mode = #tpu.pipeline_mode<synchronous>, transform_indices = @transform_7, window_bounds = array<i64: 1, 128>}, {pipeline_mode = #tpu.pipeline_mode<synchronous>, transform_indices = @transform_8, window_bounds = array<i64: 3, 3, 128, 128>}, {pipeline_mode = #tpu.pipeline_mode<synchronous>, transform_indices = @transform_9, window_bounds = array<i64: 256, 2>}, {pipeline_mode = #tpu.pipeline_mode<synchronous>, transform_indices = @transform_10, window_bounds = array<i64: 2, 128>}, {transform_indices = @transform_11, window_bounds = array<i64: 1, 256, 128>}]} {
    %c0 = arith.constant 0 : index
    %c0_0 = arith.constant 0 : index
    %c0_1 = arith.constant 0 : index
    %0 = vector.load %arg1[%c0, %c0_0, %c0_1] : memref<1x432x128xbf16, #tpu.memory_space<vmem>>, vector<1x432x128xbf16>
    %1 = vector.shape_cast %0 : vector<1x432x128xbf16> to vector<432x128xbf16>
    %c0_2 = arith.constant 0 : index
    %c0_3 = arith.constant 0 : index
    %2 = vector.load %arg2[%c0_2, %c0_3] : memref<128x128xbf16, #tpu.memory_space<vmem>>, vector<128x128xbf16>
    %cst = arith.constant dense<0.000000e+00> : vector<432x128xf32>
    %3 = tpu.matmul %1, %2, %cst {dimension_numbers = #tpu.dot_dimension_numbers<[1], [0], [0], [1], [0, 0, 1, 1], [], []>} : vector<432x128xbf16>, vector<128x128xbf16>, vector<432x128xf32> -> vector<432x128xf32>
    %c0_4 = arith.constant 0 : index
    %c0_5 = arith.constant 0 : index
    %4 = vector.load %arg5[%c0_4, %c0_5] : memref<1x128xf32, #tpu.memory_space<vmem>>, vector<1x128xf32>
    %5 = vector.broadcast %4 : vector<1x128xf32> to vector<432x128xf32>
    %6 = arith.mulf %3, %5 : vector<432x128xf32>
    %c0_6 = arith.constant 0 : index
    %c0_7 = arith.constant 0 : index
    %7 = vector.load %arg6[%c0_6, %c0_7] : memref<1x128xf32, #tpu.memory_space<vmem>>, vector<1x128xf32>
    %8 = vector.broadcast %7 : vector<1x128xf32> to vector<432x128xf32>
    %9 = arith.addf %6, %8 : vector<432x128xf32>
    %cst_8 = arith.constant 0.000000e+00 : f32
    %10 = vector.broadcast %cst_8 : f32 to vector<432x128xf32>
    %11 = arith.maximumf %9, %10 : vector<432x128xf32>
    %c0_9 = arith.constant 0 : index
    %c0_10 = arith.constant 0 : index
    %12 = vector.load %arg3[%c0_9, %c0_10] : memref<128x128xbf16, #tpu.memory_space<vmem>>, vector<128x128xbf16>
    %cst_11 = arith.constant dense<0.000000e+00> : vector<432x128xf32>
    %13 = tpu.matmul %1, %12, %cst_11 {dimension_numbers = #tpu.dot_dimension_numbers<[1], [0], [0], [1], [0, 0, 1, 1], [], []>} : vector<432x128xbf16>, vector<128x128xbf16>, vector<432x128xf32> -> vector<432x128xf32>
    %14 = vector.shape_cast %13 : vector<432x128xf32> to vector<18x24x128xf32>
    %15 = vector.extract_strided_slice %14 {offsets = [1, 1, 0], sizes = [16, 16, 128], strides = [1, 1, 1]} : vector<18x24x128xf32> to vector<16x16x128xf32>
    %16 = vector.shape_cast %15 : vector<16x16x128xf32> to vector<256x128xf32>
    %c0_12 = arith.constant 0 : index
    %c0_13 = arith.constant 0 : index
    %17 = vector.load %arg4[%c0_12, %c0_13] : memref<1x128xf32, #tpu.memory_space<vmem>>, vector<1x128xf32>
    %18 = vector.broadcast %17 : vector<1x128xf32> to vector<256x128xf32>
    %19 = arith.addf %16, %18 : vector<256x128xf32>
    %20 = vector.shape_cast %11 : vector<432x128xf32> to vector<18x24x128xf32>
    %21 = tpu.iota {dimensions = array<i32: 0>} : vector<18x24x128xi32>
    %22 = tpu.iota {dimensions = array<i32: 1>} : vector<18x24x128xi32>
    %c1_i32 = arith.constant 1 : i32
    %23 = vector.broadcast %c1_i32 : i32 to vector<18x24x128xi32>
    %24 = arith.cmpi sge, %21, %23 : vector<18x24x128xi32>
    %c16_i32 = arith.constant 16 : i32
    %25 = vector.broadcast %c16_i32 : i32 to vector<18x24x128xi32>
    %26 = arith.cmpi sle, %21, %25 : vector<18x24x128xi32>
    %27 = arith.andi %24, %26 : vector<18x24x128xi1>
    %c1_i32_14 = arith.constant 1 : i32
    %28 = vector.broadcast %c1_i32_14 : i32 to vector<18x24x128xi32>
    %29 = arith.cmpi sge, %22, %28 : vector<18x24x128xi32>
    %30 = arith.andi %27, %29 : vector<18x24x128xi1>
    %c16_i32_15 = arith.constant 16 : i32
    %31 = vector.broadcast %c16_i32_15 : i32 to vector<18x24x128xi32>
    %32 = arith.cmpi sle, %22, %31 : vector<18x24x128xi32>
    %33 = arith.andi %30, %32 : vector<18x24x128xi1>
    %cst_16 = arith.constant 0.000000e+00 : f32
    %34 = vector.broadcast %cst_16 : f32 to vector<18x24x128xf32>
    %35 = arith.select %33, %20, %34 : vector<18x24x128xi1>, vector<18x24x128xf32>
    %cst_17 = arith.constant 0.000000e+00 : f32
    %36 = vector.broadcast %cst_17 : f32 to vector<256x128xf32>
    %37 = vector.extract_strided_slice %35 {offsets = [0, 0, 0], sizes = [16, 16, 128], strides = [1, 1, 1]} : vector<18x24x128xf32> to vector<16x16x128xf32>
    %38 = vector.shape_cast %37 : vector<16x16x128xf32> to vector<256x128xf32>
    %39 = arith.truncf %38 : vector<256x128xf32> to vector<256x128xbf16>
    %c0_18 = arith.constant 0 : index
    %c0_19 = arith.constant 0 : index
    %c0_20 = arith.constant 0 : index
    %c0_21 = arith.constant 0 : index
    %40 = vector.load %arg9[%c0_18, %c0_19, %c0_20, %c0_21] : memref<3x3x128x128xbf16, #tpu.memory_space<vmem>>, vector<1x1x128x128xbf16>
    %41 = vector.shape_cast %40 : vector<1x1x128x128xbf16> to vector<128x128xbf16>
    %cst_22 = arith.constant dense<0.000000e+00> : vector<256x128xf32>
    %42 = tpu.matmul %39, %41, %cst_22 {dimension_numbers = #tpu.dot_dimension_numbers<[1], [0], [0], [1], [0, 0, 1, 1], [], []>} : vector<256x128xbf16>, vector<128x128xbf16>, vector<256x128xf32> -> vector<256x128xf32>
    %43 = arith.addf %36, %42 : vector<256x128xf32>
    %44 = vector.extract_strided_slice %35 {offsets = [0, 1, 0], sizes = [16, 16, 128], strides = [1, 1, 1]} : vector<18x24x128xf32> to vector<16x16x128xf32>
    %45 = vector.shape_cast %44 : vector<16x16x128xf32> to vector<256x128xf32>
    %46 = arith.truncf %45 : vector<256x128xf32> to vector<256x128xbf16>
    %c0_23 = arith.constant 0 : index
    %c1 = arith.constant 1 : index
    %c0_24 = arith.constant 0 : index
    %c0_25 = arith.constant 0 : index
    %47 = vector.load %arg9[%c0_23, %c1, %c0_24, %c0_25] : memref<3x3x128x128xbf16, #tpu.memory_space<vmem>>, vector<1x1x128x128xbf16>
    %48 = vector.shape_cast %47 : vector<1x1x128x128xbf16> to vector<128x128xbf16>
    %cst_26 = arith.constant dense<0.000000e+00> : vector<256x128xf32>
    %49 = tpu.matmul %46, %48, %cst_26 {dimension_numbers = #tpu.dot_dimension_numbers<[1], [0], [0], [1], [0, 0, 1, 1], [], []>} : vector<256x128xbf16>, vector<128x128xbf16>, vector<256x128xf32> -> vector<256x128xf32>
    %50 = arith.addf %43, %49 : vector<256x128xf32>
    %51 = vector.extract_strided_slice %35 {offsets = [0, 2, 0], sizes = [16, 16, 128], strides = [1, 1, 1]} : vector<18x24x128xf32> to vector<16x16x128xf32>
    %52 = vector.shape_cast %51 : vector<16x16x128xf32> to vector<256x128xf32>
    %53 = arith.truncf %52 : vector<256x128xf32> to vector<256x128xbf16>
    %c0_27 = arith.constant 0 : index
    %c2 = arith.constant 2 : index
    %c0_28 = arith.constant 0 : index
    %c0_29 = arith.constant 0 : index
    %54 = vector.load %arg9[%c0_27, %c2, %c0_28, %c0_29] : memref<3x3x128x128xbf16, #tpu.memory_space<vmem>>, vector<1x1x128x128xbf16>
    %55 = vector.shape_cast %54 : vector<1x1x128x128xbf16> to vector<128x128xbf16>
    %cst_30 = arith.constant dense<0.000000e+00> : vector<256x128xf32>
    %56 = tpu.matmul %53, %55, %cst_30 {dimension_numbers = #tpu.dot_dimension_numbers<[1], [0], [0], [1], [0, 0, 1, 1], [], []>} : vector<256x128xbf16>, vector<128x128xbf16>, vector<256x128xf32> -> vector<256x128xf32>
    %57 = arith.addf %50, %56 : vector<256x128xf32>
    %58 = vector.extract_strided_slice %35 {offsets = [1, 0, 0], sizes = [16, 16, 128], strides = [1, 1, 1]} : vector<18x24x128xf32> to vector<16x16x128xf32>
    %59 = vector.shape_cast %58 : vector<16x16x128xf32> to vector<256x128xf32>
    %60 = arith.truncf %59 : vector<256x128xf32> to vector<256x128xbf16>
    %c1_31 = arith.constant 1 : index
    %c0_32 = arith.constant 0 : index
    %c0_33 = arith.constant 0 : index
    %c0_34 = arith.constant 0 : index
    %61 = vector.load %arg9[%c1_31, %c0_32, %c0_33, %c0_34] : memref<3x3x128x128xbf16, #tpu.memory_space<vmem>>, vector<1x1x128x128xbf16>
    %62 = vector.shape_cast %61 : vector<1x1x128x128xbf16> to vector<128x128xbf16>
    %cst_35 = arith.constant dense<0.000000e+00> : vector<256x128xf32>
    %63 = tpu.matmul %60, %62, %cst_35 {dimension_numbers = #tpu.dot_dimension_numbers<[1], [0], [0], [1], [0, 0, 1, 1], [], []>} : vector<256x128xbf16>, vector<128x128xbf16>, vector<256x128xf32> -> vector<256x128xf32>
    %64 = arith.addf %57, %63 : vector<256x128xf32>
    %65 = vector.extract_strided_slice %35 {offsets = [1, 1, 0], sizes = [16, 16, 128], strides = [1, 1, 1]} : vector<18x24x128xf32> to vector<16x16x128xf32>
    %66 = vector.shape_cast %65 : vector<16x16x128xf32> to vector<256x128xf32>
    %67 = arith.truncf %66 : vector<256x128xf32> to vector<256x128xbf16>
    %c1_36 = arith.constant 1 : index
    %c1_37 = arith.constant 1 : index
    %c0_38 = arith.constant 0 : index
    %c0_39 = arith.constant 0 : index
    %68 = vector.load %arg9[%c1_36, %c1_37, %c0_38, %c0_39] : memref<3x3x128x128xbf16, #tpu.memory_space<vmem>>, vector<1x1x128x128xbf16>
    %69 = vector.shape_cast %68 : vector<1x1x128x128xbf16> to vector<128x128xbf16>
    %cst_40 = arith.constant dense<0.000000e+00> : vector<256x128xf32>
    %70 = tpu.matmul %67, %69, %cst_40 {dimension_numbers = #tpu.dot_dimension_numbers<[1], [0], [0], [1], [0, 0, 1, 1], [], []>} : vector<256x128xbf16>, vector<128x128xbf16>, vector<256x128xf32> -> vector<256x128xf32>
    %71 = arith.addf %64, %70 : vector<256x128xf32>
    %72 = vector.extract_strided_slice %35 {offsets = [1, 2, 0], sizes = [16, 16, 128], strides = [1, 1, 1]} : vector<18x24x128xf32> to vector<16x16x128xf32>
    %73 = vector.shape_cast %72 : vector<16x16x128xf32> to vector<256x128xf32>
    %74 = arith.truncf %73 : vector<256x128xf32> to vector<256x128xbf16>
    %c1_41 = arith.constant 1 : index
    %c2_42 = arith.constant 2 : index
    %c0_43 = arith.constant 0 : index
    %c0_44 = arith.constant 0 : index
    %75 = vector.load %arg9[%c1_41, %c2_42, %c0_43, %c0_44] : memref<3x3x128x128xbf16, #tpu.memory_space<vmem>>, vector<1x1x128x128xbf16>
    %76 = vector.shape_cast %75 : vector<1x1x128x128xbf16> to vector<128x128xbf16>
    %cst_45 = arith.constant dense<0.000000e+00> : vector<256x128xf32>
    %77 = tpu.matmul %74, %76, %cst_45 {dimension_numbers = #tpu.dot_dimension_numbers<[1], [0], [0], [1], [0, 0, 1, 1], [], []>} : vector<256x128xbf16>, vector<128x128xbf16>, vector<256x128xf32> -> vector<256x128xf32>
    %78 = arith.addf %71, %77 : vector<256x128xf32>
    %79 = vector.extract_strided_slice %35 {offsets = [2, 0, 0], sizes = [16, 16, 128], strides = [1, 1, 1]} : vector<18x24x128xf32> to vector<16x16x128xf32>
    %80 = vector.shape_cast %79 : vector<16x16x128xf32> to vector<256x128xf32>
    %81 = arith.truncf %80 : vector<256x128xf32> to vector<256x128xbf16>
    %c2_46 = arith.constant 2 : index
    %c0_47 = arith.constant 0 : index
    %c0_48 = arith.constant 0 : index
    %c0_49 = arith.constant 0 : index
    %82 = vector.load %arg9[%c2_46, %c0_47, %c0_48, %c0_49] : memref<3x3x128x128xbf16, #tpu.memory_space<vmem>>, vector<1x1x128x128xbf16>
    %83 = vector.shape_cast %82 : vector<1x1x128x128xbf16> to vector<128x128xbf16>
    %cst_50 = arith.constant dense<0.000000e+00> : vector<256x128xf32>
    %84 = tpu.matmul %81, %83, %cst_50 {dimension_numbers = #tpu.dot_dimension_numbers<[1], [0], [0], [1], [0, 0, 1, 1], [], []>} : vector<256x128xbf16>, vector<128x128xbf16>, vector<256x128xf32> -> vector<256x128xf32>
    %85 = arith.addf %78, %84 : vector<256x128xf32>
    %86 = vector.extract_strided_slice %35 {offsets = [2, 1, 0], sizes = [16, 16, 128], strides = [1, 1, 1]} : vector<18x24x128xf32> to vector<16x16x128xf32>
    %87 = vector.shape_cast %86 : vector<16x16x128xf32> to vector<256x128xf32>
    %88 = arith.truncf %87 : vector<256x128xf32> to vector<256x128xbf16>
    %c2_51 = arith.constant 2 : index
    %c1_52 = arith.constant 1 : index
    %c0_53 = arith.constant 0 : index
    %c0_54 = arith.constant 0 : index
    %89 = vector.load %arg9[%c2_51, %c1_52, %c0_53, %c0_54] : memref<3x3x128x128xbf16, #tpu.memory_space<vmem>>, vector<1x1x128x128xbf16>
    %90 = vector.shape_cast %89 : vector<1x1x128x128xbf16> to vector<128x128xbf16>
    %cst_55 = arith.constant dense<0.000000e+00> : vector<256x128xf32>
    %91 = tpu.matmul %88, %90, %cst_55 {dimension_numbers = #tpu.dot_dimension_numbers<[1], [0], [0], [1], [0, 0, 1, 1], [], []>} : vector<256x128xbf16>, vector<128x128xbf16>, vector<256x128xf32> -> vector<256x128xf32>
    %92 = arith.addf %85, %91 : vector<256x128xf32>
    %93 = vector.extract_strided_slice %35 {offsets = [2, 2, 0], sizes = [16, 16, 128], strides = [1, 1, 1]} : vector<18x24x128xf32> to vector<16x16x128xf32>
    %94 = vector.shape_cast %93 : vector<16x16x128xf32> to vector<256x128xf32>
    %95 = arith.truncf %94 : vector<256x128xf32> to vector<256x128xbf16>
    %c2_56 = arith.constant 2 : index
    %c2_57 = arith.constant 2 : index
    %c0_58 = arith.constant 0 : index
    %c0_59 = arith.constant 0 : index
    %96 = vector.load %arg9[%c2_56, %c2_57, %c0_58, %c0_59] : memref<3x3x128x128xbf16, #tpu.memory_space<vmem>>, vector<1x1x128x128xbf16>
    %97 = vector.shape_cast %96 : vector<1x1x128x128xbf16> to vector<128x128xbf16>
    %cst_60 = arith.constant dense<0.000000e+00> : vector<256x128xf32>
    %98 = tpu.matmul %95, %97, %cst_60 {dimension_numbers = #tpu.dot_dimension_numbers<[1], [0], [0], [1], [0, 0, 1, 1], [], []>} : vector<256x128xbf16>, vector<128x128xbf16>, vector<256x128xf32> -> vector<256x128xf32>
    %99 = arith.addf %92, %98 : vector<256x128xf32>
    %c0_61 = arith.constant 0 : index
    %c0_62 = arith.constant 0 : index
    %100 = vector.load %arg7[%c0_61, %c0_62] : memref<1x128xf32, #tpu.memory_space<vmem>>, vector<1x128xf32>
    %101 = vector.broadcast %100 : vector<1x128xf32> to vector<256x128xf32>
    %102 = arith.mulf %99, %101 : vector<256x128xf32>
    %c0_63 = arith.constant 0 : index
    %c0_64 = arith.constant 0 : index
    %103 = vector.load %arg8[%c0_63, %c0_64] : memref<1x128xf32, #tpu.memory_space<vmem>>, vector<1x128xf32>
    %104 = vector.broadcast %103 : vector<1x128xf32> to vector<256x128xf32>
    %105 = arith.addf %102, %104 : vector<256x128xf32>
    %cst_65 = arith.constant 0.000000e+00 : f32
    %106 = vector.broadcast %cst_65 : f32 to vector<256x128xf32>
    %107 = arith.maximumf %105, %106 : vector<256x128xf32>
    %cst_66 = arith.constant dense<0.000000e+00> : vector<128xf32>
    %108 = vector.multi_reduction <add>, %107, %cst_66 [0] : vector<256x128xf32> to vector<128xf32>
    %109 = vector.shape_cast %108 : vector<128xf32> to vector<1x128xf32>
    %cst_67 = arith.constant 2.560000e+02 : f32
    %110 = vector.broadcast %cst_67 : f32 to vector<1x128xf32>
    %111 = arith.divf %109, %110 : vector<1x128xf32>
    %cst_68 = arith.constant dense<0xFF800000> : vector<128xf32>
    %112 = vector.multi_reduction <maximumf>, %107, %cst_68 [0] : vector<256x128xf32> to vector<128xf32>
    %113 = vector.shape_cast %112 : vector<128xf32> to vector<1x128xf32>
    %114 = tpu.concatenate %111, %113 in 1 : vector<1x128xf32>, vector<1x128xf32> -> vector<1x256xf32>
    %c0_69 = arith.constant 0 : index
    %c0_70 = arith.constant 0 : index
    %115 = vector.load %arg10[%c0_69, %c0_70] : memref<256x2xf32, #tpu.memory_space<vmem>>, vector<256x2xf32>
    %cst_71 = arith.constant dense<0.000000e+00> : vector<1x2xf32>
    %116 = tpu.matmul %114, %115, %cst_71 {dimension_numbers = #tpu.dot_dimension_numbers<[1], [0], [0], [1], [0, 0, 1, 1], [], []>} : vector<1x256xf32>, vector<256x2xf32>, vector<1x2xf32> -> vector<1x2xf32>
    %cst_72 = arith.constant 0.000000e+00 : f32
    %117 = vector.broadcast %cst_72 : f32 to vector<1x2xf32>
    %118 = arith.maximumf %116, %117 : vector<1x2xf32>
    %c0_73 = arith.constant 0 : index
    %c0_74 = arith.constant 0 : index
    %119 = vector.load %arg11[%c0_73, %c0_74] : memref<2x128xf32, #tpu.memory_space<vmem>>, vector<2x128xf32>
    %cst_75 = arith.constant dense<0.000000e+00> : vector<1x128xf32>
    %120 = tpu.matmul %118, %119, %cst_75 {dimension_numbers = #tpu.dot_dimension_numbers<[1], [0], [0], [1], [0, 0, 1, 1], [], []>} : vector<1x2xf32>, vector<2x128xf32>, vector<1x128xf32> -> vector<1x128xf32>
    %121 = arith.negf %120 : vector<1x128xf32>
    %122 = math.exp %121 : vector<1x128xf32>
    %cst_76 = arith.constant 1.000000e+00 : f32
    %123 = vector.broadcast %cst_76 : f32 to vector<1x128xf32>
    %124 = arith.addf %123, %122 : vector<1x128xf32>
    %125 = arith.divf %123, %124 : vector<1x128xf32>
    %126 = vector.broadcast %125 : vector<1x128xf32> to vector<256x128xf32>
    %127 = arith.mulf %107, %126 : vector<256x128xf32>
    %128 = arith.addf %127, %19 : vector<256x128xf32>
    %cst_77 = arith.constant 0.000000e+00 : f32
    %129 = vector.broadcast %cst_77 : f32 to vector<256x128xf32>
    %130 = arith.maximumf %128, %129 : vector<256x128xf32>
    %c0_78 = arith.constant 0 : index
    %c0_79 = arith.constant 0 : index
    %c0_80 = arith.constant 0 : index
    %131 = vector.load %arg12[%c0_78, %c0_79, %c0_80] : memref<1x256x128xf32, #tpu.memory_space<vmem>>, vector<1x256x128xf32>
    %132 = vector.shape_cast %131 : vector<1x256x128xf32> to vector<256x128xf32>
    %133 = vector.shape_cast %130 : vector<256x128xf32> to vector<1x256x128xf32>
    tpu.vector_store %arg12[%c0_78, %c0_79, %c0_80], %133 {strides = array<i32>} : memref<1x256x128xf32, #tpu.memory_space<vmem>>, vector<1x256x128xf32>,
    return
  }
  func.func @transform_0(%arg0: i32) -> (i32, i32, i32) {
    %c0_i32 = arith.constant 0 : i32
    %c0_i32_0 = arith.constant 0 : i32
    %c0_i32_1 = arith.constant 0 : i32
    return %arg0, %c0_i32, %c0_i32_0 : i32, i32, i32
  }
  func.func @transform_1(%arg0: i32) -> (i32, i32) {
    %c0_i32 = arith.constant 0 : i32
    %c0_i32_0 = arith.constant 0 : i32
    %c0_i32_1 = arith.constant 0 : i32
    return %c0_i32, %c0_i32_0 : i32, i32
  }
  func.func @transform_2(%arg0: i32) -> (i32, i32) {
    %c0_i32 = arith.constant 0 : i32
    %c0_i32_0 = arith.constant 0 : i32
    %c0_i32_1 = arith.constant 0 : i32
    return %c0_i32, %c0_i32_0 : i32, i32
  }
  func.func @transform_3(%arg0: i32) -> (i32, i32) {
    %c0_i32 = arith.constant 0 : i32
    %c0_i32_0 = arith.constant 0 : i32
    %c0_i32_1 = arith.constant 0 : i32
    return %c0_i32, %c0_i32_0 : i32, i32
  }
  func.func @transform_4(%arg0: i32) -> (i32, i32) {
    %c0_i32 = arith.constant 0 : i32
    %c0_i32_0 = arith.constant 0 : i32
    %c0_i32_1 = arith.constant 0 : i32
    return %c0_i32, %c0_i32_0 : i32, i32
  }
  func.func @transform_5(%arg0: i32) -> (i32, i32) {
    %c0_i32 = arith.constant 0 : i32
    %c0_i32_0 = arith.constant 0 : i32
    %c0_i32_1 = arith.constant 0 : i32
    return %c0_i32, %c0_i32_0 : i32, i32
  }
  func.func @transform_6(%arg0: i32) -> (i32, i32) {
    %c0_i32 = arith.constant 0 : i32
    %c0_i32_0 = arith.constant 0 : i32
    %c0_i32_1 = arith.constant 0 : i32
    return %c0_i32, %c0_i32_0 : i32, i32
  }
  func.func @transform_7(%arg0: i32) -> (i32, i32) {
    %c0_i32 = arith.constant 0 : i32
    %c0_i32_0 = arith.constant 0 : i32
    %c0_i32_1 = arith.constant 0 : i32
    return %c0_i32, %c0_i32_0 : i32, i32
  }
  func.func @transform_8(%arg0: i32) -> (i32, i32, i32, i32) {
    %c0_i32 = arith.constant 0 : i32
    %c0_i32_0 = arith.constant 0 : i32
    %c0_i32_1 = arith.constant 0 : i32
    %c0_i32_2 = arith.constant 0 : i32
    %c0_i32_3 = arith.constant 0 : i32
    return %c0_i32, %c0_i32_0, %c0_i32_1, %c0_i32_2 : i32, i32, i32, i32
  }
  func.func @transform_9(%arg0: i32) -> (i32, i32) {
    %c0_i32 = arith.constant 0 : i32
    %c0_i32_0 = arith.constant 0 : i32
    %c0_i32_1 = arith.constant 0 : i32
    return %c0_i32, %c0_i32_0 : i32, i32
  }
  func.func @transform_10(%arg0: i32) -> (i32, i32) {
    %c0_i32 = arith.constant 0 : i32
    %c0_i32_0 = arith.constant 0 : i32
    %c0_i32_1 = arith.constant 0 : i32
    return %c0_i32, %c0_i32_0 : i32, i32
  }
  func.func @transform_11(%arg0: i32) -> (i32, i32, i32) {
    %c0_i32 = arith.constant 0 : i32
    %c0_i32_0 = arith.constant 0 : i32
    %c0_i32_1 = arith.constant 0 : i32
    return %arg0, %c0_i32, %c0_i32_0 : i32, i32, i32
  }
}

</mosaic_0001>

<llo_original>
// kernel: double_conv_forward.1
$region0: #{double_conv_forward.1}
  #allocation0 [shape = 'u32[]', space=smem, size = 0x4, offset = 0x4, fixed_abs, tag = 'smem constant byte address 0x4 - core index']
  #allocation1 [shape = 'u32[144,128]{1,0:T(1,128)}', space=vmem, size = 0x12000, scoped, tag = 'internal scratch']
  %s0 = inlined_call_operand.vmem [shape: bf16[2,432,128], index: 0, kind: input, shape index: {}]
  %s1 = inlined_call_operand.vmem [shape: bf16[128,128], index: 1, kind: input, shape index: {}]
  %s2 = inlined_call_operand.vmem [shape: bf16[128,128], index: 2, kind: input, shape index: {}]
  %s3 = inlined_call_operand.vmem [shape: f32[1,128], index: 3, kind: input, shape index: {}]
  %s4 = inlined_call_operand.vmem [shape: f32[1,128], index: 4, kind: input, shape index: {}]
  %s5 = inlined_call_operand.vmem [shape: f32[1,128], index: 5, kind: input, shape index: {}]
  %s6 = inlined_call_operand.vmem [shape: f32[1,128], index: 6, kind: input, shape index: {}]
  %s7 = inlined_call_operand.vmem [shape: f32[1,128], index: 7, kind: input, shape index: {}]
  %s8 = inlined_call_operand.vmem [shape: bf16[3,3,128,128], index: 8, kind: input, shape index: {}]
  %s9 = inlined_call_operand.vmem [shape: f32[256,2], index: 9, kind: input, shape index: {}]
  %s10 = inlined_call_operand.vmem [shape: f32[2,128], index: 10, kind: input, shape index: {}]
  %s11 = inlined_call_operand.vmem [shape: f32[2,256,128], index: 11, kind: output, shape index: {}]
  %s12 = sld [smem:[#allocation0]]
  $region77: #{double_conv_forward.1} parent=0
    _
  %s14 = ssub.s32 1, %s12
  %s15 = scalar_select 0, %s14, %s12
  loop: start=0, step=1, limit=4
  $region2: #{double_conv_forward.1} parent=0 // loop_pre_header
    _
  $region3: #{double_conv_forward.1} parent=0 // loop_header
    %s17 = sphi 0, %s21
    %p18 = scmp.ge.s32.totalorder %s17, 4
    %s27 = sphi 0, %s29
    %s30 = sphi 0, %s27
    %s31 = sphi 0, %s30
    %s47 = sphi 0, %s31
    %s51 = sphi 0, %s51
    %s53 = sphi 0, %s51
    %s54 = sphi 0, %s53
    %s68 = sphi 0, %s54
    %s72 = sphi 0, %s72
    %s74 = sphi 0, %s72
    %s75 = sphi 0, %s74
    %s89 = sphi 0, %s75
    %s93 = sphi 0, %s93
    %s95 = sphi 0, %s93
    %s96 = sphi 0, %s95
    %s110 = sphi 0, %s96
    %s114 = sphi 0, %s114
    %s116 = sphi 0, %s114
    %s117 = sphi 0, %s116
    %s131 = sphi 0, %s117
    %s135 = sphi 0, %s135
    %s137 = sphi 0, %s135
    %s138 = sphi 0, %s137
    %s152 = sphi 0, %s138
    %s156 = sphi 0, %s156
    %s158 = sphi 0, %s156
    %s159 = sphi 0, %s158
    %s173 = sphi 0, %s159
    %s177 = sphi 0, %s177
    %s179 = sphi 0, %s177
    %s180 = sphi 0, %s179
    %s194 = sphi 0, %s180
    %s198 = sphi 0, %s198
    %s200 = sphi 0, %s198
    %s201 = sphi 0, %s200
    %s215 = sphi 0, %s201
    %s219 = sphi 0, %s219
    %s221 = sphi 0, %s219
    %s222 = sphi 0, %s221
    %s236 = sphi 0, %s222
    %s240 = sphi 0, %s240
    %s242 = sphi 0, %s240
    %s243 = sphi 0, %s242
    %s257 = sphi 0, %s243
    %s263 = sphi 0, %s265
    %s266 = sphi 0, %s263
    %s267 = sphi 0, %s266
    %s283 = sphi 0, %s267
  $region4: #{double_conv_forward.1} parent=0 // loop_header_branch
    %20 = sbr.rel (%p18) target = $region8
  $region5: #{double_conv_forward.1} parent=0 // loop_body
    %s22 = ssub.s32 %s17, 1
    %s23 = ssub.s32 %s17, 2
    %s24 = sadd.s32 %s17, 1
    %s25 = ssub.s32 %s17, %s24
    %p26 = scmp.eq.s32.totalorder %s25, 0
    %s28 = sadd.s32 %s27, 1
    %s29 = scalar_select %p26, %s27, %s28
    %p32 = pneg %p26
    %p33 = scmp.eq.s32.totalorder %s17, 1
    %p34 = por %p32, %p33
    %p35 = scmp.ne.s32.totalorder %s27, %s30
    %p36 = scmp.eq.s32.totalorder %s17, 0
    %p37 = por %p35, %p36
    %p38 = scmp.ne.s32.totalorder %s27, %s30
    %p39 = scmp.eq.s32.totalorder %s22, 1
    %p40 = por %p38, %p39
    %p41 = scmp.ne.s32.totalorder %s30, %s31
    %p42 = scmp.eq.s32.totalorder %s22, 0
    %p43 = por %p41, %p42
    %p44 = scmp.ne.s32.totalorder %s30, %s31
    %p45 = scmp.eq.s32.totalorder %s23, 1
    %p46 = por %p44, %p45
    %p48 = scmp.ne.s32.totalorder %s31, %s47
    %p49 = scmp.eq.s32.totalorder %s23, 0
    %p50 = por %p48, %p49
    %s52 = sadd.s32 %s51, 1
    %p55 = scmp.eq.s32.totalorder %s17, 1
    %p56 = scmp.ne.s32.totalorder %s51, %s53
    %p57 = scmp.eq.s32.totalorder %s17, 0
    %p58 = por %p56, %p57
    %p59 = scmp.ne.s32.totalorder %s51, %s53
    %p60 = scmp.eq.s32.totalorder %s22, 1
    %p61 = por %p59, %p60
    %p62 = scmp.ne.s32.totalorder %s53, %s54
    %p63 = scmp.eq.s32.totalorder %s22, 0
    %p64 = por %p62, %p63
    %p65 = scmp.ne.s32.totalorder %s53, %s54
    %p66 = scmp.eq.s32.totalorder %s23, 1
    %p67 = por %p65, %p66
    %p69 = scmp.ne.s32.totalorder %s54, %s68
    %p70 = scmp.eq.s32.totalorder %s23, 0
    %p71 = por %p69, %p70
    %s73 = sadd.s32 %s72, 1
    %p76 = scmp.eq.s32.totalorder %s17, 1
    %p77 = scmp.ne.s32.totalorder %s72, %s74
    %p78 = scmp.eq.s32.totalorder %s17, 0
    %p79 = por %p77, %p78
    %p80 = scmp.ne.s32.totalorder %s72, %s74
    %p81 = scmp.eq.s32.totalorder %s22, 1
    %p82 = por %p80, %p81
    %p83 = scmp.ne.s32.totalorder %s74, %s75
    %p84 = scmp.eq.s32.totalorder %s22, 0
    %p85 = por %p83, %p84
    %p86 = scmp.ne.s32.totalorder %s74, %s75
    %p87 = scmp.eq.s32.totalorder %s23, 1
    %p88 = por %p86, %p87
    %p90 = scmp.ne.s32.totalorder %s75, %s89
    %p91 = scmp.eq.s32.totalorder %s23, 0
    %p92 = por %p90, %p91
    %s94 = sadd.s32 %s93, 1
    %p97 = scmp.eq.s32.totalorder %s17, 1
    %p98 = scmp.ne.s32.totalorder %s93, %s95
    %p99 = scmp.eq.s32.totalorder %s17, 0
    %p100 = por %p98, %p99
    %p101 = scmp.ne.s32.totalorder %s93, %s95
    %p102 = scmp.eq.s32.totalorder %s22, 1
    %p103 = por %p101, %p102
    %p104 = scmp.ne.s32.totalorder %s95, %s96
    %p105 = scmp.eq.s32.totalorder %s22, 0
    %p106 = por %p104, %p105
    %p107 = scmp.ne.s32.totalorder %s95, %s96
    %p108 = scmp.eq.s32.totalorder %s23, 1
    %p109 = por %p107, %p108
    %p111 = scmp.ne.s32.totalorder %s96, %s110
    %p112 = scmp.eq.s32.totalorder %s23, 0
    %p113 = por %p111, %p112
    %s115 = sadd.s32 %s114, 1
    %p118 = scmp.eq.s32.totalorder %s17, 1
    %p119 = scmp.ne.s32.totalorder %s114, %s116
    %p120 = scmp.eq.s32.totalorder %s17, 0
    %p121 = por %p119, %p120
    %p122 = scmp.ne.s32.totalorder %s114, %s116
    %p123 = scmp.eq.s32.totalorder %s22, 1
    %p124 = por %p122, %p123
    %p125 = scmp.ne.s32.totalorder %s116, %s117
    %p126 = scmp.eq.s32.totalorder %s22, 0
    %p127 = por %p125, %p126
    %p128 = scmp.ne.s32.totalorder %s116, %s117
    %p129 = scmp.eq.s32.totalorder %s23, 1
    %p130 = por %p128, %p129
    %p132 = scmp.ne.s32.totalorder %s117, %s131
    %p133 = scmp.eq.s32.totalorder %s23, 0
    %p134 = por %p132, %p133
    %s136 = sadd.s32 %s135, 1
    %p139 = scmp.eq.s32.totalorder %s17, 1
    %p140 = scmp.ne.s32.totalorder %s135, %s137
    %p141 = scmp.eq.s32.totalorder %s17, 0
    %p142 = por %p140, %p141
    %p143 = scmp.ne.s32.totalorder %s135, %s137
    %p144 = scmp.eq.s32.totalorder %s22, 1
    %p145 = por %p143, %p144
    %p146 = scmp.ne.s32.totalorder %s137, %s138
    %p147 = scmp.eq.s32.totalorder %s22, 0
    %p148 = por %p146, %p147
    %p149 = scmp.ne.s32.totalorder %s137, %s138
    %p150 = scmp.eq.s32.totalorder %s23, 1
    %p151 = por %p149, %p150
    %p153 = scmp.ne.s32.totalorder %s138, %s152
    %p154 = scmp.eq.s32.totalorder %s23, 0
    %p155 = por %p153, %p154
    %s157 = sadd.s32 %s156, 1
    %p160 = scmp.eq.s32.totalorder %s17, 1
    %p161 = scmp.ne.s32.totalorder %s156, %s158
    %p162 = scmp.eq.s32.totalorder %s17, 0
    %p163 = por %p161, %p162
    %p164 = scmp.ne.s32.totalorder %s156, %s158
    %p165 = scmp.eq.s32.totalorder %s22, 1
    %p166 = por %p164, %p165
    %p167 = scmp.ne.s32.totalorder %s158, %s159
    %p168 = scmp.eq.s32.totalorder %s22, 0
    %p169 = por %p167, %p168
    %p170 = scmp.ne.s32.totalorder %s158, %s159
    %p171 = scmp.eq.s32.totalorder %s23, 1
    %p172 = por %p170, %p171
    %p174 = scmp.ne.s32.totalorder %s159, %s173
    %p175 = scmp.eq.s32.totalorder %s23, 0
    %p176 = por %p174, %p175
    %s178 = sadd.s32 %s177, 1
    %p181 = scmp.eq.s32.totalorder %s17, 1
    %p182 = scmp.ne.s32.totalorder %s177, %s179
    %p183 = scmp.eq.s32.totalorder %s17, 0
    %p184 = por %p182, %p183
    %p185 = scmp.ne.s32.totalorder %s177, %s179
    %p186 = scmp.eq.s32.totalorder %s22, 1
    %p187 = por %p185, %p186
    %p188 = scmp.ne.s32.totalorder %s179, %s180
    %p189 = scmp.eq.s32.totalorder %s22, 0
    %p190 = por %p188, %p189
    %p191 = scmp.ne.s32.totalorder %s179, %s180
    %p192 = scmp.eq.s32.totalorder %s23, 1
    %p193 = por %p191, %p192
    %p195 = scmp.ne.s32.totalorder %s180, %s194
    %p196 = scmp.eq.s32.totalorder %s23, 0
    %p197 = por %p195, %p196
    %s199 = sadd.s32 %s198, 1
    %p202 = scmp.eq.s32.totalorder %s17, 1
    %p203 = scmp.ne.s32.totalorder %s198, %s200
    %p204 = scmp.eq.s32.totalorder %s17, 0
    %p205 = por %p203, %p204
    %p206 = scmp.ne.s32.totalorder %s198, %s200
    %p207 = scmp.eq.s32.totalorder %s22, 1
    %p208 = por %p206, %p207
    %p209 = scmp.ne.s32.totalorder %s200, %s201
    %p210 = scmp.eq.s32.totalorder %s22, 0
    %p211 = por %p209, %p210
    %p212 = scmp.ne.s32.totalorder %s200, %s201
    %p213 = scmp.eq.s32.totalorder %s23, 1
    %p214 = por %p212, %p213
    %p216 = scmp.ne.s32.totalorder %s201, %s215
    %p217 = scmp.eq.s32.totalorder %s23, 0
    %p218 = por %p216, %p217
    %s220 = sadd.s32 %s219, 1
    %p223 = scmp.eq.s32.totalorder %s17, 1
    %p224 = scmp.ne.s32.totalorder %s219, %s221
    %p225 = scmp.eq.s32.totalorder %s17, 0
    %p226 = por %p224, %p225
    %p227 = scmp.ne.s32.totalorder %s219, %s221
    %p228 = scmp.eq.s32.totalorder %s22, 1
    %p229 = por %p227, %p228
    %p230 = scmp.ne.s32.totalorder %s221, %s222
    %p231 = scmp.eq.s32.totalorder %s22, 0
    %p232 = por %p230, %p231
    %p233 = scmp.ne.s32.totalorder %s221, %s222
    %p234 = scmp.eq.s32.totalorder %s23, 1
    %p235 = por %p233, %p234
    %p237 = scmp.ne.s32.totalorder %s222, %s236
    %p238 = scmp.eq.s32.totalorder %s23, 0
    %p239 = por %p237, %p238
    %s241 = sadd.s32 %s240, 1
    %p244 = scmp.eq.s32.totalorder %s17, 1
    %p245 = scmp.ne.s32.totalorder %s240, %s242
    %p246 = scmp.eq.s32.totalorder %s17, 0
    %p247 = por %p245, %p246
    %p248 = scmp.ne.s32.totalorder %s240, %s242
    %p249 = scmp.eq.s32.totalorder %s22, 1
    %p250 = por %p248, %p249
    %p251 = scmp.ne.s32.totalorder %s242, %s243
    %p252 = scmp.eq.s32.totalorder %s22, 0
    %p253 = por %p251, %p252
    %p254 = scmp.ne.s32.totalorder %s242, %s243
    %p255 = scmp.eq.s32.totalorder %s23, 1
    %p256 = por %p254, %p255
    %p258 = scmp.ne.s32.totalorder %s243, %s257
    %p259 = scmp.eq.s32.totalorder %s23, 0
    %p260 = por %p258, %p259
    %s261 = ssub.s32 %s17, %s24
    %p262 = scmp.eq.s32.totalorder %s261, 0
    %s264 = sadd.s32 %s263, 1
    %s265 = scalar_select %p262, %s263, %s264
    %p268 = pneg %p262
    %p269 = scmp.eq.s32.totalorder %s17, 1
    %p270 = por %p268, %p269
    %p271 = scmp.ne.s32.totalorder %s263, %s266
    %p272 = scmp.eq.s32.totalorder %s17, 0
    %p273 = por %p271, %p272
    %p274 = scmp.ne.s32.totalorder %s263, %s266
    %p275 = scmp.eq.s32.totalorder %s22, 1
    %p276 = por %p274, %p275
    %p277 = scmp.ne.s32.totalorder %s266, %s267
    %p278 = scmp.eq.s32.totalorder %s22, 0
    %p279 = por %p277, %p278
    %p280 = scmp.ne.s32.totalorder %s266, %s267
    %p281 = scmp.eq.s32.totalorder %s23, 1
    %p282 = por %p280, %p281
    %p284 = scmp.ne.s32.totalorder %s267, %s283
    %p285 = scmp.eq.s32.totalorder %s23, 0
    %p286 = por %p284, %p285
    %p287 = scmp.le.s32.totalorder 1, %s17
    %p288 = scmp.lt.s32.totalorder %s17, 3
    %p289 = pnand %p287, %p288
    %p290 = pneg %p289
    // Predicated region
    $region9: #{double_conv_forward.1} parent=5 // pred_check
      _
    $region10: #{double_conv_forward.1} parent=5 // pred_check_branch
      %292 = sbr.rel (%p289) target = $region12
    $region11: #{double_conv_forward.1} parent=5 // pred_region
      %s293 = ssub.s32 %s17, 1
      // Predicated region
      $region13: #{double_conv_forward.1} parent=11 // pred_check
        %p294 = pneg %p64
      $region14: #{double_conv_forward.1} parent=11 // pred_check_branch
        %296 = sbr.rel (%p294) target = $region16
      $region15: #{double_conv_forward.1} parent=11 // pred_region
        _
      $region16: #{double_conv_forward.1} parent=11 // pred_fallthru
        _
      // Predicated region
      $region17: #{double_conv_forward.1} parent=11 // pred_check
        %p297 = pneg %p85
      $region18: #{double_conv_forward.1} parent=11 // pred_check_branch
        %299 = sbr.rel (%p297) target = $region20
      $region19: #{double_conv_forward.1} parent=11 // pred_region
        _
      $region20: #{double_conv_forward.1} parent=11 // pred_fallthru
        _
      // Predicated region
      $region21: #{double_conv_forward.1} parent=11 // pred_check
        %p300 = pneg %p106
      $region22: #{double_conv_forward.1} parent=11 // pred_check_branch
        %302 = sbr.rel (%p300) target = $region24
      $region23: #{double_conv_forward.1} parent=11 // pred_region
        _
      $region24: #{double_conv_forward.1} parent=11 // pred_fallthru
        _
      // Predicated region
      $region25: #{double_conv_forward.1} parent=11 // pred_check
        %p303 = pneg %p127
      $region26: #{double_conv_forward.1} parent=11 // pred_check_branch
        %305 = sbr.rel (%p303) target = $region28
      $region27: #{double_conv_forward.1} parent=11 // pred_region
        _
      $region28: #{double_conv_forward.1} parent=11 // pred_fallthru
        _
      // Predicated region
      $region29: #{double_conv_forward.1} parent=11 // pred_check
        %p306 = pneg %p148
      $region30: #{double_conv_forward.1} parent=11 // pred_check_branch
        %308 = sbr.rel (%p306) target = $region32
      $region31: #{double_conv_forward.1} parent=11 // pred_region
        _
      $region32: #{double_conv_forward.1} parent=11 // pred_fallthru
        _
      // Predicated region
      $region33: #{double_conv_forward.1} parent=11 // pred_check
        %p309 = pneg %p169
      $region34: #{double_conv_forward.1} parent=11 // pred_check_branch
        %311 = sbr.rel (%p309) target = $region36
      $region35: #{double_conv_forward.1} parent=11 // pred_region
        _
      $region36: #{double_conv_forward.1} parent=11 // pred_fallthru
        _
      // Predicated region
      $region37: #{double_conv_forward.1} parent=11 // pred_check
        %p312 = pneg %p190
      $region38: #{double_conv_forward.1} parent=11 // pred_check_branch
        %314 = sbr.rel (%p312) target = $region40
      $region39: #{double_conv_forward.1} parent=11 // pred_region
        _
      $region40: #{double_conv_forward.1} parent=11 // pred_fallthru
        _
      // Predicated region
      $region41: #{double_conv_forward.1} parent=11 // pred_check
        %p315 = pneg %p211
      $region42: #{double_conv_forward.1} parent=11 // pred_check_branch
        %317 = sbr.rel (%p315) target = $region44
      $region43: #{double_conv_forward.1} parent=11 // pred_region
        _
      $region44: #{double_conv_forward.1} parent=11 // pred_fallthru
        _
      // Predicated region
      $region45: #{double_conv_forward.1} parent=11 // pred_check
        %p318 = pneg %p232
      $region46: #{double_conv_forward.1} parent=11 // pred_check_branch
        %320 = sbr.rel (%p318) target = $region48
      $region47: #{double_conv_forward.1} parent=11 // pred_region
        _
      $region48: #{double_conv_forward.1} parent=11 // pred_fallthru
        _
      // Predicated region
      $region49: #{double_conv_forward.1} parent=11 // pred_check
        %p321 = pneg %p253
      $region50: #{double_conv_forward.1} parent=11 // pred_check_branch
        %323 = sbr.rel (%p321) target = $region52
      $region51: #{double_conv_forward.1} parent=11 // pred_region
        _
      $region52: #{double_conv_forward.1} parent=11 // pred_fallthru
        _
    $region12: #{double_conv_forward.1} parent=5 // pred_fallthru
      _
    %p324 = scmp.lt.s32.totalorder %s17, 2
    // Predicated region
    $region53: #{double_conv_forward.1} parent=5 // pred_check
      %p325 = pneg %p324
    $region54: #{double_conv_forward.1} parent=5 // pred_check_branch
      %327 = sbr.rel (%p325) target = $region56
    $region55: #{double_conv_forward.1} parent=5 // pred_region
      // Predicated region
      $region57: #{double_conv_forward.1} parent=55 // pred_check
        %p328 = pneg %p37
      $region58: #{double_conv_forward.1} parent=55 // pred_check_branch
        %330 = sbr.rel (%p328) target = $region60
      $region59: #{double_conv_forward.1} parent=55 // pred_region
        %p331 = scmp.lt.s32.totalorder %s17, 1
        %s332 = scalar_select %p331, %s17, 1
        %s333 = smul.addr %s332, 54
        %s334 = smul.addr %s333, 4
        %s335 = scalar_lea.vmem %s0, %s334
      $region60: #{double_conv_forward.1} parent=55 // pred_fallthru
        _
    $region56: #{double_conv_forward.1} parent=5 // pred_fallthru
      _
    %p336 = scmp.le.s32.totalorder 1, %s17
    %p337 = scmp.lt.s32.totalorder %s17, 3
    %p338 = pnand %p336, %p337
    %p339 = pneg %p338
    // Predicated region
    $region61: #{double_conv_forward.1} parent=5 // pred_check
      _
    $region62: #{double_conv_forward.1} parent=5 // pred_check_branch
      %341 = sbr.rel (%p338) target = $region64
    $region63: #{double_conv_forward.1} parent=5 // pred_region
      %s342 = ssub.s32 %s17, 1
      %p343 = scmp.lt.s32.totalorder %s22, 1
      %s344 = scalar_select %p343, %s22, 1
      %s345 = smul.addr %s344, 54
      %s346 = smul.addr %s345, 4
      %s347 = scalar_lea.vmem %s0, %s346
      %p348 = pneg %p43
      %p349 = pneg %p40
      %p350 = pneg %p64
      %p351 = pneg %p61
      %p352 = pneg %p85
      %p353 = pneg %p82
      %p354 = pneg %p106
      %p355 = pneg %p103
      %p356 = pneg %p127
      %p357 = pneg %p124
      %p358 = pneg %p148
      %p359 = pneg %p145
      %p360 = pneg %p169
      %p361 = pneg %p166
      %p362 = pneg %p190
      %p363 = pneg %p187
      %p364 = pneg %p211
      %p365 = pneg %p208
      %p366 = pneg %p232
      %p367 = pneg %p229
      %p368 = pneg %p253
      %p369 = pneg %p250
      %p370 = pneg %p279
      %p371 = pneg %p276
      %p372 = scmp.lt.s32.totalorder %s22, 1
      %s373 = scalar_select %p372, %s22, 1
      %s374 = smul.addr %s373, 32
      %s375 = smul.addr %s374, 8
      %s376 = scalar_lea.vmem %s11, %s375
      %p377 = scmp.lt.s32.totalorder %s22, 1
      %s378 = scalar_select %p377, %s22, 1
      %s379 = smul.addr %s378, 54
      %s380 = smul.addr %s379, 4
      %s381 = scalar_lea.vmem %s0, %s380
      %p382 = scmp.lt.s32.totalorder %s22, 1
      %s383 = scalar_select %p382, %s22, 1
      %s384 = smul.addr %s383, 32
      %s385 = smul.addr %s384, 8
      %s386 = scalar_lea.vmem %s11, %s385
      %v388 = vld [vmem:[%s381] sm:$0xf]
      %v389 = vld [vmem:[%s381 + $0x4] sm:$0xf]
      %v390 = vld [vmem:[%s381 + $0x8] sm:$0xf]
      %v391 = vld [vmem:[%s381 + $0xc] sm:$0xf]
      %v392 = vld [vmem:[%s381 + $0x10] sm:$0xf]
      %v393 = vld [vmem:[%s381 + $0x14] sm:$0xf]
      %v394 = vld [vmem:[%s381 + $0x18] sm:$0xf]
      %v395 = vld [vmem:[%s381 + $0x1c] sm:$0xf]
      %v396 = vld [vmem:[%s381 + $0x20] sm:$0xf]
      %v397 = vld [vmem:[%s381 + $0x24] sm:$0xf]
      %v398 = vld [vmem:[%s381 + $0x28] sm:$0xf]
      %v399 = vld [vmem:[%s381 + $0x2c] sm:$0xf]
      %v400 = vld [vmem:[%s381 + $0x30] sm:$0xf]
      %v401 = vld [vmem:[%s381 + $0x34] sm:$0xf]
      %v402 = vld [vmem:[%s381 + $0x38] sm:$0xf]
      %v403 = vld [vmem:[%s381 + $0x3c] sm:$0xf]
      %v404 = vld [vmem:[%s381 + $0x40] sm:$0xf]
      %v405 = vld [vmem:[%s381 + $0x44] sm:$0xf]
      %v406 = vld [vmem:[%s381 + $0x48] sm:$0xf]
      %v407 = vld [vmem:[%s381 + $0x4c] sm:$0xf]
      %v408 = vld [vmem:[%s381 + $0x50] sm:$0xf]
      %v409 = vld [vmem:[%s381 + $0x54] sm:$0xf]
      %v410 = vld [vmem:[%s381 + $0x58] sm:$0xf]
      %v411 = vld [vmem:[%s381 + $0x5c] sm:$0xf]
      %v412 = vld [vmem:[%s381 + $0x60] sm:$0xf]
      %v413 = vld [vmem:[%s381 + $0x64] sm:$0xf]
      %v414 = vld [vmem:[%s381 + $0x68] sm:$0xf]
      %v415 = vld [vmem:[%s381 + $0x6c] sm:$0xf]
      %v416 = vld [vmem:[%s381 + $0x70] sm:$0xf]
      %v417 = vld [vmem:[%s381 + $0x74] sm:$0xf]
      %v418 = vld [vmem:[%s381 + $0x78] sm:$0xf]
      %v419 = vld [vmem:[%s381 + $0x7c] sm:$0xf]
      %v420 = vld [vmem:[%s381 + $0x80] sm:$0xf]
      %v421 = vld [vmem:[%s381 + $0x84] sm:$0xf]
      %v422 = vld [vmem:[%s381 + $0x88] sm:$0xf]
      %v423 = vld [vmem:[%s381 + $0x8c] sm:$0xf]
      %v424 = vld [vmem:[%s381 + $0x90] sm:$0xf]
      %v425 = vld [vmem:[%s381 + $0x94] sm:$0xf]
      %v426 = vld [vmem:[%s381 + $0x98] sm:$0xf]
      %v427 = vld [vmem:[%s381 + $0x9c] sm:$0xf]
      %v428 = vld [vmem:[%s381 + $0xa0] sm:$0xf]
      %v429 = vld [vmem:[%s381 + $0xa4] sm:$0xf]
      %v430 = vld [vmem:[%s381 + $0xa8] sm:$0xf]
      %v431 = vld [vmem:[%s381 + $0xac] sm:$0xf]
      %v432 = vld [vmem:[%s381 + $0xb0] sm:$0xf]
      %v433 = vld [vmem:[%s381 + $0xb4] sm:$0xf]
      %v434 = vld [vmem:[%s381 + $0xb8] sm:$0xf]
      %v435 = vld [vmem:[%s381 + $0xbc] sm:$0xf]
      %v436 = vld [vmem:[%s381 + $0xc0] sm:$0xf]
      %v437 = vld [vmem:[%s381 + $0xc4] sm:$0xf]
      %v438 = vld [vmem:[%s381 + $0xc8] sm:$0xf]
      %v439 = vld [vmem:[%s381 + $0xcc] sm:$0xf]
      %v440 = vld [vmem:[%s381 + $0xd0] sm:$0xf]
      %v441 = vld [vmem:[%s381 + $0xd4] sm:$0xf]
      %v442 = vld [vmem:[%s1] sm:$0xf]
      %v443 = vld [vmem:[%s1 + $0x4] sm:$0xf]
      %v444 = vld [vmem:[%s1 + $0x8] sm:$0xf]
      %v445 = vld [vmem:[%s1 + $0xc] sm:$0xf]
      %v446 = vld [vmem:[%s1 + $0x10] sm:$0xf]
      %v447 = vld [vmem:[%s1 + $0x14] sm:$0xf]
      %v448 = vld [vmem:[%s1 + $0x18] sm:$0xf]
      %v449 = vld [vmem:[%s1 + $0x1c] sm:$0xf]
      %v450 = vld [vmem:[%s1 + $0x20] sm:$0xf]
      %v451 = vld [vmem:[%s1 + $0x24] sm:$0xf]
      %v452 = vld [vmem:[%s1 + $0x28] sm:$0xf]
      %v453 = vld [vmem:[%s1 + $0x2c] sm:$0xf]
      %v454 = vld [vmem:[%s1 + $0x30] sm:$0xf]
      %v455 = vld [vmem:[%s1 + $0x34] sm:$0xf]
      %v456 = vld [vmem:[%s1 + $0x38] sm:$0xf]
      %v457 = vld [vmem:[%s1 + $0x3c] sm:$0xf]
      %v512 = vunpack.c.l.b16 %v388
      %v513 = vunpack.c.l.b16 %v389
      %v514 = vunpack.c.l.b16 %v390
      %v515 = vunpack.c.l.b16 %v391
      %v516 = vunpack.c.l.b16 %v392
      %v517 = vunpack.c.l.b16 %v393
      %v518 = vunpack.c.l.b16 %v394
      %v519 = vunpack.c.l.b16 %v395
      %v520 = vunpack.c.l.b16 %v396
      %v521 = vunpack.c.l.b16 %v397
      %v522 = vunpack.c.l.b16 %v398
      %v523 = vunpack.c.l.b16 %v399
      %v524 = vunpack.c.l.b16 %v400
      %v525 = vunpack.c.l.b16 %v401
      %v526 = vunpack.c.l.b16 %v402
      %v527 = vunpack.c.l.b16 %v403
      %v528 = vunpack.c.l.b16 %v404
      %v529 = vunpack.c.l.b16 %v405
      %v530 = vunpack.c.l.b16 %v406
      %v531 = vunpack.c.l.b16 %v407
      %v532 = vunpack.c.l.b16 %v408
      %v533 = vunpack.c.l.b16 %v409
      %v534 = vunpack.c.l.b16 %v410
      %v535 = vunpack.c.l.b16 %v411
      %v536 = vunpack.c.l.b16 %v412
      %v537 = vunpack.c.l.b16 %v413
      %v538 = vunpack.c.l.b16 %v414
      %v539 = vunpack.c.l.b16 %v415
      %v540 = vunpack.c.l.b16 %v416
      %v541 = vunpack.c.l.b16 %v417
      %v542 = vunpack.c.l.b16 %v418
      %v543 = vunpack.c.l.b16 %v419
      %v544 = vunpack.c.l.b16 %v420
      %v545 = vunpack.c.l.b16 %v421
      %v546 = vunpack.c.l.b16 %v422
      %v547 = vunpack.c.l.b16 %v423
      %v548 = vunpack.c.l.b16 %v424
      %v549 = vunpack.c.l.b16 %v425
      %v550 = vunpack.c.l.b16 %v426
      %v551 = vunpack.c.l.b16 %v427
      %v552 = vunpack.c.l.b16 %v428
      %v553 = vunpack.c.l.b16 %v429
      %v554 = vunpack.c.l.b16 %v430
      %v555 = vunpack.c.l.b16 %v431
      %v556 = vunpack.c.l.b16 %v432
      %v557 = vunpack.c.l.b16 %v433
      %v558 = vunpack.c.l.b16 %v434
      %v559 = vunpack.c.l.b16 %v435
      %v560 = vunpack.c.l.b16 %v436
      %v561 = vunpack.c.l.b16 %v437
      %v562 = vunpack.c.l.b16 %v438
      %v563 = vunpack.c.l.b16 %v439
      %v564 = vunpack.c.l.b16 %v440
      %v565 = vunpack.c.l.b16 %v441
      %v566 = vpack.c.b16 %v513, %v512
      %v567 = vpack.c.b16 %v515, %v514
      %v568 = vpack.c.b16 %v517, %v516
      %v569 = vpack.c.b16 %v519, %v518
      %v570 = vpack.c.b16 %v521, %v520
      %v571 = vpack.c.b16 %v523, %v522
      %v572 = vpack.c.b16 %v525, %v524
      %v573 = vpack.c.b16 %v527, %v526
      %v574 = vpack.c.b16 %v529, %v528
      %v575 = vpack.c.b16 %v531, %v530
      %v576 = vpack.c.b16 %v533, %v532
      %v577 = vpack.c.b16 %v535, %v534
      %v578 = vpack.c.b16 %v537, %v536
      %v579 = vpack.c.b16 %v539, %v538
      %v580 = vpack.c.b16 %v541, %v540
      %v581 = vpack.c.b16 %v543, %v542
      %v582 = vpack.c.b16 %v545, %v544
      %v583 = vpack.c.b16 %v547, %v546
      %v584 = vpack.c.b16 %v549, %v548
      %v585 = vpack.c.b16 %v551, %v550
      %v586 = vpack.c.b16 %v553, %v552
      %v587 = vpack.c.b16 %v555, %v554
      %v588 = vpack.c.b16 %v557, %v556
      %v589 = vpack.c.b16 %v559, %v558
      %v590 = vpack.c.b16 %v561, %v560
      %v591 = vpack.c.b16 %v563, %v562
      %v592 = vpack.c.b16 %v565, %v564
      %v636 = vunpack.c.l.b16 %v442
      %v637 = vunpack.c.l.b16 %v443
      %v638 = vunpack.c.l.b16 %v444
      %v639 = vunpack.c.l.b16 %v445
      %v640 = vunpack.c.l.b16 %v446
      %v641 = vunpack.c.l.b16 %v447
      %v642 = vunpack.c.l.b16 %v448
      %v643 = vunpack.c.l.b16 %v449
      %v644 = vunpack.c.l.b16 %v450
      %v645 = vunpack.c.l.b16 %v451
      %v646 = vunpack.c.l.b16 %v452
      %v647 = vunpack.c.l.b16 %v453
      %v648 = vunpack.c.l.b16 %v454
      %v649 = vunpack.c.l.b16 %v455
      %v650 = vunpack.c.l.b16 %v456
      %v651 = vunpack.c.l.b16 %v457
      %v652 = vpack.c.b16 %v637, %v636
      %v653 = vpack.c.b16 %v639, %v638
      %v654 = vpack.c.b16 %v641, %v640
      %v655 = vpack.c.b16 %v643, %v642
      %v656 = vpack.c.b16 %v645, %v644
      %v657 = vpack.c.b16 %v647, %v646
      %v658 = vpack.c.b16 %v649, %v648
      %v659 = vpack.c.b16 %v651, %v650
      %668 = vmatprep.subr.bf16.mxu0 0
      %669 = vmatpush1.bf16.msra.mxu0 %v652
      %670 = vmatprep.subr.bf16.mxu0 0
      %671 = vmatpush1.bf16.msra.mxu0 %v653
      %672 = vmatprep.subr.bf16.mxu0 0
      %673 = vmatpush1.bf16.msra.mxu0 %v654
      %674 = vmatprep.subr.bf16.mxu0 0
      %675 = vmatpush1.bf16.msra.mxu0 %v655
      %676 = vmatprep.subr.bf16.mxu0 0
      %677 = vmatpush1.bf16.msra.mxu0 %v656
      %678 = vmatprep.subr.bf16.mxu0 0
      %679 = vmatpush1.bf16.msra.mxu0 %v657
      %680 = vmatprep.subr.bf16.mxu0 0
      %681 = vmatpush1.bf16.msra.mxu0 %v658
      %682 = vmatprep.subr.bf16.mxu0 0
      %683 = vmatpush1.bf16.msra.mxu0 %v659
      %684 = vmatprep.subr.bf16.mxu0 0
      %685 = vmatpush1.bf16.msra.mxu0 0
      %686 = vmatprep.subr.bf16.mxu0 0
      %687 = vmatpush1.bf16.msra.mxu0 0
      %688 = vmatprep.subr.bf16.mxu0 0
      %689 = vmatpush1.bf16.msra.mxu0 0
      %690 = vmatprep.subr.bf16.mxu0 0
      %691 = vmatpush1.bf16.msra.mxu0 0
      %692 = vmatprep.subr.bf16.mxu0 0
      %693 = vmatpush1.bf16.msra.mxu0 0
      %694 = vmatprep.subr.bf16.mxu0 0
      %695 = vmatpush1.bf16.msra.mxu0 0
      %696 = vmatprep.subr.bf16.mxu0 0
      %697 = vmatpush1.bf16.msra.mxu0 0
      %698 = vmatprep.subr.bf16.mxu0 0
      %699 = vmatpush1.bf16.msra.mxu0 0
      %700 = vmatprep.mubr.bf16.mxu0 0
      %701 = vmatmul.mubr.bf16.gmra.mrb[0].mxu0 %v566
      %v702 = vpop.f32.mrb[0].mxu0
      %v703 = vadd.f32 0.0, %v702
      %v704 = vpop.f32.mrb[0].mxu0
      %v705 = vpop.f32.mrb[0].mxu0
      %v706 = vadd.f32 0.0, %v705
      %v707 = vpop.f32.mrb[0].mxu0
      %708 = vmatprep.mubr.bf16.mxu0 0
      %709 = vmatmul.mubr.bf16.gmra.mrb[0].mxu0 %v567
      %v710 = vpop.f32.mrb[0].mxu0
      %v711 = vadd.f32 0.0, %v710
      %v712 = vpop.f32.mrb[0].mxu0
      %v713 = vpop.f32.mrb[0].mxu0
      %v714 = vadd.f32 0.0, %v713
      %v715 = vpop.f32.mrb[0].mxu0
      %716 = vmatprep.mubr.bf16.mxu0 0
      %717 = vmatmul.mubr.bf16.gmra.mrb[0].mxu0 %v568
      %v718 = vpop.f32.mrb[0].mxu0
      %v719 = vadd.f32 0.0, %v718
      %v720 = vpop.f32.mrb[0].mxu0
      %v721 = vpop.f32.mrb[0].mxu0
      %v722 = vadd.f32 0.0, %v721
      %v723 = vpop.f32.mrb[0].mxu0
      %724 = vmatprep.mubr.bf16.mxu0 0
      %725 = vmatmul.mubr.bf16.gmra.mrb[0].mxu0 %v569
      %v726 = vpop.f32.mrb[0].mxu0
      %v727 = vadd.f32 0.0, %v726
      %v728 = vpop.f32.mrb[0].mxu0
      %v729 = vpop.f32.mrb[0].mxu0
      %v730 = vadd.f32 0.0, %v729
      %v731 = vpop.f32.mrb[0].mxu0
      %732 = vmatprep.mubr.bf16.mxu0 0
      %733 = vmatmul.mubr.bf16.gmra.mrb[0].mxu0 %v570
      %v734 = vpop.f32.mrb[0].mxu0
      %v735 = vadd.f32 0.0, %v734
      %v736 = vpop.f32.mrb[0].mxu0
      %v737 = vpop.f32.mrb[0].mxu0
      %v738 = vadd.f32 0.0, %v737
      %v739 = vpop.f32.mrb[0].mxu0
      %740 = vmatprep.mubr.bf16.mxu0 0
      %741 = vmatmul.mubr.bf16.gmra.mrb[0].mxu0 %v571
      %v742 = vpop.f32.mrb[0].mxu0
      %v743 = vadd.f32 0.0, %v742
      %v744 = vpop.f32.mrb[0].mxu0
      %v745 = vpop.f32.mrb[0].mxu0
      %v746 = vadd.f32 0.0, %v745
      %v747 = vpop.f32.mrb[0].mxu0
      %748 = vmatprep.mubr.bf16.mxu0 0
      %749 = vmatmul.mubr.bf16.gmra.mrb[0].mxu0 %v572
      %v750 = vpop.f32.mrb[0].mxu0
      %v751 = vadd.f32 0.0, %v750
      %v752 = vpop.f32.mrb[0].mxu0
      %v753 = vpop.f32.mrb[0].mxu0
      %v754 = vadd.f32 0.0, %v753
      %v755 = vpop.f32.mrb[0].mxu0
      %756 = vmatprep.mubr.bf16.mxu0 0
      %757 = vmatmul.mubr.bf16.gmra.mrb[0].mxu0 %v573
      %v758 = vpop.f32.mrb[0].mxu0
      %v759 = vadd.f32 0.0, %v758
      %v760 = vpop.f32.mrb[0].mxu0
      %v761 = vpop.f32.mrb[0].mxu0
      %v762 = vadd.f32 0.0, %v761
      %v763 = vpop.f32.mrb[0].mxu0
      %764 = vmatprep.mubr.bf16.mxu0 0
      %765 = vmatmul.mubr.bf16.gmra.mrb[0].mxu0 %v574
      %v766 = vpop.f32.mrb[0].mxu0
      %v767 = vadd.f32 0.0, %v766
      %v768 = vpop.f32.mrb[0].mxu0
      %v769 = vpop.f32.mrb[0].mxu0
      %v770 = vadd.f32 0.0, %v769
      %v771 = vpop.f32.mrb[0].mxu0
      %772 = vmatprep.mubr.bf16.mxu0 0
      %773 = vmatmul.mubr.bf16.gmra.mrb[0].mxu0 %v575
      %v774 = vpop.f32.mrb[0].mxu0
      %v775 = vadd.f32 0.0, %v774
      %v776 = vpop.f32.mrb[0].mxu0
      %v777 = vpop.f32.mrb[0].mxu0
      %v778 = vadd.f32 0.0, %v777
      %v779 = vpop.f32.mrb[0].mxu0
      %780 = vmatprep.mubr.bf16.mxu0 0
      %781 = vmatmul.mubr.bf16.gmra.mrb[0].mxu0 %v576
      %v782 = vpop.f32.mrb[0].mxu0
      %v783 = vadd.f32 0.0, %v782
      %v784 = vpop.f32.mrb[0].mxu0
      %v785 = vpop.f32.mrb[0].mxu0
      %v786 = vadd.f32 0.0, %v785
      %v787 = vpop.f32.mrb[0].mxu0
      %788 = vmatprep.mubr.bf16.mxu0 0
      %789 = vmatmul.mubr.bf16.gmra.mrb[0].mxu0 %v577
      %v790 = vpop.f32.mrb[0].mxu0
      %v791 = vadd.f32 0.0, %v790
      %v792 = vpop.f32.mrb[0].mxu0
      %v793 = vpop.f32.mrb[0].mxu0
      %v794 = vadd.f32 0.0, %v793
      %v795 = vpop.f32.mrb[0].mxu0
      %796 = vmatprep.mubr.bf16.mxu0 0
      %797 = vmatmul.mubr.bf16.gmra.mrb[0].mxu0 %v578
      %v798 = vpop.f32.mrb[0].mxu0
      %v799 = vadd.f32 0.0, %v798
      %v800 = vpop.f32.mrb[0].mxu0
      %v801 = vpop.f32.mrb[0].mxu0
      %v802 = vadd.f32 0.0, %v801
      %v803 = vpop.f32.mrb[0].mxu0
      %804 = vmatprep.mubr.bf16.mxu0 0
      %805 = vmatmul.mubr.bf16.gmra.mrb[0].mxu0 %v579
      %v806 = vpop.f32.mrb[0].mxu0
      %v807 = vadd.f32 0.0, %v806
      %v808 = vpop.f32.mrb[0].mxu0
      %v809 = vpop.f32.mrb[0].mxu0
      %v810 = vadd.f32 0.0, %v809
      %v811 = vpop.f32.mrb[0].mxu0
      %812 = vmatprep.mubr.bf16.mxu0 0
      %813 = vmatmul.mubr.bf16.gmra.mrb[0].mxu0 %v580
      %v814 = vpop.f32.mrb[0].mxu0
      %v815 = vadd.f32 0.0, %v814
      %v816 = vpop.f32.mrb[0].mxu0
      %v817 = vpop.f32.mrb[0].mxu0
      %v818 = vadd.f32 0.0, %v817
      %v819 = vpop.f32.mrb[0].mxu0
      %820 = vmatprep.mubr.bf16.mxu0 0
      %821 = vmatmul.mubr.bf16.gmra.mrb[0].mxu0 %v581
      %v822 = vpop.f32.mrb[0].mxu0
      %v823 = vadd.f32 0.0, %v822
      %v824 = vpop.f32.mrb[0].mxu0
      %v825 = vpop.f32.mrb[0].mxu0
      %v826 = vadd.f32 0.0, %v825
      %v827 = vpop.f32.mrb[0].mxu0
      %828 = vmatprep.mubr.bf16.mxu0 0
      %829 = vmatmul.mubr.bf16.gmra.mrb[0].mxu0 %v582
      %v830 = vpop.f32.mrb[0].mxu0
      %v831 = vadd.f32 0.0, %v830
      %v832 = vpop.f32.mrb[0].mxu0
      %v833 = vpop.f32.mrb[0].mxu0
      %v834 = vadd.f32 0.0, %v833
      %v835 = vpop.f32.mrb[0].mxu0
      %836 = vmatprep.mubr.bf16.mxu0 0
      %837 = vmatmul.mubr.bf16.gmra.mrb[0].mxu0 %v583
      %v838 = vpop.f32.mrb[0].mxu0
      %v839 = vadd.f32 0.0, %v838
      %v840 = vpop.f32.mrb[0].mxu0
      %v841 = vpop.f32.mrb[0].mxu0
      %v842 = vadd.f32 0.0, %v841
      %v843 = vpop.f32.mrb[0].mxu0
      %844 = vmatprep.mubr.bf16.mxu0 0
      %845 = vmatmul.mubr.bf16.gmra.mrb[0].mxu0 %v584
      %v846 = vpop.f32.mrb[0].mxu0
      %v847 = vadd.f32 0.0, %v846
      %v848 = vpop.f32.mrb[0].mxu0
      %v849 = vpop.f32.mrb[0].mxu0
      %v850 = vadd.f32 0.0, %v849
      %v851 = vpop.f32.mrb[0].mxu0
      %852 = vmatprep.mubr.bf16.mxu0 0
      %853 = vmatmul.mubr.bf16.gmra.mrb[0].mxu0 %v585
      %v854 = vpop.f32.mrb[0].mxu0
      %v855 = vadd.f32 0.0, %v854
      %v856 = vpop.f32.mrb[0].mxu0
      %v857 = vpop.f32.mrb[0].mxu0
      %v858 = vadd.f32 0.0, %v857
      %v859 = vpop.f32.mrb[0].mxu0
      %860 = vmatprep.mubr.bf16.mxu0 0
      %861 = vmatmul.mubr.bf16.gmra.mrb[0].mxu0 %v586
      %v862 = vpop.f32.mrb[0].mxu0
      %v863 = vadd.f32 0.0, %v862
      %v864 = vpop.f32.mrb[0].mxu0
      %v865 = vpop.f32.mrb[0].mxu0
      %v866 = vadd.f32 0.0, %v865
      %v867 = vpop.f32.mrb[0].mxu0
      %868 = vmatprep.mubr.bf16.mxu0 0
      %869 = vmatmul.mubr.bf16.gmra.mrb[0].mxu0 %v587
      %v870 = vpop.f32.mrb[0].mxu0
      %v871 = vadd.f32 0.0, %v870
      %v872 = vpop.f32.mrb[0].mxu0
      %v873 = vpop.f32.mrb[0].mxu0
      %v874 = vadd.f32 0.0, %v873
      %v875 = vpop.f32.mrb[0].mxu0
      %876 = vmatprep.mubr.bf16.mxu0 0
      %877 = vmatmul.mubr.bf16.gmra.mrb[0].mxu0 %v588
      %v878 = vpop.f32.mrb[0].mxu0
      %v879 = vadd.f32 0.0, %v878
      %v880 = vpop.f32.mrb[0].mxu0
      %v881 = vpop.f32.mrb[0].mxu0
      %v882 = vadd.f32 0.0, %v881
      %v883 = vpop.f32.mrb[0].mxu0
      %884 = vmatprep.mubr.bf16.mxu0 0
      %885 = vmatmul.mubr.bf16.gmra.mrb[0].mxu0 %v589
      %v886 = vpop.f32.mrb[0].mxu0
      %v887 = vadd.f32 0.0, %v886
      %v888 = vpop.f32.mrb[0].mxu0
      %v889 = vpop.f32.mrb[0].mxu0
      %v890 = vadd.f32 0.0, %v889
      %v891 = vpop.f32.mrb[0].mxu0
      %892 = vmatprep.mubr.bf16.mxu0 0
      %893 = vmatmul.mubr.bf16.gmra.mrb[0].mxu0 %v590
      %v894 = vpop.f32.mrb[0].mxu0
      %v895 = vadd.f32 0.0, %v894
      %v896 = vpop.f32.mrb[0].mxu0
      %v897 = vpop.f32.mrb[0].mxu0
      %v898 = vadd.f32 0.0, %v897
      %v899 = vpop.f32.mrb[0].mxu0
      %900 = vmatprep.mubr.bf16.mxu0 0
      %901 = vmatmul.mubr.bf16.gmra.mrb[0].mxu0 %v591
      %v902 = vpop.f32.mrb[0].mxu0
      %v903 = vadd.f32 0.0, %v902
      %v904 = vpop.f32.mrb[0].mxu0
      %v905 = vpop.f32.mrb[0].mxu0
      %v906 = vadd.f32 0.0, %v905
      %v907 = vpop.f32.mrb[0].mxu0
      %908 = vmatprep.mubr.bf16.mxu0 0
      %909 = vmatmul.mubr.bf16.gmra.mrb[0].mxu0 %v592
      %v910 = vpop.f32.mrb[0].mxu0
      %v911 = vadd.f32 0.0, %v910
      %v912 = vpop.f32.mrb[0].mxu0
      %v913 = vpop.f32.mrb[0].mxu0
      %v914 = vadd.f32 0.0, %v913
      %v915 = vpop.f32.mrb[0].mxu0
      %916 = vdwg.mxu0
      %v917 = vld [vmem:[%s4] sm:$0x1]
      %v919 = vlaneseq
      %v920 = vshrl.u32 %v919, 7
      %v921 = vsub.s32 0, %v920
      %v922 = vrot.slane %v917, %v921
      %v924 = vmul.f32 %v703, %v922
      %v925 = vmul.f32 %v706, %v922
      %v926 = vmul.f32 %v711, %v922
      %v927 = vmul.f32 %v714, %v922
      %v928 = vmul.f32 %v719, %v922
      %v929 = vmul.f32 %v722, %v922
      %v930 = vmul.f32 %v727, %v922
      %v931 = vmul.f32 %v730, %v922
      %v932 = vmul.f32 %v735, %v922
      %v933 = vmul.f32 %v738, %v922
      %v934 = vmul.f32 %v743, %v922
      %v935 = vmul.f32 %v746, %v922
      %v936 = vmul.f32 %v751, %v922
      %v937 = vmul.f32 %v754, %v922
      %v938 = vmul.f32 %v759, %v922
      %v939 = vmul.f32 %v762, %v922
      %v940 = vmul.f32 %v767, %v922
      %v941 = vmul.f32 %v770, %v922
      %v942 = vmul.f32 %v775, %v922
      %v943 = vmul.f32 %v778, %v922
      %v944 = vmul.f32 %v783, %v922
      %v945 = vmul.f32 %v786, %v922
      %v946 = vmul.f32 %v791, %v922
      %v947 = vmul.f32 %v794, %v922
      %v948 = vmul.f32 %v799, %v922
      %v949 = vmul.f32 %v802, %v922
      %v950 = vmul.f32 %v807, %v922
      %v951 = vmul.f32 %v810, %v922
      %v952 = vmul.f32 %v815, %v922
      %v953 = vmul.f32 %v818, %v922
      %v954 = vmul.f32 %v823, %v922
      %v955 = vmul.f32 %v826, %v922
      %v956 = vmul.f32 %v831, %v922
      %v957 = vmul.f32 %v834, %v922
      %v958 = vmul.f32 %v839, %v922
      %v959 = vmul.f32 %v842, %v922
      %v960 = vmul.f32 %v847, %v922
      %v961 = vmul.f32 %v850, %v922
      %v962 = vmul.f32 %v855, %v922
      %v963 = vmul.f32 %v858, %v922
      %v964 = vmul.f32 %v863, %v922
      %v965 = vmul.f32 %v866, %v922
      %v966 = vmul.f32 %v871, %v922
      %v967 = vmul.f32 %v874, %v922
      %v968 = vmul.f32 %v879, %v922
      %v969 = vmul.f32 %v882, %v922
      %v970 = vmul.f32 %v887, %v922
      %v971 = vmul.f32 %v890, %v922
      %v972 = vmul.f32 %v895, %v922
      %v973 = vmul.f32 %v898, %v922
      %v974 = vmul.f32 %v903, %v922
      %v975 = vmul.f32 %v906, %v922
      %v976 = vmul.f32 %v911, %v922
      %v977 = vmul.f32 %v914, %v922
      %v978 = vld [vmem:[%s5] sm:$0x1]
      %v980 = vlaneseq
      %v981 = vshrl.u32 %v980, 7
      %v982 = vsub.s32 0, %v981
      %v983 = vrot.slane %v978, %v982
      %v985 = vadd.f32 %v924, %v983
      %v986 = vadd.f32 %v925, %v983
      %v987 = vadd.f32 %v926, %v983
      %v988 = vadd.f32 %v927, %v983
      %v989 = vadd.f32 %v928, %v983
      %v990 = vadd.f32 %v929, %v983
      %v991 = vadd.f32 %v930, %v983
      %v992 = vadd.f32 %v931, %v983
      %v993 = vadd.f32 %v932, %v983
      %v994 = vadd.f32 %v933, %v983
      %v995 = vadd.f32 %v934, %v983
      %v996 = vadd.f32 %v935, %v983
      %v997 = vadd.f32 %v936, %v983
      %v998 = vadd.f32 %v937, %v983
      %v999 = vadd.f32 %v938, %v983
      %v1000 = vadd.f32 %v939, %v983
      %v1001 = vadd.f32 %v940, %v983
      %v1002 = vadd.f32 %v941, %v983
      %v1003 = vadd.f32 %v942, %v983
      %v1004 = vadd.f32 %v943, %v983
      %v1005 = vadd.f32 %v944, %v983
      %v1006 = vadd.f32 %v945, %v983
      %v1007 = vadd.f32 %v946, %v983
      %v1008 = vadd.f32 %v947, %v983
      %v1009 = vadd.f32 %v948, %v983
      %v1010 = vadd.f32 %v949, %v983
      %v1011 = vadd.f32 %v950, %v983
      %v1012 = vadd.f32 %v951, %v983
      %v1013 = vadd.f32 %v952, %v983
      %v1014 = vadd.f32 %v953, %v983
      %v1015 = vadd.f32 %v954, %v983
      %v1016 = vadd.f32 %v955, %v983
      %v1017 = vadd.f32 %v956, %v983
      %v1018 = vadd.f32 %v957, %v983
      %v1019 = vadd.f32 %v958, %v983
      %v1020 = vadd.f32 %v959, %v983
      %v1021 = vadd.f32 %v960, %v983
      %v1022 = vadd.f32 %v961, %v983
      %v1023 = vadd.f32 %v962, %v983
      %v1024 = vadd.f32 %v963, %v983
      %v1025 = vadd.f32 %v964, %v983
      %v1026 = vadd.f32 %v965, %v983
      %v1027 = vadd.f32 %v966, %v983
      %v1028 = vadd.f32 %v967, %v983
      %v1029 = vadd.f32 %v968, %v983
      %v1030 = vadd.f32 %v969, %v983
      %v1031 = vadd.f32 %v970, %v983
      %v1032 = vadd.f32 %v971, %v983
      %v1033 = vadd.f32 %v972, %v983
      %v1034 = vadd.f32 %v973, %v983
      %v1035 = vadd.f32 %v974, %v983
      %v1036 = vadd.f32 %v975, %v983
      %v1037 = vadd.f32 %v976, %v983
      %v1038 = vadd.f32 %v977, %v983
      %v1039 = vmax.f32 %v985, 0.0
      %v1040 = vmax.f32 %v986, 0.0
      %v1041 = vmax.f32 %v987, 0.0
      %v1042 = vmax.f32 %v988, 0.0
      %v1043 = vmax.f32 %v989, 0.0
      %v1044 = vmax.f32 %v990, 0.0
      %v1045 = vmax.f32 %v991, 0.0
      %v1046 = vmax.f32 %v992, 0.0
      %v1047 = vmax.f32 %v993, 0.0
      %v1048 = vmax.f32 %v994, 0.0
      %v1049 = vmax.f32 %v995, 0.0
      %v1050 = vmax.f32 %v996, 0.0
      %v1051 = vmax.f32 %v997, 0.0
      %v1052 = vmax.f32 %v998, 0.0
      %v1053 = vmax.f32 %v999, 0.0
      %v1054 = vmax.f32 %v1000, 0.0
      %v1055 = vmax.f32 %v1001, 0.0
      %v1056 = vmax.f32 %v1002, 0.0
      %v1057 = vmax.f32 %v1003, 0.0
      %v1058 = vmax.f32 %v1004, 0.0
      %v1059 = vmax.f32 %v1005, 0.0
      %v1060 = vmax.f32 %v1006, 0.0
      %v1061 = vmax.f32 %v1007, 0.0
      %v1062 = vmax.f32 %v1008, 0.0
      %v1063 = vmax.f32 %v1009, 0.0
      %v1064 = vmax.f32 %v1010, 0.0
      %v1065 = vmax.f32 %v1011, 0.0
      %v1066 = vmax.f32 %v1012, 0.0
      %v1067 = vmax.f32 %v1013, 0.0
      %v1068 = vmax.f32 %v1014, 0.0
      %v1069 = vmax.f32 %v1015, 0.0
      %v1070 = vmax.f32 %v1016, 0.0
      %v1071 = vmax.f32 %v1017, 0.0
      %v1072 = vmax.f32 %v1018, 0.0
      %v1073 = vmax.f32 %v1019, 0.0
      %v1074 = vmax.f32 %v1020, 0.0
      %v1075 = vmax.f32 %v1021, 0.0
      %v1076 = vmax.f32 %v1022, 0.0
      %v1077 = vmax.f32 %v1023, 0.0
      %v1078 = vmax.f32 %v1024, 0.0
      %v1079 = vmax.f32 %v1025, 0.0
      %v1080 = vmax.f32 %v1026, 0.0
      %v1081 = vmax.f32 %v1027, 0.0
      %v1082 = vmax.f32 %v1028, 0.0
      %v1083 = vmax.f32 %v1029, 0.0
      %v1084 = vmax.f32 %v1030, 0.0
      %v1085 = vmax.f32 %v1031, 0.0
      %v1086 = vmax.f32 %v1032, 0.0
      %v1087 = vmax.f32 %v1033, 0.0
      %v1088 = vmax.f32 %v1034, 0.0
      %v1089 = vmax.f32 %v1035, 0.0
      %v1090 = vmax.f32 %v1036, 0.0
      %v1091 = vmax.f32 %v1037, 0.0
      %v1092 = vmax.f32 %v1038, 0.0
      %v1093 = vld [vmem:[%s2] sm:$0xf]
      %v1094 = vld [vmem:[%s2 + $0x4] sm:$0xf]
      %v1095 = vld [vmem:[%s2 + $0x8] sm:$0xf]
      %v1096 = vld [vmem:[%s2 + $0xc] sm:$0xf]
      %v1097 = vld [vmem:[%s2 + $0x10] sm:$0xf]
      %v1098 = vld [vmem:[%s2 + $0x14] sm:$0xf]
      %v1099 = vld [vmem:[%s2 + $0x18] sm:$0xf]
      %v1100 = vld [vmem:[%s2 + $0x1c] sm:$0xf]
      %v1101 = vld [vmem:[%s2 + $0x20] sm:$0xf]
      %v1102 = vld [vmem:[%s2 + $0x24] sm:$0xf]
      %v1103 = vld [vmem:[%s2 + $0x28] sm:$0xf]
      %v1104 = vld [vmem:[%s2 + $0x2c] sm:$0xf]
      %v1105 = vld [vmem:[%s2 + $0x30] sm:$0xf]
      %v1106 = vld [vmem:[%s2 + $0x34] sm:$0xf]
      %v1107 = vld [vmem:[%s2 + $0x38] sm:$0xf]
      %v1108 = vld [vmem:[%s2 + $0x3c] sm:$0xf]
      %v1125 = vunpack.c.l.b16 %v1093
      %v1126 = vunpack.c.l.b16 %v1094
      %v1127 = vunpack.c.l.b16 %v1095
      %v1128 = vunpack.c.l.b16 %v1096
      %v1129 = vunpack.c.l.b16 %v1097
      %v1130 = vunpack.c.l.b16 %v1098
      %v1131 = vunpack.c.l.b16 %v1099
      %v1132 = vunpack.c.l.b16 %v1100
      %v1133 = vunpack.c.l.b16 %v1101
      %v1134 = vunpack.c.l.b16 %v1102
      %v1135 = vunpack.c.l.b16 %v1103
      %v1136 = vunpack.c.l.b16 %v1104
      %v1137 = vunpack.c.l.b16 %v1105
      %v1138 = vunpack.c.l.b16 %v1106
      %v1139 = vunpack.c.l.b16 %v1107
      %v1140 = vunpack.c.l.b16 %v1108
      %v1141 = vpack.c.b16 %v1126, %v1125
      %v1142 = vpack.c.b16 %v1128, %v1127
      %v1143 = vpack.c.b16 %v1130, %v1129
      %v1144 = vpack.c.b16 %v1132, %v1131
      %v1145 = vpack.c.b16 %v1134, %v1133
      %v1146 = vpack.c.b16 %v1136, %v1135
      %v1147 = vpack.c.b16 %v1138, %v1137
      %v1148 = vpack.c.b16 %v1140, %v1139
      %1157 = vmatprep.subr.bf16.mxu0 0
      %1158 = vmatpush1.bf16.msra.mxu0 %v1141
      %1159 = vmatprep.subr.bf16.mxu0 0
      %1160 = vmatpush1.bf16.msra.mxu0 %v1142
      %1161 = vmatprep.subr.bf16.mxu0 0
      %1162 = vmatpush1.bf16.msra.mxu0 %v1143
      %1163 = vmatprep.subr.bf16.mxu0 0
      %1164 = vmatpush1.bf16.msra.mxu0 %v1144
      %1165 = vmatprep.subr.bf16.mxu0 0
      %1166 = vmatpush1.bf16.msra.mxu0 %v1145
      %1167 = vmatprep.subr.bf16.mxu0 0
      %1168 = vmatpush1.bf16.msra.mxu0 %v1146
      %1169 = vmatprep.subr.bf16.mxu0 0
      %1170 = vmatpush1.bf16.msra.mxu0 %v1147
      %1171 = vmatprep.subr.bf16.mxu0 0
      %1172 = vmatpush1.bf16.msra.mxu0 %v1148
      %1173 = vmatprep.subr.bf16.mxu0 0
      %1174 = vmatpush1.bf16.msra.mxu0 0
      %1175 = vmatprep.subr.bf16.mxu0 0
      %1176 = vmatpush1.bf16.msra.mxu0 0
      %1177 = vmatprep.subr.bf16.mxu0 0
      %1178 = vmatpush1.bf16.msra.mxu0 0
      %1179 = vmatprep.subr.bf16.mxu0 0
      %1180 = vmatpush1.bf16.msra.mxu0 0
      %1181 = vmatprep.subr.bf16.mxu0 0
      %1182 = vmatpush1.bf16.msra.mxu0 0
      %1183 = vmatprep.subr.bf16.mxu0 0
      %1184 = vmatpush1.bf16.msra.mxu0 0
      %1185 = vmatprep.subr.bf16.mxu0 0
      %1186 = vmatpush1.bf16.msra.mxu0 0
      %1187 = vmatprep.subr.bf16.mxu0 0
      %1188 = vmatpush1.bf16.msra.mxu0 0
      %1189 = vmatprep.mubr.bf16.mxu0 0
      %1190 = vmatmul.mubr.bf16.gmra.mrb[0].mxu0 %v566
      %v1191 = vpop.f32.mrb[0].mxu0
      %v1192 = vpop.f32.mrb[0].mxu0
      %v1193 = vpop.f32.mrb[0].mxu0
      %v1194 = vpop.f32.mrb[0].mxu0
      %1195 = vmatprep.mubr.bf16.mxu0 0
      %1196 = vmatmul.mubr.bf16.gmra.mrb[0].mxu0 %v567
      %v1197 = vpop.f32.mrb[0].mxu0
      %v1198 = vpop.f32.mrb[0].mxu0
      %v1199 = vpop.f32.mrb[0].mxu0
      %v1200 = vadd.f32 0.0, %v1199
      %v1201 = vpop.f32.mrb[0].mxu0
      %1202 = vmatprep.mubr.bf16.mxu0 0
      %1203 = vmatmul.mubr.bf16.gmra.mrb[0].mxu0 %v568
      %v1204 = vpop.f32.mrb[0].mxu0
      %v1205 = vadd.f32 0.0, %v1204
      %v1206 = vpop.f32.mrb[0].mxu0
      %v1207 = vpop.f32.mrb[0].mxu0
      %v1208 = vadd.f32 0.0, %v1207
      %v1209 = vpop.f32.mrb[0].mxu0
      %1210 = vmatprep.mubr.bf16.mxu0 0
      %1211 = vmatmul.mubr.bf16.gmra.mrb[0].mxu0 %v569
      %v1212 = vpop.f32.mrb[0].mxu0
      %v1213 = vadd.f32 0.0, %v1212
      %v1214 = vpop.f32.mrb[0].mxu0
      %v1215 = vpop.f32.mrb[0].mxu0
      %v1216 = vadd.f32 0.0, %v1215
      %v1217 = vpop.f32.mrb[0].mxu0
      %1218 = vmatprep.mubr.bf16.mxu0 0
      %1219 = vmatmul.mubr.bf16.gmra.mrb[0].mxu0 %v570
      %v1220 = vpop.f32.mrb[0].mxu0
      %v1221 = vadd.f32 0.0, %v1220
      %v1222 = vpop.f32.mrb[0].mxu0
      %v1223 = vpop.f32.mrb[0].mxu0
      %v1224 = vadd.f32 0.0, %v1223
      %v1225 = vpop.f32.mrb[0].mxu0
      %1226 = vmatprep.mubr.bf16.mxu0 0
      %1227 = vmatmul.mubr.bf16.gmra.mrb[0].mxu0 %v571
      %v1228 = vpop.f32.mrb[0].mxu0
      %v1229 = vadd.f32 0.0, %v1228
      %v1230 = vpop.f32.mrb[0].mxu0
      %v1231 = vpop.f32.mrb[0].mxu0
      %v1232 = vadd.f32 0.0, %v1231
      %v1233 = vpop.f32.mrb[0].mxu0
      %1234 = vmatprep.mubr.bf16.mxu0 0
      %1235 = vmatmul.mubr.bf16.gmra.mrb[0].mxu0 %v572
      %v1236 = vpop.f32.mrb[0].mxu0
      %v1237 = vadd.f32 0.0, %v1236
      %v1238 = vpop.f32.mrb[0].mxu0
      %v1239 = vpop.f32.mrb[0].mxu0
      %v1240 = vadd.f32 0.0, %v1239
      %v1241 = vpop.f32.mrb[0].mxu0
      %1242 = vmatprep.mubr.bf16.mxu0 0
      %1243 = vmatmul.mubr.bf16.gmra.mrb[0].mxu0 %v573
      %v1244 = vpop.f32.mrb[0].mxu0
      %v1245 = vadd.f32 0.0, %v1244
      %v1246 = vpop.f32.mrb[0].mxu0
      %v1247 = vpop.f32.mrb[0].mxu0
      %v1248 = vadd.f32 0.0, %v1247
      %v1249 = vpop.f32.mrb[0].mxu0
      %1250 = vmatprep.mubr.bf16.mxu0 0
      %1251 = vmatmul.mubr.bf16.gmra.mrb[0].mxu0 %v574
      %v1252 = vpop.f32.mrb[0].mxu0
      %v1253 = vadd.f32 0.0, %v1252
      %v1254 = vpop.f32.mrb[0].mxu0
      %v1255 = vpop.f32.mrb[0].mxu0
      %v1256 = vadd.f32 0.0, %v1255
      %v1257 = vpop.f32.mrb[0].mxu0
      %1258 = vmatprep.mubr.bf16.mxu0 0
      %1259 = vmatmul.mubr.bf16.gmra.mrb[0].mxu0 %v575
      %v1260 = vpop.f32.mrb[0].mxu0
      %v1261 = vadd.f32 0.0, %v1260
      %v1262 = vpop.f32.mrb[0].mxu0
      %v1263 = vpop.f32.mrb[0].mxu0
      %v1264 = vadd.f32 0.0, %v1263
      %v1265 = vpop.f32.mrb[0].mxu0
      %1266 = vmatprep.mubr.bf16.mxu0 0
      %1267 = vmatmul.mubr.bf16.gmra.mrb[0].mxu0 %v576
      %v1268 = vpop.f32.mrb[0].mxu0
      %v1269 = vadd.f32 0.0, %v1268
      %v1270 = vpop.f32.mrb[0].mxu0
      %v1271 = vpop.f32.mrb[0].mxu0
      %v1272 = vadd.f32 0.0, %v1271
      %v1273 = vpop.f32.mrb[0].mxu0
      %1274 = vmatprep.mubr.bf16.mxu0 0
      %1275 = vmatmul.mubr.bf16.gmra.mrb[0].mxu0 %v577
      %v1276 = vpop.f32.mrb[0].mxu0
      %v1277 = vadd.f32 0.0, %v1276
      %v1278 = vpop.f32.mrb[0].mxu0
      %v1279 = vpop.f32.mrb[0].mxu0
      %v1280 = vadd.f32 0.0, %v1279
      %v1281 = vpop.f32.mrb[0].mxu0
      %1282 = vmatprep.mubr.bf16.mxu0 0
      %1283 = vmatmul.mubr.bf16.gmra.mrb[0].mxu0 %v578
      %v1284 = vpop.f32.mrb[0].mxu0
      %v1285 = vadd.f32 0.0, %v1284
      %v1286 = vpop.f32.mrb[0].mxu0
      %v1287 = vpop.f32.mrb[0].mxu0
      %v1288 = vadd.f32 0.0, %v1287
      %v1289 = vpop.f32.mrb[0].mxu0
      %1290 = vmatprep.mubr.bf16.mxu0 0
      %1291 = vmatmul.mubr.bf16.gmra.mrb[0].mxu0 %v579
      %v1292 = vpop.f32.mrb[0].mxu0
      %v1293 = vadd.f32 0.0, %v1292
      %v1294 = vpop.f32.mrb[0].mxu0
      %v1295 = vpop.f32.mrb[0].mxu0
      %v1296 = vadd.f32 0.0, %v1295
      %v1297 = vpop.f32.mrb[0].mxu0
      %1298 = vmatprep.mubr.bf16.mxu0 0
      %1299 = vmatmul.mubr.bf16.gmra.mrb[0].mxu0 %v580
      %v1300 = vpop.f32.mrb[0].mxu0
      %v1301 = vadd.f32 0.0, %v1300
      %v1302 = vpop.f32.mrb[0].mxu0
      %v1303 = vpop.f32.mrb[0].mxu0
      %v1304 = vadd.f32 0.0, %v1303
      %v1305 = vpop.f32.mrb[0].mxu0
      %1306 = vmatprep.mubr.bf16.mxu0 0
      %1307 = vmatmul.mubr.bf16.gmra.mrb[0].mxu0 %v581
      %v1308 = vpop.f32.mrb[0].mxu0
      %v1309 = vadd.f32 0.0, %v1308
      %v1310 = vpop.f32.mrb[0].mxu0
      %v1311 = vpop.f32.mrb[0].mxu0
      %v1312 = vadd.f32 0.0, %v1311
      %v1313 = vpop.f32.mrb[0].mxu0
      %1314 = vmatprep.mubr.bf16.mxu0 0
      %1315 = vmatmul.mubr.bf16.gmra.mrb[0].mxu0 %v582
      %v1316 = vpop.f32.mrb[0].mxu0
      %v1317 = vadd.f32 0.0, %v1316
      %v1318 = vpop.f32.mrb[0].mxu0
      %v1319 = vpop.f32.mrb[0].mxu0
      %v1320 = vadd.f32 0.0, %v1319
      %v1321 = vpop.f32.mrb[0].mxu0
      %1322 = vmatprep.mubr.bf16.mxu0 0
      %1323 = vmatmul.mubr.bf16.gmra.mrb[0].mxu0 %v583
      %v1324 = vpop.f32.mrb[0].mxu0
      %v1325 = vadd.f32 0.0, %v1324
      %v1326 = vpop.f32.mrb[0].mxu0
      %v1327 = vpop.f32.mrb[0].mxu0
      %v1328 = vadd.f32 0.0, %v1327
      %v1329 = vpop.f32.mrb[0].mxu0
      %1330 = vmatprep.mubr.bf16.mxu0 0
      %1331 = vmatmul.mubr.bf16.gmra.mrb[0].mxu0 %v584
      %v1332 = vpop.f32.mrb[0].mxu0
      %v1333 = vadd.f32 0.0, %v1332
      %v1334 = vpop.f32.mrb[0].mxu0
      %v1335 = vpop.f32.mrb[0].mxu0
      %v1336 = vadd.f32 0.0, %v1335
      %v1337 = vpop.f32.mrb[0].mxu0
      %1338 = vmatprep.mubr.bf16.mxu0 0
      %1339 = vmatmul.mubr.bf16.gmra.mrb[0].mxu0 %v585
      %v1340 = vpop.f32.mrb[0].mxu0
      %v1341 = vadd.f32 0.0, %v1340
      %v1342 = vpop.f32.mrb[0].mxu0
      %v1343 = vpop.f32.mrb[0].mxu0
      %v1344 = vadd.f32 0.0, %v1343
      %v1345 = vpop.f32.mrb[0].mxu0
      %1346 = vmatprep.mubr.bf16.mxu0 0
      %1347 = vmatmul.mubr.bf16.gmra.mrb[0].mxu0 %v586
      %v1348 = vpop.f32.mrb[0].mxu0
      %v1349 = vadd.f32 0.0, %v1348
      %v1350 = vpop.f32.mrb[0].mxu0
      %v1351 = vpop.f32.mrb[0].mxu0
      %v1352 = vadd.f32 0.0, %v1351
      %v1353 = vpop.f32.mrb[0].mxu0
      %1354 = vmatprep.mubr.bf16.mxu0 0
      %1355 = vmatmul.mubr.bf16.gmra.mrb[0].mxu0 %v587
      %v1356 = vpop.f32.mrb[0].mxu0
      %v1357 = vadd.f32 0.0, %v1356
      %v1358 = vpop.f32.mrb[0].mxu0
      %v1359 = vpop.f32.mrb[0].mxu0
      %v1360 = vadd.f32 0.0, %v1359
      %v1361 = vpop.f32.mrb[0].mxu0
      %1362 = vmatprep.mubr.bf16.mxu0 0
      %1363 = vmatmul.mubr.bf16.gmra.mrb[0].mxu0 %v588
      %v1364 = vpop.f32.mrb[0].mxu0
      %v1365 = vadd.f32 0.0, %v1364
      %v1366 = vpop.f32.mrb[0].mxu0
      %v1367 = vpop.f32.mrb[0].mxu0
      %v1368 = vadd.f32 0.0, %v1367
      %v1369 = vpop.f32.mrb[0].mxu0
      %1370 = vmatprep.mubr.bf16.mxu0 0
      %1371 = vmatmul.mubr.bf16.gmra.mrb[0].mxu0 %v589
      %v1372 = vpop.f32.mrb[0].mxu0
      %v1373 = vadd.f32 0.0, %v1372
      %v1374 = vpop.f32.mrb[0].mxu0
      %v1375 = vpop.f32.mrb[0].mxu0
      %v1376 = vadd.f32 0.0, %v1375
      %v1377 = vpop.f32.mrb[0].mxu0
      %1378 = vmatprep.mubr.bf16.mxu0 0
      %1379 = vmatmul.mubr.bf16.gmra.mrb[0].mxu0 %v590
      %v1380 = vpop.f32.mrb[0].mxu0
      %v1381 = vadd.f32 0.0, %v1380
      %v1382 = vpop.f32.mrb[0].mxu0
      %v1383 = vpop.f32.mrb[0].mxu0
      %v1384 = vadd.f32 0.0, %v1383
      %v1385 = vpop.f32.mrb[0].mxu0
      %1386 = vmatprep.mubr.bf16.mxu0 0
      %1387 = vmatmul.mubr.bf16.gmra.mrb[0].mxu0 %v591
      %v1388 = vpop.f32.mrb[0].mxu0
      %v1389 = vadd.f32 0.0, %v1388
      %v1390 = vpop.f32.mrb[0].mxu0
      %v1391 = vpop.f32.mrb[0].mxu0
      %v1392 = vpop.f32.mrb[0].mxu0
      %1393 = vmatprep.mubr.bf16.mxu0 0
      %1394 = vmatmul.mubr.bf16.gmra.mrb[0].mxu0 %v592
      %v1395 = vpop.f32.mrb[0].mxu0
      %v1396 = vpop.f32.mrb[0].mxu0
      %v1397 = vpop.f32.mrb[0].mxu0
      %v1398 = vpop.f32.mrb[0].mxu0
      %1399 = vdwg.mxu0
      %vm1448 = vcmask 1046528
      %v1449 = vrot.slane %v1200, 1
      %v1450 = vrot.slane %v1205, 1
      %v1451 = vsel %vm1448, %v1449, %v1450
      %v1452 = vrot.slane %v1208, 1
      %v1453 = vsel %vm1448, %v1450, %v1452
      %v1454 = vrot.slane %v1213, 1
      %v1455 = vrot.slane %v1216, 1
      %v1456 = vsel %vm1448, %v1454, %v1455
      %v1457 = vrot.slane %v1221, 1
      %v1458 = vsel %vm1448, %v1455, %v1457
      %v1459 = vrot.slane %v1224, 1
      %v1460 = vrot.slane %v1229, 1
      %v1461 = vsel %vm1448, %v1459, %v1460
      %v1462 = vrot.slane %v1232, 1
      %v1463 = vsel %vm1448, %v1460, %v1462
      %v1464 = vrot.slane %v1237, 1
      %v1465 = vrot.slane %v1240, 1
      %v1466 = vsel %vm1448, %v1464, %v1465
      %v1467 = vrot.slane %v1245, 1
      %v1468 = vsel %vm1448, %v1465, %v1467
      %v1469 = vrot.slane %v1248, 1
      %v1470 = vrot.slane %v1253, 1
      %v1471 = vsel %vm1448, %v1469, %v1470
      %v1472 = vrot.slane %v1256, 1
      %v1473 = vsel %vm1448, %v1470, %v1472
      %v1474 = vrot.slane %v1261, 1
      %v1475 = vrot.slane %v1264, 1
      %v1476 = vsel %vm1448, %v1474, %v1475
      %v1477 = vrot.slane %v1269, 1
      %v1478 = vsel %vm1448, %v1475, %v1477
      %v1479 = vrot.slane %v1272, 1
      %v1480 = vrot.slane %v1277, 1
      %v1481 = vsel %vm1448, %v1479, %v1480
      %v1482 = vrot.slane %v1280, 1
      %v1483 = vsel %vm1448, %v1480, %v1482
      %v1484 = vrot.slane %v1285, 1
      %v1485 = vrot.slane %v1288, 1
      %v1486 = vsel %vm1448, %v1484, %v1485
      %v1487 = vrot.slane %v1293, 1
      %v1488 = vsel %vm1448, %v1485, %v1487
      %v1489 = vrot.slane %v1296, 1
      %v1490 = vrot.slane %v1301, 1
      %v1491 = vsel %vm1448, %v1489, %v1490
      %v1492 = vrot.slane %v1304, 1
      %v1493 = vsel %vm1448, %v1490, %v1492
      %v1494 = vrot.slane %v1309, 1
      %v1495 = vrot.slane %v1312, 1
      %v1496 = vsel %vm1448, %v1494, %v1495
      %v1497 = vrot.slane %v1317, 1
      %v1498 = vsel %vm1448, %v1495, %v1497
      %v1499 = vrot.slane %v1320, 1
      %v1500 = vrot.slane %v1325, 1
      %v1501 = vsel %vm1448, %v1499, %v1500
      %v1502 = vrot.slane %v1328, 1
      %v1503 = vsel %vm1448, %v1500, %v1502
      %v1504 = vrot.slane %v1333, 1
      %v1505 = vrot.slane %v1336, 1
      %v1506 = vsel %vm1448, %v1504, %v1505
      %v1507 = vrot.slane %v1341, 1
      %v1508 = vsel %vm1448, %v1505, %v1507
      %v1509 = vrot.slane %v1344, 1
      %v1510 = vrot.slane %v1349, 1
      %v1511 = vsel %vm1448, %v1509, %v1510
      %v1512 = vrot.slane %v1352, 1
      %v1513 = vsel %vm1448, %v1510, %v1512
      %v1514 = vrot.slane %v1357, 1
      %v1515 = vrot.slane %v1360, 1
      %v1516 = vsel %vm1448, %v1514, %v1515
      %v1517 = vrot.slane %v1365, 1
      %v1518 = vsel %vm1448, %v1515, %v1517
      %v1519 = vrot.slane %v1368, 1
      %v1520 = vrot.slane %v1373, 1
      %v1521 = vsel %vm1448, %v1519, %v1520
      %v1522 = vrot.slane %v1376, 1
      %v1523 = vsel %vm1448, %v1520, %v1522
      %v1524 = vrot.slane %v1381, 1
      %v1525 = vrot.slane %v1384, 1
      %v1526 = vsel %vm1448, %v1524, %v1525
      %v1527 = vrot.slane %v1389, 1
      %v1528 = vsel %vm1448, %v1525, %v1527
      %v1561 = vld [vmem:[%s3] sm:$0x1]
      %v1563 = vlaneseq
      %v1564 = vshrl.u32 %v1563, 7
      %v1565 = vsub.s32 0, %v1564
      %v1566 = vrot.slane %v1561, %v1565
      %v1568 = vadd.f32 %v1451, %v1566
      %v1569 = vadd.f32 %v1453, %v1566
      %v1570 = vadd.f32 %v1456, %v1566
      %v1571 = vadd.f32 %v1458, %v1566
      %v1572 = vadd.f32 %v1461, %v1566
      %v1573 = vadd.f32 %v1463, %v1566
      %v1574 = vadd.f32 %v1466, %v1566
      %v1575 = vadd.f32 %v1468, %v1566
      %v1576 = vadd.f32 %v1471, %v1566
      %v1577 = vadd.f32 %v1473, %v1566
      %v1578 = vadd.f32 %v1476, %v1566
      %v1579 = vadd.f32 %v1478, %v1566
      %v1580 = vadd.f32 %v1481, %v1566
      %v1581 = vadd.f32 %v1483, %v1566
      %v1582 = vadd.f32 %v1486, %v1566
      %v1583 = vadd.f32 %v1488, %v1566
      %v1584 = vadd.f32 %v1491, %v1566
      %v1585 = vadd.f32 %v1493, %v1566
      %v1586 = vadd.f32 %v1496, %v1566
      %v1587 = vadd.f32 %v1498, %v1566
      %v1588 = vadd.f32 %v1501, %v1566
      %v1589 = vadd.f32 %v1503, %v1566
      %v1590 = vadd.f32 %v1506, %v1566
      %v1591 = vadd.f32 %v1508, %v1566
      %v1592 = vadd.f32 %v1511, %v1566
      %v1593 = vadd.f32 %v1513, %v1566
      %v1594 = vadd.f32 %v1516, %v1566
      %v1595 = vadd.f32 %v1518, %v1566
      %v1596 = vadd.f32 %v1521, %v1566
      %v1597 = vadd.f32 %v1523, %v1566
      %v1598 = vadd.f32 %v1526, %v1566
      %v1599 = vadd.f32 %v1528, %v1566
      %v1600 = vlaneseq
      %v1601 = vshrl.u32 %v1600, 7
      %v1602 = vadd.s32 %v1601, 8
      %v1603 = vadd.s32 %v1601, 16
      %vm1604 = vcmp.ge.s32.totalorder %v1601, 1
      %vm1605 = vcmp.ge.s32.totalorder %v1602, 1
      %vm1606 = vcmp.ge.s32.totalorder %v1603, 1
      %vm1607 = vmand 0, %vm1604
      %vm1608 = vmand 0, %vm1605
      %vm1609 = vmand 0, %vm1606
      %vm1610 = vmand 1, %vm1604
      %vm1611 = vmand 1, %vm1605
      %vm1612 = vmand 1, %vm1606
      %vm1613 = vcmp.le.s32.totalorder %v1601, 16
      %vm1614 = vcmp.le.s32.totalorder %v1602, 16
      %vm1615 = vcmp.le.s32.totalorder %v1603, 16
      %vm1616 = vmand %vm1607, %vm1613
      %vm1617 = vmand %vm1608, %vm1614
      %vm1618 = vmand %vm1609, %vm1615
      %vm1619 = vmand %vm1610, %vm1613
      %vm1620 = vmand %vm1611, %vm1614
      %vm1621 = vmand %vm1612, %vm1615
      %v1622 = vsel %vm1616, %v1039, 0.0
      %v1623 = vsel %vm1617, %v1040, 0.0
      %v1624 = vsel %vm1618, %v1041, 0.0
      %v1625 = vsel %vm1619, %v1042, 0.0
      %v1626 = vsel %vm1620, %v1043, 0.0
      %v1627 = vsel %vm1621, %v1044, 0.0
      %v1628 = vsel %vm1619, %v1045, 0.0
      %v1629 = vsel %vm1620, %v1046, 0.0
      %v1630 = vsel %vm1621, %v1047, 0.0
      %v1631 = vsel %vm1619, %v1048, 0.0
      %v1632 = vsel %vm1620, %v1049, 0.0
      %v1633 = vsel %vm1621, %v1050, 0.0
      %v1634 = vsel %vm1619, %v1051, 0.0
      %v1635 = vsel %vm1620, %v1052, 0.0
      %v1636 = vsel %vm1621, %v1053, 0.0
      %v1637 = vsel %vm1619, %v1054, 0.0
      %v1638 = vsel %vm1620, %v1055, 0.0
      %v1639 = vsel %vm1621, %v1056, 0.0
      %v1640 = vsel %vm1619, %v1057, 0.0
      %v1641 = vsel %vm1620, %v1058, 0.0
      %v1642 = vsel %vm1621, %v1059, 0.0
      %v1643 = vsel %vm1619, %v1060, 0.0
      %v1644 = vsel %vm1620, %v1061, 0.0
      %v1645 = vsel %vm1621, %v1062, 0.0
      %v1646 = vsel %vm1619, %v1063, 0.0
      %v1647 = vsel %vm1620, %v1064, 0.0
      %v1648 = vsel %vm1621, %v1065, 0.0
      %v1649 = vsel %vm1619, %v1066, 0.0
      %v1650 = vsel %vm1620, %v1067, 0.0
      %v1651 = vsel %vm1621, %v1068, 0.0
      %v1652 = vsel %vm1619, %v1069, 0.0
      %v1653 = vsel %vm1620, %v1070, 0.0
      %v1654 = vsel %vm1621, %v1071, 0.0
      %v1655 = vsel %vm1619, %v1072, 0.0
      %v1656 = vsel %vm1620, %v1073, 0.0
      %v1657 = vsel %vm1621, %v1074, 0.0
      %v1658 = vsel %vm1619, %v1075, 0.0
      %v1659 = vsel %vm1620, %v1076, 0.0
      %v1660 = vsel %vm1621, %v1077, 0.0
      %v1661 = vsel %vm1619, %v1078, 0.0
      %v1662 = vsel %vm1620, %v1079, 0.0
      %v1663 = vsel %vm1621, %v1080, 0.0
      %v1664 = vsel %vm1619, %v1081, 0.0
      %v1665 = vsel %vm1620, %v1082, 0.0
      %v1666 = vsel %vm1621, %v1083, 0.0
      %v1667 = vsel %vm1619, %v1084, 0.0
      %v1668 = vsel %vm1620, %v1085, 0.0
      %v1669 = vsel %vm1621, %v1086, 0.0
      %v1670 = vsel %vm1619, %v1087, 0.0
      %v1671 = vsel %vm1620, %v1088, 0.0
      %v1672 = vsel %vm1621, %v1089, 0.0
      %v1673 = vsel %vm1616, %v1090, 0.0
      %v1674 = vsel %vm1617, %v1091, 0.0
      %v1675 = vsel %vm1618, %v1092, 0.0
      %v1676 = vpack.c.bf16 %v1623, %v1622
      %v1677 = vpack.c.bf16 %v1626, %v1625
      %v1678 = vpack.c.bf16 %v1629, %v1628
      %v1679 = vpack.c.bf16 %v1632, %v1631
      %v1680 = vpack.c.bf16 %v1635, %v1634
      %v1681 = vpack.c.bf16 %v1638, %v1637
      %v1682 = vpack.c.bf16 %v1641, %v1640
      %v1683 = vpack.c.bf16 %v1644, %v1643
      %v1684 = vpack.c.bf16 %v1647, %v1646
      %v1685 = vpack.c.bf16 %v1650, %v1649
      %v1686 = vpack.c.bf16 %v1653, %v1652
      %v1687 = vpack.c.bf16 %v1656, %v1655
      %v1688 = vpack.c.bf16 %v1659, %v1658
      %v1689 = vpack.c.bf16 %v1662, %v1661
      %v1690 = vpack.c.bf16 %v1665, %v1664
      %v1691 = vpack.c.bf16 %v1668, %v1667
      %v1692 = vld [vmem:[%s8] sm:$0xf]
      %v1693 = vld [vmem:[%s8 + $0x4] sm:$0xf]
      %v1694 = vld [vmem:[%s8 + $0x8] sm:$0xf]
      %v1695 = vld [vmem:[%s8 + $0xc] sm:$0xf]
      %v1696 = vld [vmem:[%s8 + $0x10] sm:$0xf]
      %v1697 = vld [vmem:[%s8 + $0x14] sm:$0xf]
      %v1698 = vld [vmem:[%s8 + $0x18] sm:$0xf]
      %v1699 = vld [vmem:[%s8 + $0x1c] sm:$0xf]
      %v1700 = vld [vmem:[%s8 + $0x20] sm:$0xf]
      %v1701 = vld [vmem:[%s8 + $0x24] sm:$0xf]
      %v1702 = vld [vmem:[%s8 + $0x28] sm:$0xf]
      %v1703 = vld [vmem:[%s8 + $0x2c] sm:$0xf]
      %v1704 = vld [vmem:[%s8 + $0x30] sm:$0xf]
      %v1705 = vld [vmem:[%s8 + $0x34] sm:$0xf]
      %v1706 = vld [vmem:[%s8 + $0x38] sm:$0xf]
      %v1707 = vld [vmem:[%s8 + $0x3c] sm:$0xf]
      %v1756 = vrot.slane %v1622, 1
      %v1757 = vrot.slane %v1623, 1
      %v1758 = vsel %vm1448, %v1756, %v1757
      %v1759 = vrot.slane %v1624, 1
      %v1760 = vsel %vm1448, %v1757, %v1759
      %v1761 = vrot.slane %v1625, 1
      %v1762 = vrot.slane %v1626, 1
      %v1763 = vsel %vm1448, %v1761, %v1762
      %v1764 = vrot.slane %v1627, 1
      %v1765 = vsel %vm1448, %v1762, %v1764
      %v1766 = vrot.slane %v1628, 1
      %v1767 = vrot.slane %v1629, 1
      %v1768 = vsel %vm1448, %v1766, %v1767
      %v1769 = vrot.slane %v1630, 1
      %v1770 = vsel %vm1448, %v1767, %v1769
      %v1771 = vrot.slane %v1631, 1
      %v1772 = vrot.slane %v1632, 1
      %v1773 = vsel %vm1448, %v1771, %v1772
      %v1774 = vrot.slane %v1633, 1
      %v1775 = vsel %vm1448, %v1772, %v1774
      %v1776 = vrot.slane %v1634, 1
      %v1777 = vrot.slane %v1635, 1
      %v1778 = vsel %vm1448, %v1776, %v1777
      %v1779 = vrot.slane %v1636, 1
      %v1780 = vsel %vm1448, %v1777, %v1779
      %v1781 = vrot.slane %v1637, 1
      %v1782 = vrot.slane %v1638, 1
      %v1783 = vsel %vm1448, %v1781, %v1782
      %v1784 = vrot.slane %v1639, 1
      %v1785 = vsel %vm1448, %v1782, %v1784
      %v1786 = vrot.slane %v1640, 1
      %v1787 = vrot.slane %v1641, 1
      %v1788 = vsel %vm1448, %v1786, %v1787
      %v1789 = vrot.slane %v1642, 1
      %v1790 = vsel %vm1448, %v1787, %v1789
      %v1791 = vrot.slane %v1643, 1
      %v1792 = vrot.slane %v1644, 1
      %v1793 = vsel %vm1448, %v1791, %v1792
      %v1794 = vrot.slane %v1645, 1
      %v1795 = vsel %vm1448, %v1792, %v1794
      %v1796 = vrot.slane %v1646, 1
      %v1797 = vrot.slane %v1647, 1
      %v1798 = vsel %vm1448, %v1796, %v1797
      %v1799 = vrot.slane %v1648, 1
      %v1800 = vsel %vm1448, %v1797, %v1799
      %v1801 = vrot.slane %v1649, 1
      %v1802 = vrot.slane %v1650, 1
      %v1803 = vsel %vm1448, %v1801, %v1802
      %v1804 = vrot.slane %v1651, 1
      %v1805 = vsel %vm1448, %v1802, %v1804
      %v1806 = vrot.slane %v1652, 1
      %v1807 = vrot.slane %v1653, 1
      %v1808 = vsel %vm1448, %v1806, %v1807
      %v1809 = vrot.slane %v1654, 1
      %v1810 = vsel %vm1448, %v1807, %v1809
      %v1811 = vrot.slane %v1655, 1
      %v1812 = vrot.slane %v1656, 1
      %v1813 = vsel %vm1448, %v1811, %v1812
      %v1814 = vrot.slane %v1657, 1
      %v1815 = vsel %vm1448, %v1812, %v1814
      %v1816 = vrot.slane %v1658, 1
      %v1817 = vrot.slane %v1659, 1
      %v1818 = vsel %vm1448, %v1816, %v1817
      %v1819 = vrot.slane %v1660, 1
      %v1820 = vsel %vm1448, %v1817, %v1819
      %v1821 = vrot.slane %v1661, 1
      %v1822 = vrot.slane %v1662, 1
      %v1823 = vsel %vm1448, %v1821, %v1822
      %v1824 = vrot.slane %v1663, 1
      %v1825 = vsel %vm1448, %v1822, %v1824
      %v1826 = vrot.slane %v1664, 1
      %v1827 = vrot.slane %v1665, 1
      %v1828 = vsel %vm1448, %v1826, %v1827
      %v1829 = vrot.slane %v1666, 1
      %v1830 = vsel %vm1448, %v1827, %v1829
      %v1831 = vrot.slane %v1667, 1
      %v1832 = vrot.slane %v1668, 1
      %v1833 = vsel %vm1448, %v1831, %v1832
      %v1834 = vrot.slane %v1669, 1
      %v1835 = vsel %vm1448, %v1832, %v1834
      %v1868 = vpack.c.bf16 %v1760, %v1758
      %v1869 = vpack.c.bf16 %v1765, %v1763
      %v1870 = vpack.c.bf16 %v1770, %v1768
      %v1871 = vpack.c.bf16 %v1775, %v1773
      %v1872 = vpack.c.bf16 %v1780, %v1778
      %v1873 = vpack.c.bf16 %v1785, %v1783
      %v1874 = vpack.c.bf16 %v1790, %v1788
      %v1875 = vpack.c.bf16 %v1795, %v1793
      %v1876 = vpack.c.bf16 %v1800, %v1798
      %v1877 = vpack.c.bf16 %v1805, %v1803
      %v1878 = vpack.c.bf16 %v1810, %v1808
      %v1879 = vpack.c.bf16 %v1815, %v1813
      %v1880 = vpack.c.bf16 %v1820, %v1818
      %v1881 = vpack.c.bf16 %v1825, %v1823
      %v1882 = vpack.c.bf16 %v1830, %v1828
      %v1883 = vpack.c.bf16 %v1835, %v1833
      %s1884 = scalar_lea.vmem %s8, 64
      %v1885 = vld [vmem:[%s1884] sm:$0xf]
      %v1886 = vld [vmem:[%s1884 + $0x4] sm:$0xf]
      %v1887 = vld [vmem:[%s1884 + $0x8] sm:$0xf]
      %v1888 = vld [vmem:[%s1884 + $0xc] sm:$0xf]
      %v1889 = vld [vmem:[%s1884 + $0x10] sm:$0xf]
      %v1890 = vld [vmem:[%s1884 + $0x14] sm:$0xf]
      %v1891 = vld [vmem:[%s1884 + $0x18] sm:$0xf]
      %v1892 = vld [vmem:[%s1884 + $0x1c] sm:$0xf]
      %v1893 = vld [vmem:[%s1884 + $0x20] sm:$0xf]
      %v1894 = vld [vmem:[%s1884 + $0x24] sm:$0xf]
      %v1895 = vld [vmem:[%s1884 + $0x28] sm:$0xf]
      %v1896 = vld [vmem:[%s1884 + $0x2c] sm:$0xf]
      %v1897 = vld [vmem:[%s1884 + $0x30] sm:$0xf]
      %v1898 = vld [vmem:[%s1884 + $0x34] sm:$0xf]
      %v1899 = vld [vmem:[%s1884 + $0x38] sm:$0xf]
      %v1900 = vld [vmem:[%s1884 + $0x3c] sm:$0xf]
      %v1917 = vunpack.c.l.b16 %v1885
      %v1918 = vunpack.c.l.b16 %v1886
      %v1919 = vunpack.c.l.b16 %v1887
      %v1920 = vunpack.c.l.b16 %v1888
      %v1921 = vunpack.c.l.b16 %v1889
      %v1922 = vunpack.c.l.b16 %v1890
      %v1923 = vunpack.c.l.b16 %v1891
      %v1924 = vunpack.c.l.b16 %v1892
      %v1925 = vunpack.c.l.b16 %v1893
      %v1926 = vunpack.c.l.b16 %v1894
      %v1927 = vunpack.c.l.b16 %v1895
      %v1928 = vunpack.c.l.b16 %v1896
      %v1929 = vunpack.c.l.b16 %v1897
      %v1930 = vunpack.c.l.b16 %v1898
      %v1931 = vunpack.c.l.b16 %v1899
      %v1932 = vunpack.c.l.b16 %v1900
      %v1933 = vpack.c.b16 %v1918, %v1917
      %v1934 = vpack.c.b16 %v1920, %v1919
      %v1935 = vpack.c.b16 %v1922, %v1921
      %v1936 = vpack.c.b16 %v1924, %v1923
      %v1937 = vpack.c.b16 %v1926, %v1925
      %v1938 = vpack.c.b16 %v1928, %v1927
      %v1939 = vpack.c.b16 %v1930, %v1929
      %v1940 = vpack.c.b16 %v1932, %v1931
      %1949 = vmatprep.subr.bf16.mxu0 0
      %1950 = vmatpush1.bf16.msra.mxu0 %v1933
      %1951 = vmatprep.subr.bf16.mxu0 0
      %1952 = vmatpush1.bf16.msra.mxu0 %v1934
      %1953 = vmatprep.subr.bf16.mxu0 0
      %1954 = vmatpush1.bf16.msra.mxu0 %v1935
      %1955 = vmatprep.subr.bf16.mxu0 0
      %1956 = vmatpush1.bf16.msra.mxu0 %v1936
      %1957 = vmatprep.subr.bf16.mxu0 0
      %1958 = vmatpush1.bf16.msra.mxu0 %v1937
      %1959 = vmatprep.subr.bf16.mxu0 0
      %1960 = vmatpush1.bf16.msra.mxu0 %v1938
      %1961 = vmatprep.subr.bf16.mxu0 0
      %1962 = vmatpush1.bf16.msra.mxu0 %v1939
      %1963 = vmatprep.subr.bf16.mxu0 0
      %1964 = vmatpush1.bf16.msra.mxu0 %v1940
      %1965 = vmatprep.subr.bf16.mxu0 0
      %1966 = vmatpush1.bf16.msra.mxu0 0
      %1967 = vmatprep.subr.bf16.mxu0 0
      %1968 = vmatpush1.bf16.msra.mxu0 0
      %1969 = vmatprep.subr.bf16.mxu0 0
      %1970 = vmatpush1.bf16.msra.mxu0 0
      %1971 = vmatprep.subr.bf16.mxu0 0
      %1972 = vmatpush1.bf16.msra.mxu0 0
      %1973 = vmatprep.subr.bf16.mxu0 0
      %1974 = vmatpush1.bf16.msra.mxu0 0
      %1975 = vmatprep.subr.bf16.mxu0 0
      %1976 = vmatpush1.bf16.msra.mxu0 0
      %1977 = vmatprep.subr.bf16.mxu0 0
      %1978 = vmatpush1.bf16.msra.mxu0 0
      %1979 = vmatprep.subr.bf16.mxu0 0
      %1980 = vmatpush1.bf16.msra.mxu0 0
      %1981 = vmatprep.mubr.bf16.mxu0 0
      %1982 = vmatmul.mubr.bf16.gmra.mrb[0].mxu0 %v1868
      %v1983 = vpop.f32.mrb[0].mxu0
      %v1984 = vadd.f32 0.0, %v1983
      %v1985 = vpop.f32.mrb[0].mxu0
      %v1986 = vpop.f32.mrb[0].mxu0
      %v1987 = vadd.f32 0.0, %v1986
      %v1988 = vpop.f32.mrb[0].mxu0
      %1989 = vmatprep.mubr.bf16.mxu0 0
      %1990 = vmatmul.mubr.bf16.gmra.mrb[0].mxu0 %v1869
      %v1991 = vpop.f32.mrb[0].mxu0
      %v1992 = vadd.f32 0.0, %v1991
      %v1993 = vpop.f32.mrb[0].mxu0
      %v1994 = vpop.f32.mrb[0].mxu0
      %v1995 = vadd.f32 0.0, %v1994
      %v1996 = vpop.f32.mrb[0].mxu0
      %1997 = vmatprep.mubr.bf16.mxu0 0
      %1998 = vmatmul.mubr.bf16.gmra.mrb[0].mxu0 %v1870
      %v1999 = vpop.f32.mrb[0].mxu0
      %v2000 = vadd.f32 0.0, %v1999
      %v2001 = vpop.f32.mrb[0].mxu0
      %v2002 = vpop.f32.mrb[0].mxu0
      %v2003 = vadd.f32 0.0, %v2002
      %v2004 = vpop.f32.mrb[0].mxu0
      %2005 = vmatprep.mubr.bf16.mxu0 0
      %2006 = vmatmul.mubr.bf16.gmra.mrb[0].mxu0 %v1871
      %v2007 = vpop.f32.mrb[0].mxu0
      %v2008 = vadd.f32 0.0, %v2007
      %v2009 = vpop.f32.mrb[0].mxu0
      %v2010 = vpop.f32.mrb[0].mxu0
      %v2011 = vadd.f32 0.0, %v2010
      %v2012 = vpop.f32.mrb[0].mxu0
      %2013 = vmatprep.mubr.bf16.mxu0 0
      %2014 = vmatmul.mubr.bf16.gmra.mrb[0].mxu0 %v1872
      %v2015 = vpop.f32.mrb[0].mxu0
      %v2016 = vadd.f32 0.0, %v2015
      %v2017 = vpop.f32.mrb[0].mxu0
      %v2018 = vpop.f32.mrb[0].mxu0
      %v2019 = vadd.f32 0.0, %v2018
      %v2020 = vpop.f32.mrb[0].mxu0
      %2021 = vmatprep.mubr.bf16.mxu0 0
      %2022 = vmatmul.mubr.bf16.gmra.mrb[0].mxu0 %v1873
      %v2023 = vpop.f32.mrb[0].mxu0
      %v2024 = vadd.f32 0.0, %v2023
      %v2025 = vpop.f32.mrb[0].mxu0
      %v2026 = vpop.f32.mrb[0].mxu0
      %v2027 = vadd.f32 0.0, %v2026
      %v2028 = vpop.f32.mrb[0].mxu0
      %2029 = vmatprep.mubr.bf16.mxu0 0
      %2030 = vmatmul.mubr.bf16.gmra.mrb[0].mxu0 %v1874
      %v2031 = vpop.f32.mrb[0].mxu0
      %v2032 = vadd.f32 0.0, %v2031
      %v2033 = vpop.f32.mrb[0].mxu0
      %v2034 = vpop.f32.mrb[0].mxu0
      %v2035 = vadd.f32 0.0, %v2034
      %v2036 = vpop.f32.mrb[0].mxu0
      %2037 = vmatprep.mubr.bf16.mxu0 0
      %2038 = vmatmul.mubr.bf16.gmra.mrb[0].mxu0 %v1875
      %v2039 = vpop.f32.mrb[0].mxu0
      %v2040 = vadd.f32 0.0, %v2039
      %v2041 = vpop.f32.mrb[0].mxu0
      %v2042 = vpop.f32.mrb[0].mxu0
      %v2043 = vadd.f32 0.0, %v2042
      %v2044 = vpop.f32.mrb[0].mxu0
      %2045 = vmatprep.mubr.bf16.mxu0 0
      %2046 = vmatmul.mubr.bf16.gmra.mrb[0].mxu0 %v1876
      %v2047 = vpop.f32.mrb[0].mxu0
      %v2048 = vadd.f32 0.0, %v2047
      %v2049 = vpop.f32.mrb[0].mxu0
      %v2050 = vpop.f32.mrb[0].mxu0
      %v2051 = vadd.f32 0.0, %v2050
      %v2052 = vpop.f32.mrb[0].mxu0
      %2053 = vmatprep.mubr.bf16.mxu0 0
      %2054 = vmatmul.mubr.bf16.gmra.mrb[0].mxu0 %v1877
      %v2055 = vpop.f32.mrb[0].mxu0
      %v2056 = vadd.f32 0.0, %v2055
      %v2057 = vpop.f32.mrb[0].mxu0
      %v2058 = vpop.f32.mrb[0].mxu0
      %v2059 = vadd.f32 0.0, %v2058
      %v2060 = vpop.f32.mrb[0].mxu0
      %2061 = vmatprep.mubr.bf16.mxu0 0
      %2062 = vmatmul.mubr.bf16.gmra.mrb[0].mxu0 %v1878
      %v2063 = vpop.f32.mrb[0].mxu0
      %v2064 = vadd.f32 0.0, %v2063
      %v2065 = vpop.f32.mrb[0].mxu0
      %v2066 = vpop.f32.mrb[0].mxu0
      %v2067 = vadd.f32 0.0, %v2066
      %v2068 = vpop.f32.mrb[0].mxu0
      %2069 = vmatprep.mubr.bf16.mxu0 0
      %2070 = vmatmul.mubr.bf16.gmra.mrb[0].mxu0 %v1879
      %v2071 = vpop.f32.mrb[0].mxu0
      %v2072 = vadd.f32 0.0, %v2071
      %v2073 = vpop.f32.mrb[0].mxu0
      %v2074 = vpop.f32.mrb[0].mxu0
      %v2075 = vadd.f32 0.0, %v2074
      %v2076 = vpop.f32.mrb[0].mxu0
      %2077 = vmatprep.mubr.bf16.mxu0 0
      %2078 = vmatmul.mubr.bf16.gmra.mrb[0].mxu0 %v1880
      %v2079 = vpop.f32.mrb[0].mxu0
      %v2080 = vadd.f32 0.0, %v2079
      %v2081 = vpop.f32.mrb[0].mxu0
      %v2082 = vpop.f32.mrb[0].mxu0
      %v2083 = vadd.f32 0.0, %v2082
      %v2084 = vpop.f32.mrb[0].mxu0
      %2085 = vmatprep.mubr.bf16.mxu0 0
      %2086 = vmatmul.mubr.bf16.gmra.mrb[0].mxu0 %v1881
      %v2087 = vpop.f32.mrb[0].mxu0
      %v2088 = vadd.f32 0.0, %v2087
      %v2089 = vpop.f32.mrb[0].mxu0
      %v2090 = vpop.f32.mrb[0].mxu0
      %v2091 = vadd.f32 0.0, %v2090
      %v2092 = vpop.f32.mrb[0].mxu0
      %2093 = vmatprep.mubr.bf16.mxu0 0
      %2094 = vmatmul.mubr.bf16.gmra.mrb[0].mxu0 %v1882
      %v2095 = vpop.f32.mrb[0].mxu0
      %v2096 = vadd.f32 0.0, %v2095
      %v2097 = vpop.f32.mrb[0].mxu0
      %v2098 = vpop.f32.mrb[0].mxu0
      %v2099 = vadd.f32 0.0, %v2098
      %v2100 = vpop.f32.mrb[0].mxu0
      %2101 = vmatprep.mubr.bf16.mxu0 0
      %2102 = vmatmul.mubr.bf16.gmra.mrb[0].mxu0 %v1883
      %v2103 = vpop.f32.mrb[0].mxu0
      %v2104 = vadd.f32 0.0, %v2103
      %v2105 = vpop.f32.mrb[0].mxu0
      %v2106 = vpop.f32.mrb[0].mxu0
      %v2107 = vadd.f32 0.0, %v2106
      %v2108 = vpop.f32.mrb[0].mxu0
      %2109 = vdwg.mxu0
      %v2126 = vunpack.c.l.b16 %v1692
      %v2127 = vunpack.c.l.b16 %v1693
      %v2128 = vunpack.c.l.b16 %v1694
      %v2129 = vunpack.c.l.b16 %v1695
      %v2130 = vunpack.c.l.b16 %v1696
      %v2131 = vunpack.c.l.b16 %v1697
      %v2132 = vunpack.c.l.b16 %v1698
      %v2133 = vunpack.c.l.b16 %v1699
      %v2134 = vunpack.c.l.b16 %v1700
      %v2135 = vunpack.c.l.b16 %v1701
      %v2136 = vunpack.c.l.b16 %v1702
      %v2137 = vunpack.c.l.b16 %v1703
      %v2138 = vunpack.c.l.b16 %v1704
      %v2139 = vunpack.c.l.b16 %v1705
      %v2140 = vunpack.c.l.b16 %v1706
      %v2141 = vunpack.c.l.b16 %v1707
      %v2142 = vpack.c.b16 %v2127, %v2126
      %v2143 = vpack.c.b16 %v2129, %v2128
      %v2144 = vpack.c.b16 %v2131, %v2130
      %v2145 = vpack.c.b16 %v2133, %v2132
      %v2146 = vpack.c.b16 %v2135, %v2134
      %v2147 = vpack.c.b16 %v2137, %v2136
      %v2148 = vpack.c.b16 %v2139, %v2138
      %v2149 = vpack.c.b16 %v2141, %v2140
      %2158 = vmatprep.subr.bf16.mxu0 0
      %2159 = vmatpush1.bf16.msra.mxu0 %v2142
      %2160 = vmatprep.subr.bf16.mxu0 0
      %2161 = vmatpush1.bf16.msra.mxu0 %v2143
      %2162 = vmatprep.subr.bf16.mxu0 0
      %2163 = vmatpush1.bf16.msra.mxu0 %v2144
      %2164 = vmatprep.subr.bf16.mxu0 0
      %2165 = vmatpush1.bf16.msra.mxu0 %v2145
      %2166 = vmatprep.subr.bf16.mxu0 0
      %2167 = vmatpush1.bf16.msra.mxu0 %v2146
      %2168 = vmatprep.subr.bf16.mxu0 0
      %2169 = vmatpush1.bf16.msra.mxu0 %v2147
      %2170 = vmatprep.subr.bf16.mxu0 0
      %2171 = vmatpush1.bf16.msra.mxu0 %v2148
      %2172 = vmatprep.subr.bf16.mxu0 0
      %2173 = vmatpush1.bf16.msra.mxu0 %v2149
      %2174 = vmatprep.subr.bf16.mxu0 0
      %2175 = vmatpush1.bf16.msra.mxu0 0
      %2176 = vmatprep.subr.bf16.mxu0 0
      %2177 = vmatpush1.bf16.msra.mxu0 0
      %2178 = vmatprep.subr.bf16.mxu0 0
      %2179 = vmatpush1.bf16.msra.mxu0 0
      %2180 = vmatprep.subr.bf16.mxu0 0
      %2181 = vmatpush1.bf16.msra.mxu0 0
      %2182 = vmatprep.subr.bf16.mxu0 0
      %2183 = vmatpush1.bf16.msra.mxu0 0
      %2184 = vmatprep.subr.bf16.mxu0 0
      %2185 = vmatpush1.bf16.msra.mxu0 0
      %2186 = vmatprep.subr.bf16.mxu0 0
      %2187 = vmatpush1.bf16.msra.mxu0 0
      %2188 = vmatprep.subr.bf16.mxu0 0
      %2189 = vmatpush1.bf16.msra.mxu0 0
      %2190 = vmatprep.mubr.bf16.mxu0 0
      %2191 = vmatmul.mubr.bf16.gmra.mrb[0].mxu0 %v1676
      %v2192 = vpop.f32.mrb[0].mxu0
      %v2193 = vadd.f32 %v1984, %v2192
      %v2194 = vpop.f32.mrb[0].mxu0
      %v2195 = vpop.f32.mrb[0].mxu0
      %v2196 = vadd.f32 %v1987, %v2195
      %v2197 = vpop.f32.mrb[0].mxu0
      %2198 = vmatprep.mubr.bf16.mxu0 0
      %2199 = vmatmul.mubr.bf16.gmra.mrb[0].mxu0 %v1677
      %v2200 = vpop.f32.mrb[0].mxu0
      %v2201 = vadd.f32 %v1992, %v2200
      %v2202 = vpop.f32.mrb[0].mxu0
      %v2203 = vpop.f32.mrb[0].mxu0
      %v2204 = vadd.f32 %v1995, %v2203
      %v2205 = vpop.f32.mrb[0].mxu0
      %2206 = vmatprep.mubr.bf16.mxu0 0
      %2207 = vmatmul.mubr.bf16.gmra.mrb[0].mxu0 %v1678
      %v2208 = vpop.f32.mrb[0].mxu0
      %v2209 = vadd.f32 %v2000, %v2208
      %v2210 = vpop.f32.mrb[0].mxu0
      %v2211 = vpop.f32.mrb[0].mxu0
      %v2212 = vadd.f32 %v2003, %v2211
      %v2213 = vpop.f32.mrb[0].mxu0
      %2214 = vmatprep.mubr.bf16.mxu0 0
      %2215 = vmatmul.mubr.bf16.gmra.mrb[0].mxu0 %v1679
      %v2216 = vpop.f32.mrb[0].mxu0
      %v2217 = vadd.f32 %v2008, %v2216
      %v2218 = vpop.f32.mrb[0].mxu0
      %v2219 = vpop.f32.mrb[0].mxu0
      %v2220 = vadd.f32 %v2011, %v2219
      %v2221 = vpop.f32.mrb[0].mxu0
      %2222 = vmatprep.mubr.bf16.mxu0 0
      %2223 = vmatmul.mubr.bf16.gmra.mrb[0].mxu0 %v1680
      %v2224 = vpop.f32.mrb[0].mxu0
      %v2225 = vadd.f32 %v2016, %v2224
      %v2226 = vpop.f32.mrb[0].mxu0
      %v2227 = vpop.f32.mrb[0].mxu0
      %v2228 = vadd.f32 %v2019, %v2227
      %v2229 = vpop.f32.mrb[0].mxu0
      %2230 = vmatprep.mubr.bf16.mxu0 0
      %2231 = vmatmul.mubr.bf16.gmra.mrb[0].mxu0 %v1681
      %v2232 = vpop.f32.mrb[0].mxu0
      %v2233 = vadd.f32 %v2024, %v2232
      %v2234 = vpop.f32.mrb[0].mxu0
      %v2235 = vpop.f32.mrb[0].mxu0
      %v2236 = vadd.f32 %v2027, %v2235
      %v2237 = vpop.f32.mrb[0].mxu0
      %2238 = vmatprep.mubr.bf16.mxu0 0
      %2239 = vmatmul.mubr.bf16.gmra.mrb[0].mxu0 %v1682
      %v2240 = vpop.f32.mrb[0].mxu0
      %v2241 = vadd.f32 %v2032, %v2240
      %v2242 = vpop.f32.mrb[0].mxu0
      %v2243 = vpop.f32.mrb[0].mxu0
      %v2244 = vadd.f32 %v2035, %v2243
      %v2245 = vpop.f32.mrb[0].mxu0
      %2246 = vmatprep.mubr.bf16.mxu0 0
      %2247 = vmatmul.mubr.bf16.gmra.mrb[0].mxu0 %v1683
      %v2248 = vpop.f32.mrb[0].mxu0
      %v2249 = vadd.f32 %v2040, %v2248
      %v2250 = vpop.f32.mrb[0].mxu0
      %v2251 = vpop.f32.mrb[0].mxu0
      %v2252 = vadd.f32 %v2043, %v2251
      %v2253 = vpop.f32.mrb[0].mxu0
      %2254 = vmatprep.mubr.bf16.mxu0 0
      %2255 = vmatmul.mubr.bf16.gmra.mrb[0].mxu0 %v1684
      %v2256 = vpop.f32.mrb[0].mxu0
      %v2257 = vadd.f32 %v2048, %v2256
      %v2258 = vpop.f32.mrb[0].mxu0
      %v2259 = vpop.f32.mrb[0].mxu0
      %v2260 = vadd.f32 %v2051, %v2259
      %v2261 = vpop.f32.mrb[0].mxu0
      %2262 = vmatprep.mubr.bf16.mxu0 0
      %2263 = vmatmul.mubr.bf16.gmra.mrb[0].mxu0 %v1685
      %v2264 = vpop.f32.mrb[0].mxu0
      %v2265 = vadd.f32 %v2056, %v2264
      %v2266 = vpop.f32.mrb[0].mxu0
      %v2267 = vpop.f32.mrb[0].mxu0
      %v2268 = vadd.f32 %v2059, %v2267
      %v2269 = vpop.f32.mrb[0].mxu0
      %2270 = vmatprep.mubr.bf16.mxu0 0
      %2271 = vmatmul.mubr.bf16.gmra.mrb[0].mxu0 %v1686
      %v2272 = vpop.f32.mrb[0].mxu0
      %v2273 = vadd.f32 %v2064, %v2272
      %v2274 = vpop.f32.mrb[0].mxu0
      %v2275 = vpop.f32.mrb[0].mxu0
      %v2276 = vadd.f32 %v2067, %v2275
      %v2277 = vpop.f32.mrb[0].mxu0
      %2278 = vmatprep.mubr.bf16.mxu0 0
      %2279 = vmatmul.mubr.bf16.gmra.mrb[0].mxu0 %v1687
      %v2280 = vpop.f32.mrb[0].mxu0
      %v2281 = vadd.f32 %v2072, %v2280
      %v2282 = vpop.f32.mrb[0].mxu0
      %v2283 = vpop.f32.mrb[0].mxu0
      %v2284 = vadd.f32 %v2075, %v2283
      %v2285 = vpop.f32.mrb[0].mxu0
      %2286 = vmatprep.mubr.bf16.mxu0 0
      %2287 = vmatmul.mubr.bf16.gmra.mrb[0].mxu0 %v1688
      %v2288 = vpop.f32.mrb[0].mxu0
      %v2289 = vadd.f32 %v2080, %v2288
      %v2290 = vpop.f32.mrb[0].mxu0
      %v2291 = vpop.f32.mrb[0].mxu0
      %v2292 = vadd.f32 %v2083, %v2291
      %v2293 = vpop.f32.mrb[0].mxu0
      %2294 = vmatprep.mubr.bf16.mxu0 0
      %2295 = vmatmul.mubr.bf16.gmra.mrb[0].mxu0 %v1689
      %v2296 = vpop.f32.mrb[0].mxu0
      %v2297 = vadd.f32 %v2088, %v2296
      %v2298 = vpop.f32.mrb[0].mxu0
      %v2299 = vpop.f32.mrb[0].mxu0
      %v2300 = vadd.f32 %v2091, %v2299
      %v2301 = vpop.f32.mrb[0].mxu0
      %2302 = vmatprep.mubr.bf16.mxu0 0
      %2303 = vmatmul.mubr.bf16.gmra.mrb[0].mxu0 %v1690
      %v2304 = vpop.f32.mrb[0].mxu0
      %v2305 = vadd.f32 %v2096, %v2304
      %v2306 = vpop.f32.mrb[0].mxu0
      %v2307 = vpop.f32.mrb[0].mxu0
      %v2308 = vadd.f32 %v2099, %v2307
      %v2309 = vpop.f32.mrb[0].mxu0
      %2310 = vmatprep.mubr.bf16.mxu0 0
      %2311 = vmatmul.mubr.bf16.gmra.mrb[0].mxu0 %v1691
      %v2312 = vpop.f32.mrb[0].mxu0
      %v2313 = vadd.f32 %v2104, %v2312
      %v2314 = vpop.f32.mrb[0].mxu0
      %v2315 = vpop.f32.mrb[0].mxu0
      %v2316 = vadd.f32 %v2107, %v2315
      %v2317 = vpop.f32.mrb[0].mxu0
      %2318 = vdwg.mxu0
      %vm2319 = vcmask 1045504
      %v2320 = vrot.slane %v1622, 2
      %v2321 = vrot.slane %v1623, 2
      %v2322 = vsel %vm2319, %v2320, %v2321
      %v2323 = vrot.slane %v1624, 2
      %v2324 = vsel %vm2319, %v2321, %v2323
      %v2325 = vrot.slane %v1625, 2
      %v2326 = vrot.slane %v1626, 2
      %v2327 = vsel %vm2319, %v2325, %v2326
      %v2328 = vrot.slane %v1627, 2
      %v2329 = vsel %vm2319, %v2326, %v2328
      %v2330 = vrot.slane %v1628, 2
      %v2331 = vrot.slane %v1629, 2
      %v2332 = vsel %vm2319, %v2330, %v2331
      %v2333 = vrot.slane %v1630, 2
      %v2334 = vsel %vm2319, %v2331, %v2333
      %v2335 = vrot.slane %v1631, 2
      %v2336 = vrot.slane %v1632, 2
      %v2337 = vsel %vm2319, %v2335, %v2336
      %v2338 = vrot.slane %v1633, 2
      %v2339 = vsel %vm2319, %v2336, %v2338
      %v2340 = vrot.slane %v1634, 2
      %v2341 = vrot.slane %v1635, 2
      %v2342 = vsel %vm2319, %v2340, %v2341
      %v2343 = vrot.slane %v1636, 2
      %v2344 = vsel %vm2319, %v2341, %v2343
      %v2345 = vrot.slane %v1637, 2
      %v2346 = vrot.slane %v1638, 2
      %v2347 = vsel %vm2319, %v2345, %v2346
      %v2348 = vrot.slane %v1639, 2
      %v2349 = vsel %vm2319, %v2346, %v2348
      %v2350 = vrot.slane %v1640, 2
      %v2351 = vrot.slane %v1641, 2
      %v2352 = vsel %vm2319, %v2350, %v2351
      %v2353 = vrot.slane %v1642, 2
      %v2354 = vsel %vm2319, %v2351, %v2353
      %v2355 = vrot.slane %v1643, 2
      %v2356 = vrot.slane %v1644, 2
      %v2357 = vsel %vm2319, %v2355, %v2356
      %v2358 = vrot.slane %v1645, 2
      %v2359 = vsel %vm2319, %v2356, %v2358
      %v2360 = vrot.slane %v1646, 2
      %v2361 = vrot.slane %v1647, 2
      %v2362 = vsel %vm2319, %v2360, %v2361
      %v2363 = vrot.slane %v1648, 2
      %v2364 = vsel %vm2319, %v2361, %v2363
      %v2365 = vrot.slane %v1649, 2
      %v2366 = vrot.slane %v1650, 2
      %v2367 = vsel %vm2319, %v2365, %v2366
      %v2368 = vrot.slane %v1651, 2
      %v2369 = vsel %vm2319, %v2366, %v2368
      %v2370 = vrot.slane %v1652, 2
      %v2371 = vrot.slane %v1653, 2
      %v2372 = vsel %vm2319, %v2370, %v2371
      %v2373 = vrot.slane %v1654, 2
      %v2374 = vsel %vm2319, %v2371, %v2373
      %v2375 = vrot.slane %v1655, 2
      %v2376 = vrot.slane %v1656, 2
      %v2377 = vsel %vm2319, %v2375, %v2376
      %v2378 = vrot.slane %v1657, 2
      %v2379 = vsel %vm2319, %v2376, %v2378
      %v2380 = vrot.slane %v1658, 2
      %v2381 = vrot.slane %v1659, 2
      %v2382 = vsel %vm2319, %v2380, %v2381
      %v2383 = vrot.slane %v1660, 2
      %v2384 = vsel %vm2319, %v2381, %v2383
      %v2385 = vrot.slane %v1661, 2
      %v2386 = vrot.slane %v1662, 2
      %v2387 = vsel %vm2319, %v2385, %v2386
      %v2388 = vrot.slane %v1663, 2
      %v2389 = vsel %vm2319, %v2386, %v2388
      %v2390 = vrot.slane %v1664, 2
      %v2391 = vrot.slane %v1665, 2
      %v2392 = vsel %vm2319, %v2390, %v2391
      %v2393 = vrot.slane %v1666, 2
      %v2394 = vsel %vm2319, %v2391, %v2393
      %v2395 = vrot.slane %v1667, 2
      %v2396 = vrot.slane %v1668, 2
      %v2397 = vsel %vm2319, %v2395, %v2396
      %v2398 = vrot.slane %v1669, 2
      %v2399 = vsel %vm2319, %v2396, %v2398
      %v2432 = vpack.c.bf16 %v2324, %v2322
      %v2433 = vpack.c.bf16 %v2329, %v2327
      %v2434 = vpack.c.bf16 %v2334, %v2332
      %v2435 = vpack.c.bf16 %v2339, %v2337
      %v2436 = vpack.c.bf16 %v2344, %v2342
      %v2437 = vpack.c.bf16 %v2349, %v2347
      %v2438 = vpack.c.bf16 %v2354, %v2352
      %v2439 = vpack.c.bf16 %v2359, %v2357
      %v2440 = vpack.c.bf16 %v2364, %v2362
      %v2441 = vpack.c.bf16 %v2369, %v2367
      %v2442 = vpack.c.bf16 %v2374, %v2372
      %v2443 = vpack.c.bf16 %v2379, %v2377
      %v2444 = vpack.c.bf16 %v2384, %v2382
      %v2445 = vpack.c.bf16 %v2389, %v2387
      %v2446 = vpack.c.bf16 %v2394, %v2392
      %v2447 = vpack.c.bf16 %v2399, %v2397
      %s2448 = scalar_lea.vmem %s8, 128
      %v2449 = vld [vmem:[%s2448] sm:$0xf]
      %v2450 = vld [vmem:[%s2448 + $0x4] sm:$0xf]
      %v2451 = vld [vmem:[%s2448 + $0x8] sm:$0xf]
      %v2452 = vld [vmem:[%s2448 + $0xc] sm:$0xf]
      %v2453 = vld [vmem:[%s2448 + $0x10] sm:$0xf]
      %v2454 = vld [vmem:[%s2448 + $0x14] sm:$0xf]
      %v2455 = vld [vmem:[%s2448 + $0x18] sm:$0xf]
      %v2456 = vld [vmem:[%s2448 + $0x1c] sm:$0xf]
      %v2457 = vld [vmem:[%s2448 + $0x20] sm:$0xf]
      %v2458 = vld [vmem:[%s2448 + $0x24] sm:$0xf]
      %v2459 = vld [vmem:[%s2448 + $0x28] sm:$0xf]
      %v2460 = vld [vmem:[%s2448 + $0x2c] sm:$0xf]
      %v2461 = vld [vmem:[%s2448 + $0x30] sm:$0xf]
      %v2462 = vld [vmem:[%s2448 + $0x34] sm:$0xf]
      %v2463 = vld [vmem:[%s2448 + $0x38] sm:$0xf]
      %v2464 = vld [vmem:[%s2448 + $0x3c] sm:$0xf]
      %v2481 = vunpack.c.l.b16 %v2449
      %v2482 = vunpack.c.l.b16 %v2450
      %v2483 = vunpack.c.l.b16 %v2451
      %v2484 = vunpack.c.l.b16 %v2452
      %v2485 = vunpack.c.l.b16 %v2453
      %v2486 = vunpack.c.l.b16 %v2454
      %v2487 = vunpack.c.l.b16 %v2455
      %v2488 = vunpack.c.l.b16 %v2456
      %v2489 = vunpack.c.l.b16 %v2457
      %v2490 = vunpack.c.l.b16 %v2458
      %v2491 = vunpack.c.l.b16 %v2459
      %v2492 = vunpack.c.l.b16 %v2460
      %v2493 = vunpack.c.l.b16 %v2461
      %v2494 = vunpack.c.l.b16 %v2462
      %v2495 = vunpack.c.l.b16 %v2463
      %v2496 = vunpack.c.l.b16 %v2464
      %v2497 = vpack.c.b16 %v2482, %v2481
      %v2498 = vpack.c.b16 %v2484, %v2483
      %v2499 = vpack.c.b16 %v2486, %v2485
      %v2500 = vpack.c.b16 %v2488, %v2487
      %v2501 = vpack.c.b16 %v2490, %v2489
      %v2502 = vpack.c.b16 %v2492, %v2491
      %v2503 = vpack.c.b16 %v2494, %v2493
      %v2504 = vpack.c.b16 %v2496, %v2495
      %2513 = vmatprep.subr.bf16.mxu0 0
      %2514 = vmatpush1.bf16.msra.mxu0 %v2497
      %2515 = vmatprep.subr.bf16.mxu0 0
      %2516 = vmatpush1.bf16.msra.mxu0 %v2498
      %2517 = vmatprep.subr.bf16.mxu0 0
      %2518 = vmatpush1.bf16.msra.mxu0 %v2499
      %2519 = vmatprep.subr.bf16.mxu0 0
      %2520 = vmatpush1.bf16.msra.mxu0 %v2500
      %2521 = vmatprep.subr.bf16.mxu0 0
      %2522 = vmatpush1.bf16.msra.mxu0 %v2501
      %2523 = vmatprep.subr.bf16.mxu0 0
      %2524 = vmatpush1.bf16.msra.mxu0 %v2502
      %2525 = vmatprep.subr.bf16.mxu0 0
      %2526 = vmatpush1.bf16.msra.mxu0 %v2503
      %2527 = vmatprep.subr.bf16.mxu0 0
      %2528 = vmatpush1.bf16.msra.mxu0 %v2504
      %2529 = vmatprep.subr.bf16.mxu0 0
      %2530 = vmatpush1.bf16.msra.mxu0 0
      %2531 = vmatprep.subr.bf16.mxu0 0
      %2532 = vmatpush1.bf16.msra.mxu0 0
      %2533 = vmatprep.subr.bf16.mxu0 0
      %2534 = vmatpush1.bf16.msra.mxu0 0
      %2535 = vmatprep.subr.bf16.mxu0 0
      %2536 = vmatpush1.bf16.msra.mxu0 0
      %2537 = vmatprep.subr.bf16.mxu0 0
      %2538 = vmatpush1.bf16.msra.mxu0 0
      %2539 = vmatprep.subr.bf16.mxu0 0
      %2540 = vmatpush1.bf16.msra.mxu0 0
      %2541 = vmatprep.subr.bf16.mxu0 0
      %2542 = vmatpush1.bf16.msra.mxu0 0
      %2543 = vmatprep.subr.bf16.mxu0 0
      %2544 = vmatpush1.bf16.msra.mxu0 0
      %2545 = vmatprep.mubr.bf16.mxu0 0
      %2546 = vmatmul.mubr.bf16.gmra.mrb[0].mxu0 %v2432
      %v2547 = vpop.f32.mrb[0].mxu0
      %v2548 = vadd.f32 0.0, %v2547
      %v2549 = vpop.f32.mrb[0].mxu0
      %v2550 = vpop.f32.mrb[0].mxu0
      %v2551 = vadd.f32 0.0, %v2550
      %v2552 = vpop.f32.mrb[0].mxu0
      %2553 = vmatprep.mubr.bf16.mxu0 0
      %2554 = vmatmul.mubr.bf16.gmra.mrb[0].mxu0 %v2433
      %v2555 = vpop.f32.mrb[0].mxu0
      %v2556 = vadd.f32 0.0, %v2555
      %v2557 = vpop.f32.mrb[0].mxu0
      %v2558 = vpop.f32.mrb[0].mxu0
      %v2559 = vadd.f32 0.0, %v2558
      %v2560 = vpop.f32.mrb[0].mxu0
      %2561 = vmatprep.mubr.bf16.mxu0 0
      %2562 = vmatmul.mubr.bf16.gmra.mrb[0].mxu0 %v2434
      %v2563 = vpop.f32.mrb[0].mxu0
      %v2564 = vadd.f32 0.0, %v2563
      %v2565 = vpop.f32.mrb[0].mxu0
      %v2566 = vpop.f32.mrb[0].mxu0
      %v2567 = vadd.f32 0.0, %v2566
      %v2568 = vpop.f32.mrb[0].mxu0
      %2569 = vmatprep.mubr.bf16.mxu0 0
      %2570 = vmatmul.mubr.bf16.gmra.mrb[0].mxu0 %v2435
      %v2571 = vpop.f32.mrb[0].mxu0
      %v2572 = vadd.f32 0.0, %v2571
      %v2573 = vpop.f32.mrb[0].mxu0
      %v2574 = vpop.f32.mrb[0].mxu0
      %v2575 = vadd.f32 0.0, %v2574
      %v2576 = vpop.f32.mrb[0].mxu0
      %2577 = vmatprep.mubr.bf16.mxu0 0
      %2578 = vmatmul.mubr.bf16.gmra.mrb[0].mxu0 %v2436
      %v2579 = vpop.f32.mrb[0].mxu0
      %v2580 = vadd.f32 0.0, %v2579
      %v2581 = vpop.f32.mrb[0].mxu0
      %v2582 = vpop.f32.mrb[0].mxu0
      %v2583 = vadd.f32 0.0, %v2582
      %v2584 = vpop.f32.mrb[0].mxu0
      %2585 = vmatprep.mubr.bf16.mxu0 0
      %2586 = vmatmul.mubr.bf16.gmra.mrb[0].mxu0 %v2437
      %v2587 = vpop.f32.mrb[0].mxu0
      %v2588 = vadd.f32 0.0, %v2587
      %v2589 = vpop.f32.mrb[0].mxu0
      %v2590 = vpop.f32.mrb[0].mxu0
      %v2591 = vadd.f32 0.0, %v2590
      %v2592 = vpop.f32.mrb[0].mxu0
      %2593 = vmatprep.mubr.bf16.mxu0 0
      %2594 = vmatmul.mubr.bf16.gmra.mrb[0].mxu0 %v2438
      %v2595 = vpop.f32.mrb[0].mxu0
      %v2596 = vadd.f32 0.0, %v2595
      %v2597 = vpop.f32.mrb[0].mxu0
      %v2598 = vpop.f32.mrb[0].mxu0
      %v2599 = vadd.f32 0.0, %v2598
      %v2600 = vpop.f32.mrb[0].mxu0
      %2601 = vmatprep.mubr.bf16.mxu0 0
      %2602 = vmatmul.mubr.bf16.gmra.mrb[0].mxu0 %v2439
      %v2603 = vpop.f32.mrb[0].mxu0
      %v2604 = vadd.f32 0.0, %v2603
      %v2605 = vpop.f32.mrb[0].mxu0
      %v2606 = vpop.f32.mrb[0].mxu0
      %v2607 = vadd.f32 0.0, %v2606
      %v2608 = vpop.f32.mrb[0].mxu0
      %2609 = vmatprep.mubr.bf16.mxu0 0
      %2610 = vmatmul.mubr.bf16.gmra.mrb[0].mxu0 %v2440
      %v2611 = vpop.f32.mrb[0].mxu0
      %v2612 = vadd.f32 0.0, %v2611
      %v2613 = vpop.f32.mrb[0].mxu0
      %v2614 = vpop.f32.mrb[0].mxu0
      %v2615 = vadd.f32 0.0, %v2614
      %v2616 = vpop.f32.mrb[0].mxu0
      %2617 = vmatprep.mubr.bf16.mxu0 0
      %2618 = vmatmul.mubr.bf16.gmra.mrb[0].mxu0 %v2441
      %v2619 = vpop.f32.mrb[0].mxu0
      %v2620 = vadd.f32 0.0, %v2619
      %v2621 = vpop.f32.mrb[0].mxu0
      %v2622 = vpop.f32.mrb[0].mxu0
      %v2623 = vadd.f32 0.0, %v2622
      %v2624 = vpop.f32.mrb[0].mxu0
      %2625 = vmatprep.mubr.bf16.mxu0 0
      %2626 = vmatmul.mubr.bf16.gmra.mrb[0].mxu0 %v2442
      %v2627 = vpop.f32.mrb[0].mxu0
      %v2628 = vadd.f32 0.0, %v2627
      %v2629 = vpop.f32.mrb[0].mxu0
      %v2630 = vpop.f32.mrb[0].mxu0
      %v2631 = vadd.f32 0.0, %v2630
      %v2632 = vpop.f32.mrb[0].mxu0
      %2633 = vmatprep.mubr.bf16.mxu0 0
      %2634 = vmatmul.mubr.bf16.gmra.mrb[0].mxu0 %v2443
      %v2635 = vpop.f32.mrb[0].mxu0
      %v2636 = vadd.f32 0.0, %v2635
      %v2637 = vpop.f32.mrb[0].mxu0
      %v2638 = vpop.f32.mrb[0].mxu0
      %v2639 = vadd.f32 0.0, %v2638
      %v2640 = vpop.f32.mrb[0].mxu0
      %2641 = vmatprep.mubr.bf16.mxu0 0
      %2642 = vmatmul.mubr.bf16.gmra.mrb[0].mxu0 %v2444
      %v2643 = vpop.f32.mrb[0].mxu0
      %v2644 = vadd.f32 0.0, %v2643
      %v2645 = vpop.f32.mrb[0].mxu0
      %v2646 = vpop.f32.mrb[0].mxu0
      %v2647 = vadd.f32 0.0, %v2646
      %v2648 = vpop.f32.mrb[0].mxu0
      %2649 = vmatprep.mubr.bf16.mxu0 0
      %2650 = vmatmul.mubr.bf16.gmra.mrb[0].mxu0 %v2445
      %v2651 = vpop.f32.mrb[0].mxu0
      %v2652 = vadd.f32 0.0, %v2651
      %v2653 = vpop.f32.mrb[0].mxu0
      %v2654 = vpop.f32.mrb[0].mxu0
      %v2655 = vadd.f32 0.0, %v2654
      %v2656 = vpop.f32.mrb[0].mxu0
      %2657 = vmatprep.mubr.bf16.mxu0 0
      %2658 = vmatmul.mubr.bf16.gmra.mrb[0].mxu0 %v2446
      %v2659 = vpop.f32.mrb[0].mxu0
      %v2660 = vadd.f32 0.0, %v2659
      %v2661 = vpop.f32.mrb[0].mxu0
      %v2662 = vpop.f32.mrb[0].mxu0
      %v2663 = vadd.f32 0.0, %v2662
      %v2664 = vpop.f32.mrb[0].mxu0
      %2665 = vmatprep.mubr.bf16.mxu0 0
      %2666 = vmatmul.mubr.bf16.gmra.mrb[0].mxu0 %v2447
      %v2667 = vpop.f32.mrb[0].mxu0
      %v2668 = vadd.f32 0.0, %v2667
      %v2669 = vpop.f32.mrb[0].mxu0
      %v2670 = vpop.f32.mrb[0].mxu0
      %v2671 = vadd.f32 0.0, %v2670
      %v2672 = vpop.f32.mrb[0].mxu0
      %2673 = vdwg.mxu0
      %v2674 = vadd.f32 %v2193, %v2548
      %v2675 = vadd.f32 %v2196, %v2551
      %v2676 = vadd.f32 %v2201, %v2556
      %v2677 = vadd.f32 %v2204, %v2559
      %v2678 = vadd.f32 %v2209, %v2564
      %v2679 = vadd.f32 %v2212, %v2567
      %v2680 = vadd.f32 %v2217, %v2572
      %v2681 = vadd.f32 %v2220, %v2575
      %v2682 = vadd.f32 %v2225, %v2580
      %v2683 = vadd.f32 %v2228, %v2583
      %v2684 = vadd.f32 %v2233, %v2588
      %v2685 = vadd.f32 %v2236, %v2591
      %v2686 = vadd.f32 %v2241, %v2596
      %v2687 = vadd.f32 %v2244, %v2599
      %v2688 = vadd.f32 %v2249, %v2604
      %v2689 = vadd.f32 %v2252, %v2607
      %v2690 = vadd.f32 %v2257, %v2612
      %v2691 = vadd.f32 %v2260, %v2615
      %v2692 = vadd.f32 %v2265, %v2620
      %v2693 = vadd.f32 %v2268, %v2623
      %v2694 = vadd.f32 %v2273, %v2628
      %v2695 = vadd.f32 %v2276, %v2631
      %v2696 = vadd.f32 %v2281, %v2636
      %v2697 = vadd.f32 %v2284, %v2639
      %v2698 = vadd.f32 %v2289, %v2644
      %v2699 = vadd.f32 %v2292, %v2647
      %v2700 = vadd.f32 %v2297, %v2652
      %v2701 = vadd.f32 %v2300, %v2655
      %v2702 = vadd.f32 %v2305, %v2660
      %v2703 = vadd.f32 %v2308, %v2663
      %v2704 = vadd.f32 %v2313, %v2668
      %v2705 = vadd.f32 %v2316, %v2671
      %v2706 = vpack.c.bf16 %v1671, %v1670
      %s2707 = scalar_lea.vmem %s8, 192
      %v2708 = vld [vmem:[%s2707] sm:$0xf]
      %v2709 = vld [vmem:[%s2707 + $0x4] sm:$0xf]
      %v2710 = vld [vmem:[%s2707 + $0x8] sm:$0xf]
      %v2711 = vld [vmem:[%s2707 + $0xc] sm:$0xf]
      %v2712 = vld [vmem:[%s2707 + $0x10] sm:$0xf]
      %v2713 = vld [vmem:[%s2707 + $0x14] sm:$0xf]
      %v2714 = vld [vmem:[%s2707 + $0x18] sm:$0xf]
      %v2715 = vld [vmem:[%s2707 + $0x1c] sm:$0xf]
      %v2716 = vld [vmem:[%s2707 + $0x20] sm:$0xf]
      %v2717 = vld [vmem:[%s2707 + $0x24] sm:$0xf]
      %v2718 = vld [vmem:[%s2707 + $0x28] sm:$0xf]
      %v2719 = vld [vmem:[%s2707 + $0x2c] sm:$0xf]
      %v2720 = vld [vmem:[%s2707 + $0x30] sm:$0xf]
      %v2721 = vld [vmem:[%s2707 + $0x34] sm:$0xf]
      %v2722 = vld [vmem:[%s2707 + $0x38] sm:$0xf]
      %v2723 = vld [vmem:[%s2707 + $0x3c] sm:$0xf]
      %v2740 = vunpack.c.l.b16 %v2708
      %v2741 = vunpack.c.l.b16 %v2709
      %v2742 = vunpack.c.l.b16 %v2710
      %v2743 = vunpack.c.l.b16 %v2711
      %v2744 = vunpack.c.l.b16 %v2712
      %v2745 = vunpack.c.l.b16 %v2713
      %v2746 = vunpack.c.l.b16 %v2714
      %v2747 = vunpack.c.l.b16 %v2715
      %v2748 = vunpack.c.l.b16 %v2716
      %v2749 = vunpack.c.l.b16 %v2717
      %v2750 = vunpack.c.l.b16 %v2718
      %v2751 = vunpack.c.l.b16 %v2719
      %v2752 = vunpack.c.l.b16 %v2720
      %v2753 = vunpack.c.l.b16 %v2721
      %v2754 = vunpack.c.l.b16 %v2722
      %v2755 = vunpack.c.l.b16 %v2723
      %v2756 = vpack.c.b16 %v2741, %v2740
      %v2757 = vpack.c.b16 %v2743, %v2742
      %v2758 = vpack.c.b16 %v2745, %v2744
      %v2759 = vpack.c.b16 %v2747, %v2746
      %v2760 = vpack.c.b16 %v2749, %v2748
      %v2761 = vpack.c.b16 %v2751, %v2750
      %v2762 = vpack.c.b16 %v2753, %v2752
      %v2763 = vpack.c.b16 %v2755, %v2754
      %2772 = vmatprep.subr.bf16.mxu0 0
      %2773 = vmatpush1.bf16.msra.mxu0 %v2756
      %2774 = vmatprep.subr.bf16.mxu0 0
      %2775 = vmatpush1.bf16.msra.mxu0 %v2757
      %2776 = vmatprep.subr.bf16.mxu0 0
      %2777 = vmatpush1.bf16.msra.mxu0 %v2758
      %2778 = vmatprep.subr.bf16.mxu0 0
      %2779 = vmatpush1.bf16.msra.mxu0 %v2759
      %2780 = vmatprep.subr.bf16.mxu0 0
      %2781 = vmatpush1.bf16.msra.mxu0 %v2760
      %2782 = vmatprep.subr.bf16.mxu0 0
      %2783 = vmatpush1.bf16.msra.mxu0 %v2761
      %2784 = vmatprep.subr.bf16.mxu0 0
      %2785 = vmatpush1.bf16.msra.mxu0 %v2762
      %2786 = vmatprep.subr.bf16.mxu0 0
      %2787 = vmatpush1.bf16.msra.mxu0 %v2763
      %2788 = vmatprep.subr.bf16.mxu0 0
      %2789 = vmatpush1.bf16.msra.mxu0 0
      %2790 = vmatprep.subr.bf16.mxu0 0
      %2791 = vmatpush1.bf16.msra.mxu0 0
      %2792 = vmatprep.subr.bf16.mxu0 0
      %2793 = vmatpush1.bf16.msra.mxu0 0
      %2794 = vmatprep.subr.bf16.mxu0 0
      %2795 = vmatpush1.bf16.msra.mxu0 0
      %2796 = vmatprep.subr.bf16.mxu0 0
      %2797 = vmatpush1.bf16.msra.mxu0 0
      %2798 = vmatprep.subr.bf16.mxu0 0
      %2799 = vmatpush1.bf16.msra.mxu0 0
      %2800 = vmatprep.subr.bf16.mxu0 0
      %2801 = vmatpush1.bf16.msra.mxu0 0
      %2802 = vmatprep.subr.bf16.mxu0 0
      %2803 = vmatpush1.bf16.msra.mxu0 0
      %2804 = vmatprep.mubr.bf16.mxu0 0
      %2805 = vmatmul.mubr.bf16.gmra.mrb[0].mxu0 %v1677
      %v2806 = vpop.f32.mrb[0].mxu0
      %v2807 = vadd.f32 0.0, %v2806
      %v2808 = vpop.f32.mrb[0].mxu0
      %v2809 = vpop.f32.mrb[0].mxu0
      %v2810 = vadd.f32 0.0, %v2809
      %v2811 = vpop.f32.mrb[0].mxu0
      %2812 = vmatprep.mubr.bf16.mxu0 0
      %2813 = vmatmul.mubr.bf16.gmra.mrb[0].mxu0 %v1678
      %v2814 = vpop.f32.mrb[0].mxu0
      %v2815 = vadd.f32 0.0, %v2814
      %v2816 = vpop.f32.mrb[0].mxu0
      %v2817 = vpop.f32.mrb[0].mxu0
      %v2818 = vadd.f32 0.0, %v2817
      %v2819 = vpop.f32.mrb[0].mxu0
      %2820 = vmatprep.mubr.bf16.mxu0 0
      %2821 = vmatmul.mubr.bf16.gmra.mrb[0].mxu0 %v1679
      %v2822 = vpop.f32.mrb[0].mxu0
      %v2823 = vadd.f32 0.0, %v2822
      %v2824 = vpop.f32.mrb[0].mxu0
      %v2825 = vpop.f32.mrb[0].mxu0
      %v2826 = vadd.f32 0.0, %v2825
      %v2827 = vpop.f32.mrb[0].mxu0
      %2828 = vmatprep.mubr.bf16.mxu0 0
      %2829 = vmatmul.mubr.bf16.gmra.mrb[0].mxu0 %v1680
      %v2830 = vpop.f32.mrb[0].mxu0
      %v2831 = vadd.f32 0.0, %v2830
      %v2832 = vpop.f32.mrb[0].mxu0
      %v2833 = vpop.f32.mrb[0].mxu0
      %v2834 = vadd.f32 0.0, %v2833
      %v2835 = vpop.f32.mrb[0].mxu0
      %2836 = vmatprep.mubr.bf16.mxu0 0
      %2837 = vmatmul.mubr.bf16.gmra.mrb[0].mxu0 %v1681
      %v2838 = vpop.f32.mrb[0].mxu0
      %v2839 = vadd.f32 0.0, %v2838
      %v2840 = vpop.f32.mrb[0].mxu0
      %v2841 = vpop.f32.mrb[0].mxu0
      %v2842 = vadd.f32 0.0, %v2841
      %v2843 = vpop.f32.mrb[0].mxu0
      %2844 = vmatprep.mubr.bf16.mxu0 0
      %2845 = vmatmul.mubr.bf16.gmra.mrb[0].mxu0 %v1682
      %v2846 = vpop.f32.mrb[0].mxu0
      %v2847 = vadd.f32 0.0, %v2846
      %v2848 = vpop.f32.mrb[0].mxu0
      %v2849 = vpop.f32.mrb[0].mxu0
      %v2850 = vadd.f32 0.0, %v2849
      %v2851 = vpop.f32.mrb[0].mxu0
      %2852 = vmatprep.mubr.bf16.mxu0 0
      %2853 = vmatmul.mubr.bf16.gmra.mrb[0].mxu0 %v1683
      %v2854 = vpop.f32.mrb[0].mxu0
      %v2855 = vadd.f32 0.0, %v2854
      %v2856 = vpop.f32.mrb[0].mxu0
      %v2857 = vpop.f32.mrb[0].mxu0
      %v2858 = vadd.f32 0.0, %v2857
      %v2859 = vpop.f32.mrb[0].mxu0
      %2860 = vmatprep.mubr.bf16.mxu0 0
      %2861 = vmatmul.mubr.bf16.gmra.mrb[0].mxu0 %v1684
      %v2862 = vpop.f32.mrb[0].mxu0
      %v2863 = vadd.f32 0.0, %v2862
      %v2864 = vpop.f32.mrb[0].mxu0
      %v2865 = vpop.f32.mrb[0].mxu0
      %v2866 = vadd.f32 0.0, %v2865
      %v2867 = vpop.f32.mrb[0].mxu0
      %2868 = vmatprep.mubr.bf16.mxu0 0
      %2869 = vmatmul.mubr.bf16.gmra.mrb[0].mxu0 %v1685
      %v2870 = vpop.f32.mrb[0].mxu0
      %v2871 = vadd.f32 0.0, %v2870
      %v2872 = vpop.f32.mrb[0].mxu0
      %v2873 = vpop.f32.mrb[0].mxu0
      %v2874 = vadd.f32 0.0, %v2873
      %v2875 = vpop.f32.mrb[0].mxu0
      %2876 = vmatprep.mubr.bf16.mxu0 0
      %2877 = vmatmul.mubr.bf16.gmra.mrb[0].mxu0 %v1686
      %v2878 = vpop.f32.mrb[0].mxu0
      %v2879 = vadd.f32 0.0, %v2878
      %v2880 = vpop.f32.mrb[0].mxu0
      %v2881 = vpop.f32.mrb[0].mxu0
      %v2882 = vadd.f32 0.0, %v2881
      %v2883 = vpop.f32.mrb[0].mxu0
      %2884 = vmatprep.mubr.bf16.mxu0 0
      %2885 = vmatmul.mubr.bf16.gmra.mrb[0].mxu0 %v1687
      %v2886 = vpop.f32.mrb[0].mxu0
      %v2887 = vadd.f32 0.0, %v2886
      %v2888 = vpop.f32.mrb[0].mxu0
      %v2889 = vpop.f32.mrb[0].mxu0
      %v2890 = vadd.f32 0.0, %v2889
      %v2891 = vpop.f32.mrb[0].mxu0
      %2892 = vmatprep.mubr.bf16.mxu0 0
      %2893 = vmatmul.mubr.bf16.gmra.mrb[0].mxu0 %v1688
      %v2894 = vpop.f32.mrb[0].mxu0
      %v2895 = vadd.f32 0.0, %v2894
      %v2896 = vpop.f32.mrb[0].mxu0
      %v2897 = vpop.f32.mrb[0].mxu0
      %v2898 = vadd.f32 0.0, %v2897
      %v2899 = vpop.f32.mrb[0].mxu0
      %2900 = vmatprep.mubr.bf16.mxu0 0
      %2901 = vmatmul.mubr.bf16.gmra.mrb[0].mxu0 %v1689
      %v2902 = vpop.f32.mrb[0].mxu0
      %v2903 = vadd.f32 0.0, %v2902
      %v2904 = vpop.f32.mrb[0].mxu0
      %v2905 = vpop.f32.mrb[0].mxu0
      %v2906 = vadd.f32 0.0, %v2905
      %v2907 = vpop.f32.mrb[0].mxu0
      %2908 = vmatprep.mubr.bf16.mxu0 0
      %2909 = vmatmul.mubr.bf16.gmra.mrb[0].mxu0 %v1690
      %v2910 = vpop.f32.mrb[0].mxu0
      %v2911 = vadd.f32 0.0, %v2910
      %v2912 = vpop.f32.mrb[0].mxu0
      %v2913 = vpop.f32.mrb[0].mxu0
      %v2914 = vadd.f32 0.0, %v2913
      %v2915 = vpop.f32.mrb[0].mxu0
      %2916 = vmatprep.mubr.bf16.mxu0 0
      %2917 = vmatmul.mubr.bf16.gmra.mrb[0].mxu0 %v1691
      %v2918 = vpop.f32.mrb[0].mxu0
      %v2919 = vadd.f32 0.0, %v2918
      %v2920 = vpop.f32.mrb[0].mxu0
      %v2921 = vpop.f32.mrb[0].mxu0
      %v2922 = vadd.f32 0.0, %v2921
      %v2923 = vpop.f32.mrb[0].mxu0
      %2924 = vmatprep.mubr.bf16.mxu0 0
      %2925 = vmatmul.mubr.bf16.gmra.mrb[0].mxu0 %v2706
      %v2926 = vpop.f32.mrb[0].mxu0
      %v2927 = vadd.f32 0.0, %v2926
      %v2928 = vpop.f32.mrb[0].mxu0
      %v2929 = vpop.f32.mrb[0].mxu0
      %v2930 = vadd.f32 0.0, %v2929
      %v2931 = vpop.f32.mrb[0].mxu0
      %2932 = vdwg.mxu0
      %v2933 = vadd.f32 %v2674, %v2807
      %v2934 = vadd.f32 %v2675, %v2810
      %v2935 = vadd.f32 %v2676, %v2815
      %v2936 = vadd.f32 %v2677, %v2818
      %v2937 = vadd.f32 %v2678, %v2823
      %v2938 = vadd.f32 %v2679, %v2826
      %v2939 = vadd.f32 %v2680, %v2831
      %v2940 = vadd.f32 %v2681, %v2834
      %v2941 = vadd.f32 %v2682, %v2839
      %v2942 = vadd.f32 %v2683, %v2842
      %v2943 = vadd.f32 %v2684, %v2847
      %v2944 = vadd.f32 %v2685, %v2850
      %v2945 = vadd.f32 %v2686, %v2855
      %v2946 = vadd.f32 %v2687, %v2858
      %v2947 = vadd.f32 %v2688, %v2863
      %v2948 = vadd.f32 %v2689, %v2866
      %v2949 = vadd.f32 %v2690, %v2871
      %v2950 = vadd.f32 %v2691, %v2874
      %v2951 = vadd.f32 %v2692, %v2879
      %v2952 = vadd.f32 %v2693, %v2882
      %v2953 = vadd.f32 %v2694, %v2887
      %v2954 = vadd.f32 %v2695, %v2890
      %v2955 = vadd.f32 %v2696, %v2895
      %v2956 = vadd.f32 %v2697, %v2898
      %v2957 = vadd.f32 %v2698, %v2903
      %v2958 = vadd.f32 %v2699, %v2906
      %v2959 = vadd.f32 %v2700, %v2911
      %v2960 = vadd.f32 %v2701, %v2914
      %v2961 = vadd.f32 %v2702, %v2919
      %v2962 = vadd.f32 %v2703, %v2922
      %v2963 = vadd.f32 %v2704, %v2927
      %v2964 = vadd.f32 %v2705, %v2930
      %v2968 = vrot.slane %v1670, 1
      %v2969 = vrot.slane %v1671, 1
      %v2970 = vsel %vm1448, %v2968, %v2969
      %v2971 = vrot.slane %v1672, 1
      %v2972 = vsel %vm1448, %v2969, %v2971
      %v2975 = vpack.c.bf16 %v2972, %v2970
      %s2976 = scalar_lea.vmem %s8, 256
      %v2977 = vld [vmem:[%s2976] sm:$0xf]
      %v2978 = vld [vmem:[%s2976 + $0x4] sm:$0xf]
      %v2979 = vld [vmem:[%s2976 + $0x8] sm:$0xf]
      %v2980 = vld [vmem:[%s2976 + $0xc] sm:$0xf]
      %v2981 = vld [vmem:[%s2976 + $0x10] sm:$0xf]
      %v2982 = vld [vmem:[%s2976 + $0x14] sm:$0xf]
      %v2983 = vld [vmem:[%s2976 + $0x18] sm:$0xf]
      %v2984 = vld [vmem:[%s2976 + $0x1c] sm:$0xf]
      %v2985 = vld [vmem:[%s2976 + $0x20] sm:$0xf]
      %v2986 = vld [vmem:[%s2976 + $0x24] sm:$0xf]
      %v2987 = vld [vmem:[%s2976 + $0x28] sm:$0xf]
      %v2988 = vld [vmem:[%s2976 + $0x2c] sm:$0xf]
      %v2989 = vld [vmem:[%s2976 + $0x30] sm:$0xf]
      %v2990 = vld [vmem:[%s2976 + $0x34] sm:$0xf]
      %v2991 = vld [vmem:[%s2976 + $0x38] sm:$0xf]
      %v2992 = vld [vmem:[%s2976 + $0x3c] sm:$0xf]
      %v3009 = vunpack.c.l.b16 %v2977
      %v3010 = vunpack.c.l.b16 %v2978
      %v3011 = vunpack.c.l.b16 %v2979
      %v3012 = vunpack.c.l.b16 %v2980
      %v3013 = vunpack.c.l.b16 %v2981
      %v3014 = vunpack.c.l.b16 %v2982
      %v3015 = vunpack.c.l.b16 %v2983
      %v3016 = vunpack.c.l.b16 %v2984
      %v3017 = vunpack.c.l.b16 %v2985
      %v3018 = vunpack.c.l.b16 %v2986
      %v3019 = vunpack.c.l.b16 %v2987
      %v3020 = vunpack.c.l.b16 %v2988
      %v3021 = vunpack.c.l.b16 %v2989
      %v3022 = vunpack.c.l.b16 %v2990
      %v3023 = vunpack.c.l.b16 %v2991
      %v3024 = vunpack.c.l.b16 %v2992
      %v3025 = vpack.c.b16 %v3010, %v3009
      %v3026 = vpack.c.b16 %v3012, %v3011
      %v3027 = vpack.c.b16 %v3014, %v3013
      %v3028 = vpack.c.b16 %v3016, %v3015
      %v3029 = vpack.c.b16 %v3018, %v3017
      %v3030 = vpack.c.b16 %v3020, %v3019
      %v3031 = vpack.c.b16 %v3022, %v3021
      %v3032 = vpack.c.b16 %v3024, %v3023
      %3041 = vmatprep.subr.bf16.mxu0 0
      %3042 = vmatpush1.bf16.msra.mxu0 %v3025
      %3043 = vmatprep.subr.bf16.mxu0 0
      %3044 = vmatpush1.bf16.msra.mxu0 %v3026
      %3045 = vmatprep.subr.bf16.mxu0 0
      %3046 = vmatpush1.bf16.msra.mxu0 %v3027
      %3047 = vmatprep.subr.bf16.mxu0 0
      %3048 = vmatpush1.bf16.msra.mxu0 %v3028
      %3049 = vmatprep.subr.bf16.mxu0 0
      %3050 = vmatpush1.bf16.msra.mxu0 %v3029
      %3051 = vmatprep.subr.bf16.mxu0 0
      %3052 = vmatpush1.bf16.msra.mxu0 %v3030
      %3053 = vmatprep.subr.bf16.mxu0 0
      %3054 = vmatpush1.bf16.msra.mxu0 %v3031
      %3055 = vmatprep.subr.bf16.mxu0 0
      %3056 = vmatpush1.bf16.msra.mxu0 %v3032
      %3057 = vmatprep.subr.bf16.mxu0 0
      %3058 = vmatpush1.bf16.msra.mxu0 0
      %3059 = vmatprep.subr.bf16.mxu0 0
      %3060 = vmatpush1.bf16.msra.mxu0 0
      %3061 = vmatprep.subr.bf16.mxu0 0
      %3062 = vmatpush1.bf16.msra.mxu0 0
      %3063 = vmatprep.subr.bf16.mxu0 0
      %3064 = vmatpush1.bf16.msra.mxu0 0
      %3065 = vmatprep.subr.bf16.mxu0 0
      %3066 = vmatpush1.bf16.msra.mxu0 0
      %3067 = vmatprep.subr.bf16.mxu0 0
      %3068 = vmatpush1.bf16.msra.mxu0 0
      %3069 = vmatprep.subr.bf16.mxu0 0
      %3070 = vmatpush1.bf16.msra.mxu0 0
      %3071 = vmatprep.subr.bf16.mxu0 0
      %3072 = vmatpush1.bf16.msra.mxu0 0
      %3073 = vmatprep.mubr.bf16.mxu0 0
      %3074 = vmatmul.mubr.bf16.gmra.mrb[0].mxu0 %v1869
      %v3075 = vpop.f32.mrb[0].mxu0
      %v3076 = vadd.f32 0.0, %v3075
      %v3077 = vpop.f32.mrb[0].mxu0
      %v3078 = vpop.f32.mrb[0].mxu0
      %v3079 = vadd.f32 0.0, %v3078
      %v3080 = vpop.f32.mrb[0].mxu0
      %3081 = vmatprep.mubr.bf16.mxu0 0
      %3082 = vmatmul.mubr.bf16.gmra.mrb[0].mxu0 %v1870
      %v3083 = vpop.f32.mrb[0].mxu0
      %v3084 = vadd.f32 0.0, %v3083
      %v3085 = vpop.f32.mrb[0].mxu0
      %v3086 = vpop.f32.mrb[0].mxu0
      %v3087 = vadd.f32 0.0, %v3086
      %v3088 = vpop.f32.mrb[0].mxu0
      %3089 = vmatprep.mubr.bf16.mxu0 0
      %3090 = vmatmul.mubr.bf16.gmra.mrb[0].mxu0 %v1871
      %v3091 = vpop.f32.mrb[0].mxu0
      %v3092 = vadd.f32 0.0, %v3091
      %v3093 = vpop.f32.mrb[0].mxu0
      %v3094 = vpop.f32.mrb[0].mxu0
      %v3095 = vadd.f32 0.0, %v3094
      %v3096 = vpop.f32.mrb[0].mxu0
      %3097 = vmatprep.mubr.bf16.mxu0 0
      %3098 = vmatmul.mubr.bf16.gmra.mrb[0].mxu0 %v1872
      %v3099 = vpop.f32.mrb[0].mxu0
      %v3100 = vadd.f32 0.0, %v3099
      %v3101 = vpop.f32.mrb[0].mxu0
      %v3102 = vpop.f32.mrb[0].mxu0
      %v3103 = vadd.f32 0.0, %v3102
      %v3104 = vpop.f32.mrb[0].mxu0
      %3105 = vmatprep.mubr.bf16.mxu0 0
      %3106 = vmatmul.mubr.bf16.gmra.mrb[0].mxu0 %v1873
      %v3107 = vpop.f32.mrb[0].mxu0
      %v3108 = vadd.f32 0.0, %v3107
      %v3109 = vpop.f32.mrb[0].mxu0
      %v3110 = vpop.f32.mrb[0].mxu0
      %v3111 = vadd.f32 0.0, %v3110
      %v3112 = vpop.f32.mrb[0].mxu0
      %3113 = vmatprep.mubr.bf16.mxu0 0
      %3114 = vmatmul.mubr.bf16.gmra.mrb[0].mxu0 %v1874
      %v3115 = vpop.f32.mrb[0].mxu0
      %v3116 = vadd.f32 0.0, %v3115
      %v3117 = vpop.f32.mrb[0].mxu0
      %v3118 = vpop.f32.mrb[0].mxu0
      %v3119 = vadd.f32 0.0, %v3118
      %v3120 = vpop.f32.mrb[0].mxu0
      %3121 = vmatprep.mubr.bf16.mxu0 0
      %3122 = vmatmul.mubr.bf16.gmra.mrb[0].mxu0 %v1875
      %v3123 = vpop.f32.mrb[0].mxu0
      %v3124 = vadd.f32 0.0, %v3123
      %v3125 = vpop.f32.mrb[0].mxu0
      %v3126 = vpop.f32.mrb[0].mxu0
      %v3127 = vadd.f32 0.0, %v3126
      %v3128 = vpop.f32.mrb[0].mxu0
      %3129 = vmatprep.mubr.bf16.mxu0 0
      %3130 = vmatmul.mubr.bf16.gmra.mrb[0].mxu0 %v1876
      %v3131 = vpop.f32.mrb[0].mxu0
      %v3132 = vadd.f32 0.0, %v3131
      %v3133 = vpop.f32.mrb[0].mxu0
      %v3134 = vpop.f32.mrb[0].mxu0
      %v3135 = vadd.f32 0.0, %v3134
      %v3136 = vpop.f32.mrb[0].mxu0
      %3137 = vmatprep.mubr.bf16.mxu0 0
      %3138 = vmatmul.mubr.bf16.gmra.mrb[0].mxu0 %v1877
      %v3139 = vpop.f32.mrb[0].mxu0
      %v3140 = vadd.f32 0.0, %v3139
      %v3141 = vpop.f32.mrb[0].mxu0
      %v3142 = vpop.f32.mrb[0].mxu0
      %v3143 = vadd.f32 0.0, %v3142
      %v3144 = vpop.f32.mrb[0].mxu0
      %3145 = vmatprep.mubr.bf16.mxu0 0
      %3146 = vmatmul.mubr.bf16.gmra.mrb[0].mxu0 %v1878
      %v3147 = vpop.f32.mrb[0].mxu0
      %v3148 = vadd.f32 0.0, %v3147
      %v3149 = vpop.f32.mrb[0].mxu0
      %v3150 = vpop.f32.mrb[0].mxu0
      %v3151 = vadd.f32 0.0, %v3150
      %v3152 = vpop.f32.mrb[0].mxu0
      %3153 = vmatprep.mubr.bf16.mxu0 0
      %3154 = vmatmul.mubr.bf16.gmra.mrb[0].mxu0 %v1879
      %v3155 = vpop.f32.mrb[0].mxu0
      %v3156 = vadd.f32 0.0, %v3155
      %v3157 = vpop.f32.mrb[0].mxu0
      %v3158 = vpop.f32.mrb[0].mxu0
      %v3159 = vadd.f32 0.0, %v3158
      %v3160 = vpop.f32.mrb[0].mxu0
      %3161 = vmatprep.mubr.bf16.mxu0 0
      %3162 = vmatmul.mubr.bf16.gmra.mrb[0].mxu0 %v1880
      %v3163 = vpop.f32.mrb[0].mxu0
      %v3164 = vadd.f32 0.0, %v3163
      %v3165 = vpop.f32.mrb[0].mxu0
      %v3166 = vpop.f32.mrb[0].mxu0
      %v3167 = vadd.f32 0.0, %v3166
      %v3168 = vpop.f32.mrb[0].mxu0
      %3169 = vmatprep.mubr.bf16.mxu0 0
      %3170 = vmatmul.mubr.bf16.gmra.mrb[0].mxu0 %v1881
      %v3171 = vpop.f32.mrb[0].mxu0
      %v3172 = vadd.f32 0.0, %v3171
      %v3173 = vpop.f32.mrb[0].mxu0
      %v3174 = vpop.f32.mrb[0].mxu0
      %v3175 = vadd.f32 0.0, %v3174
      %v3176 = vpop.f32.mrb[0].mxu0
      %3177 = vmatprep.mubr.bf16.mxu0 0
      %3178 = vmatmul.mubr.bf16.gmra.mrb[0].mxu0 %v1882
      %v3179 = vpop.f32.mrb[0].mxu0
      %v3180 = vadd.f32 0.0, %v3179
      %v3181 = vpop.f32.mrb[0].mxu0
      %v3182 = vpop.f32.mrb[0].mxu0
      %v3183 = vadd.f32 0.0, %v3182
      %v3184 = vpop.f32.mrb[0].mxu0
      %3185 = vmatprep.mubr.bf16.mxu0 0
      %3186 = vmatmul.mubr.bf16.gmra.mrb[0].mxu0 %v1883
      %v3187 = vpop.f32.mrb[0].mxu0
      %v3188 = vadd.f32 0.0, %v3187
      %v3189 = vpop.f32.mrb[0].mxu0
      %v3190 = vpop.f32.mrb[0].mxu0
      %v3191 = vadd.f32 0.0, %v3190
      %v3192 = vpop.f32.mrb[0].mxu0
      %3193 = vmatprep.mubr.bf16.mxu0 0
      %3194 = vmatmul.mubr.bf16.gmra.mrb[0].mxu0 %v2975
      %v3195 = vpop.f32.mrb[0].mxu0
      %v3196 = vadd.f32 0.0, %v3195
      %v3197 = vpop.f32.mrb[0].mxu0
      %v3198 = vpop.f32.mrb[0].mxu0
      %v3199 = vadd.f32 0.0, %v3198
      %v3200 = vpop.f32.mrb[0].mxu0
      %3201 = vdwg.mxu0
      %v3202 = vadd.f32 %v2933, %v3076
      %v3203 = vadd.f32 %v2934, %v3079
      %v3204 = vadd.f32 %v2935, %v3084
      %v3205 = vadd.f32 %v2936, %v3087
      %v3206 = vadd.f32 %v2937, %v3092
      %v3207 = vadd.f32 %v2938, %v3095
      %v3208 = vadd.f32 %v2939, %v3100
      %v3209 = vadd.f32 %v2940, %v3103
      %v3210 = vadd.f32 %v2941, %v3108
      %v3211 = vadd.f32 %v2942, %v3111
      %v3212 = vadd.f32 %v2943, %v3116
      %v3213 = vadd.f32 %v2944, %v3119
      %v3214 = vadd.f32 %v2945, %v3124
      %v3215 = vadd.f32 %v2946, %v3127
      %v3216 = vadd.f32 %v2947, %v3132
      %v3217 = vadd.f32 %v2948, %v3135
      %v3218 = vadd.f32 %v2949, %v3140
      %v3219 = vadd.f32 %v2950, %v3143
      %v3220 = vadd.f32 %v2951, %v3148
      %v3221 = vadd.f32 %v2952, %v3151
      %v3222 = vadd.f32 %v2953, %v3156
      %v3223 = vadd.f32 %v2954, %v3159
      %v3224 = vadd.f32 %v2955, %v3164
      %v3225 = vadd.f32 %v2956, %v3167
      %v3226 = vadd.f32 %v2957, %v3172
      %v3227 = vadd.f32 %v2958, %v3175
      %v3228 = vadd.f32 %v2959, %v3180
      %v3229 = vadd.f32 %v2960, %v3183
      %v3230 = vadd.f32 %v2961, %v3188
      %v3231 = vadd.f32 %v2962, %v3191
      %v3232 = vadd.f32 %v2963, %v3196
      %v3233 = vadd.f32 %v2964, %v3199
      %v3234 = vrot.slane %v1670, 2
      %v3235 = vrot.slane %v1671, 2
      %v3236 = vsel %vm2319, %v3234, %v3235
      %v3237 = vrot.slane %v1672, 2
      %v3238 = vsel %vm2319, %v3235, %v3237
      %v3241 = vpack.c.bf16 %v3238, %v3236
      %s3242 = scalar_lea.vmem %s8, 320
      %v3243 = vld [vmem:[%s3242] sm:$0xf]
      %v3244 = vld [vmem:[%s3242 + $0x4] sm:$0xf]
      %v3245 = vld [vmem:[%s3242 + $0x8] sm:$0xf]
      %v3246 = vld [vmem:[%s3242 + $0xc] sm:$0xf]
      %v3247 = vld [vmem:[%s3242 + $0x10] sm:$0xf]
      %v3248 = vld [vmem:[%s3242 + $0x14] sm:$0xf]
      %v3249 = vld [vmem:[%s3242 + $0x18] sm:$0xf]
      %v3250 = vld [vmem:[%s3242 + $0x1c] sm:$0xf]
      %v3251 = vld [vmem:[%s3242 + $0x20] sm:$0xf]
      %v3252 = vld [vmem:[%s3242 + $0x24] sm:$0xf]
      %v3253 = vld [vmem:[%s3242 + $0x28] sm:$0xf]
      %v3254 = vld [vmem:[%s3242 + $0x2c] sm:$0xf]
      %v3255 = vld [vmem:[%s3242 + $0x30] sm:$0xf]
      %v3256 = vld [vmem:[%s3242 + $0x34] sm:$0xf]
      %v3257 = vld [vmem:[%s3242 + $0x38] sm:$0xf]
      %v3258 = vld [vmem:[%s3242 + $0x3c] sm:$0xf]
      %v3275 = vunpack.c.l.b16 %v3243
      %v3276 = vunpack.c.l.b16 %v3244
      %v3277 = vunpack.c.l.b16 %v3245
      %v3278 = vunpack.c.l.b16 %v3246
      %v3279 = vunpack.c.l.b16 %v3247
      %v3280 = vunpack.c.l.b16 %v3248
      %v3281 = vunpack.c.l.b16 %v3249
      %v3282 = vunpack.c.l.b16 %v3250
      %v3283 = vunpack.c.l.b16 %v3251
      %v3284 = vunpack.c.l.b16 %v3252
      %v3285 = vunpack.c.l.b16 %v3253
      %v3286 = vunpack.c.l.b16 %v3254
      %v3287 = vunpack.c.l.b16 %v3255
      %v3288 = vunpack.c.l.b16 %v3256
      %v3289 = vunpack.c.l.b16 %v3257
      %v3290 = vunpack.c.l.b16 %v3258
      %v3291 = vpack.c.b16 %v3276, %v3275
      %v3292 = vpack.c.b16 %v3278, %v3277
      %v3293 = vpack.c.b16 %v3280, %v3279
      %v3294 = vpack.c.b16 %v3282, %v3281
      %v3295 = vpack.c.b16 %v3284, %v3283
      %v3296 = vpack.c.b16 %v3286, %v3285
      %v3297 = vpack.c.b16 %v3288, %v3287
      %v3298 = vpack.c.b16 %v3290, %v3289
      %3307 = vmatprep.subr.bf16.mxu0 0
      %3308 = vmatpush1.bf16.msra.mxu0 %v3291
      %3309 = vmatprep.subr.bf16.mxu0 0
      %3310 = vmatpush1.bf16.msra.mxu0 %v3292
      %3311 = vmatprep.subr.bf16.mxu0 0
      %3312 = vmatpush1.bf16.msra.mxu0 %v3293
      %3313 = vmatprep.subr.bf16.mxu0 0
      %3314 = vmatpush1.bf16.msra.mxu0 %v3294
      %3315 = vmatprep.subr.bf16.mxu0 0
      %3316 = vmatpush1.bf16.msra.mxu0 %v3295
      %3317 = vmatprep.subr.bf16.mxu0 0
      %3318 = vmatpush1.bf16.msra.mxu0 %v3296
      %3319 = vmatprep.subr.bf16.mxu0 0
      %3320 = vmatpush1.bf16.msra.mxu0 %v3297
      %3321 = vmatprep.subr.bf16.mxu0 0
      %3322 = vmatpush1.bf16.msra.mxu0 %v3298
      %3323 = vmatprep.subr.bf16.mxu0 0
      %3324 = vmatpush1.bf16.msra.mxu0 0
      %3325 = vmatprep.subr.bf16.mxu0 0
      %3326 = vmatpush1.bf16.msra.mxu0 0
      %3327 = vmatprep.subr.bf16.mxu0 0
      %3328 = vmatpush1.bf16.msra.mxu0 0
      %3329 = vmatprep.subr.bf16.mxu0 0
      %3330 = vmatpush1.bf16.msra.mxu0 0
      %3331 = vmatprep.subr.bf16.mxu0 0
      %3332 = vmatpush1.bf16.msra.mxu0 0
      %3333 = vmatprep.subr.bf16.mxu0 0
      %3334 = vmatpush1.bf16.msra.mxu0 0
      %3335 = vmatprep.subr.bf16.mxu0 0
      %3336 = vmatpush1.bf16.msra.mxu0 0
      %3337 = vmatprep.subr.bf16.mxu0 0
      %3338 = vmatpush1.bf16.msra.mxu0 0
      %3339 = vmatprep.mubr.bf16.mxu0 0
      %3340 = vmatmul.mubr.bf16.gmra.mrb[0].mxu0 %v2433
      %v3341 = vpop.f32.mrb[0].mxu0
      %v3342 = vadd.f32 0.0, %v3341
      %v3343 = vpop.f32.mrb[0].mxu0
      %v3344 = vpop.f32.mrb[0].mxu0
      %v3345 = vadd.f32 0.0, %v3344
      %v3346 = vpop.f32.mrb[0].mxu0
      %3347 = vmatprep.mubr.bf16.mxu0 0
      %3348 = vmatmul.mubr.bf16.gmra.mrb[0].mxu0 %v2434
      %v3349 = vpop.f32.mrb[0].mxu0
      %v3350 = vadd.f32 0.0, %v3349
      %v3351 = vpop.f32.mrb[0].mxu0
      %v3352 = vpop.f32.mrb[0].mxu0
      %v3353 = vadd.f32 0.0, %v3352
      %v3354 = vpop.f32.mrb[0].mxu0
      %3355 = vmatprep.mubr.bf16.mxu0 0
      %3356 = vmatmul.mubr.bf16.gmra.mrb[0].mxu0 %v2435
      %v3357 = vpop.f32.mrb[0].mxu0
      %v3358 = vadd.f32 0.0, %v3357
      %v3359 = vpop.f32.mrb[0].mxu0
      %v3360 = vpop.f32.mrb[0].mxu0
      %v3361 = vadd.f32 0.0, %v3360
      %v3362 = vpop.f32.mrb[0].mxu0
      %3363 = vmatprep.mubr.bf16.mxu0 0
      %3364 = vmatmul.mubr.bf16.gmra.mrb[0].mxu0 %v2436
      %v3365 = vpop.f32.mrb[0].mxu0
      %v3366 = vadd.f32 0.0, %v3365
      %v3367 = vpop.f32.mrb[0].mxu0
      %v3368 = vpop.f32.mrb[0].mxu0
      %v3369 = vadd.f32 0.0, %v3368
      %v3370 = vpop.f32.mrb[0].mxu0
      %3371 = vmatprep.mubr.bf16.mxu0 0
      %3372 = vmatmul.mubr.bf16.gmra.mrb[0].mxu0 %v2437
      %v3373 = vpop.f32.mrb[0].mxu0
      %v3374 = vadd.f32 0.0, %v3373
      %v3375 = vpop.f32.mrb[0].mxu0
      %v3376 = vpop.f32.mrb[0].mxu0
      %v3377 = vadd.f32 0.0, %v3376
      %v3378 = vpop.f32.mrb[0].mxu0
      %3379 = vmatprep.mubr.bf16.mxu0 0
      %3380 = vmatmul.mubr.bf16.gmra.mrb[0].mxu0 %v2438
      %v3381 = vpop.f32.mrb[0].mxu0
      %v3382 = vadd.f32 0.0, %v3381
      %v3383 = vpop.f32.mrb[0].mxu0
      %v3384 = vpop.f32.mrb[0].mxu0
      %v3385 = vadd.f32 0.0, %v3384
      %v3386 = vpop.f32.mrb[0].mxu0
      %3387 = vmatprep.mubr.bf16.mxu0 0
      %3388 = vmatmul.mubr.bf16.gmra.mrb[0].mxu0 %v2439
      %v3389 = vpop.f32.mrb[0].mxu0
      %v3390 = vadd.f32 0.0, %v3389
      %v3391 = vpop.f32.mrb[0].mxu0
      %v3392 = vpop.f32.mrb[0].mxu0
      %v3393 = vadd.f32 0.0, %v3392
      %v3394 = vpop.f32.mrb[0].mxu0
      %3395 = vmatprep.mubr.bf16.mxu0 0
      %3396 = vmatmul.mubr.bf16.gmra.mrb[0].mxu0 %v2440
      %v3397 = vpop.f32.mrb[0].mxu0
      %v3398 = vadd.f32 0.0, %v3397
      %v3399 = vpop.f32.mrb[0].mxu0
      %v3400 = vpop.f32.mrb[0].mxu0
      %v3401 = vadd.f32 0.0, %v3400
      %v3402 = vpop.f32.mrb[0].mxu0
      %3403 = vmatprep.mubr.bf16.mxu0 0
      %3404 = vmatmul.mubr.bf16.gmra.mrb[0].mxu0 %v2441
      %v3405 = vpop.f32.mrb[0].mxu0
      %v3406 = vadd.f32 0.0, %v3405
      %v3407 = vpop.f32.mrb[0].mxu0
      %v3408 = vpop.f32.mrb[0].mxu0
      %v3409 = vadd.f32 0.0, %v3408
      %v3410 = vpop.f32.mrb[0].mxu0
      %3411 = vmatprep.mubr.bf16.mxu0 0
      %3412 = vmatmul.mubr.bf16.gmra.mrb[0].mxu0 %v2442
      %v3413 = vpop.f32.mrb[0].mxu0
      %v3414 = vadd.f32 0.0, %v3413
      %v3415 = vpop.f32.mrb[0].mxu0
      %v3416 = vpop.f32.mrb[0].mxu0
      %v3417 = vadd.f32 0.0, %v3416
      %v3418 = vpop.f32.mrb[0].mxu0
      %3419 = vmatprep.mubr.bf16.mxu0 0
      %3420 = vmatmul.mubr.bf16.gmra.mrb[0].mxu0 %v2443
      %v3421 = vpop.f32.mrb[0].mxu0
      %v3422 = vadd.f32 0.0, %v3421
      %v3423 = vpop.f32.mrb[0].mxu0
      %v3424 = vpop.f32.mrb[0].mxu0
      %v3425 = vadd.f32 0.0, %v3424
      %v3426 = vpop.f32.mrb[0].mxu0
      %3427 = vmatprep.mubr.bf16.mxu0 0
      %3428 = vmatmul.mubr.bf16.gmra.mrb[0].mxu0 %v2444
      %v3429 = vpop.f32.mrb[0].mxu0
      %v3430 = vadd.f32 0.0, %v3429
      %v3431 = vpop.f32.mrb[0].mxu0
      %v3432 = vpop.f32.mrb[0].mxu0
      %v3433 = vadd.f32 0.0, %v3432
      %v3434 = vpop.f32.mrb[0].mxu0
      %3435 = vmatprep.mubr.bf16.mxu0 0
      %3436 = vmatmul.mubr.bf16.gmra.mrb[0].mxu0 %v2445
      %v3437 = vpop.f32.mrb[0].mxu0
      %v3438 = vadd.f32 0.0, %v3437
      %v3439 = vpop.f32.mrb[0].mxu0
      %v3440 = vpop.f32.mrb[0].mxu0
      %v3441 = vadd.f32 0.0, %v3440
      %v3442 = vpop.f32.mrb[0].mxu0
      %3443 = vmatprep.mubr.bf16.mxu0 0
      %3444 = vmatmul.mubr.bf16.gmra.mrb[0].mxu0 %v2446
      %v3445 = vpop.f32.mrb[0].mxu0
      %v3446 = vadd.f32 0.0, %v3445
      %v3447 = vpop.f32.mrb[0].mxu0
      %v3448 = vpop.f32.mrb[0].mxu0
      %v3449 = vadd.f32 0.0, %v3448
      %v3450 = vpop.f32.mrb[0].mxu0
      %3451 = vmatprep.mubr.bf16.mxu0 0
      %3452 = vmatmul.mubr.bf16.gmra.mrb[0].mxu0 %v2447
      %v3453 = vpop.f32.mrb[0].mxu0
      %v3454 = vadd.f32 0.0, %v3453
      %v3455 = vpop.f32.mrb[0].mxu0
      %v3456 = vpop.f32.mrb[0].mxu0
      %v3457 = vadd.f32 0.0, %v3456
      %v3458 = vpop.f32.mrb[0].mxu0
      %3459 = vmatprep.mubr.bf16.mxu0 0
      %3460 = vmatmul.mubr.bf16.gmra.mrb[0].mxu0 %v3241
      %v3461 = vpop.f32.mrb[0].mxu0
      %v3462 = vadd.f32 0.0, %v3461
      %v3463 = vpop.f32.mrb[0].mxu0
      %v3464 = vpop.f32.mrb[0].mxu0
      %v3465 = vadd.f32 0.0, %v3464
      %v3466 = vpop.f32.mrb[0].mxu0
      %3467 = vdwg.mxu0
      %v3468 = vadd.f32 %v3202, %v3342
      %v3469 = vadd.f32 %v3203, %v3345
      %v3470 = vadd.f32 %v3204, %v3350
      %v3471 = vadd.f32 %v3205, %v3353
      %v3472 = vadd.f32 %v3206, %v3358
      %v3473 = vadd.f32 %v3207, %v3361
      %v3474 = vadd.f32 %v3208, %v3366
      %v3475 = vadd.f32 %v3209, %v3369
      %v3476 = vadd.f32 %v3210, %v3374
      %v3477 = vadd.f32 %v3211, %v3377
      %v3478 = vadd.f32 %v3212, %v3382
      %v3479 = vadd.f32 %v3213, %v3385
      %v3480 = vadd.f32 %v3214, %v3390
      %v3481 = vadd.f32 %v3215, %v3393
      %v3482 = vadd.f32 %v3216, %v3398
      %v3483 = vadd.f32 %v3217, %v3401
      %v3484 = vadd.f32 %v3218, %v3406
      %v3485 = vadd.f32 %v3219, %v3409
      %v3486 = vadd.f32 %v3220, %v3414
      %v3487 = vadd.f32 %v3221, %v3417
      %v3488 = vadd.f32 %v3222, %v3422
      %v3489 = vadd.f32 %v3223, %v3425
      %v3490 = vadd.f32 %v3224, %v3430
      %v3491 = vadd.f32 %v3225, %v3433
      %v3492 = vadd.f32 %v3226, %v3438
      %v3493 = vadd.f32 %v3227, %v3441
      %v3494 = vadd.f32 %v3228, %v3446
      %v3495 = vadd.f32 %v3229, %v3449
      %v3496 = vadd.f32 %v3230, %v3454
      %v3497 = vadd.f32 %v3231, %v3457
      %v3498 = vadd.f32 %v3232, %v3462
      %v3499 = vadd.f32 %v3233, %v3465
      %v3500 = vpack.c.bf16 %v1674, %v1673
      %s3501 = scalar_lea.vmem %s8, 384
      %v3502 = vld [vmem:[%s3501] sm:$0xf]
      %v3503 = vld [vmem:[%s3501 + $0x4] sm:$0xf]
      %v3504 = vld [vmem:[%s3501 + $0x8] sm:$0xf]
      %v3505 = vld [vmem:[%s3501 + $0xc] sm:$0xf]
      %v3506 = vld [vmem:[%s3501 + $0x10] sm:$0xf]
      %v3507 = vld [vmem:[%s3501 + $0x14] sm:$0xf]
      %v3508 = vld [vmem:[%s3501 + $0x18] sm:$0xf]
      %v3509 = vld [vmem:[%s3501 + $0x1c] sm:$0xf]
      %v3510 = vld [vmem:[%s3501 + $0x20] sm:$0xf]
      %v3511 = vld [vmem:[%s3501 + $0x24] sm:$0xf]
      %v3512 = vld [vmem:[%s3501 + $0x28] sm:$0xf]
      %v3513 = vld [vmem:[%s3501 + $0x2c] sm:$0xf]
      %v3514 = vld [vmem:[%s3501 + $0x30] sm:$0xf]
      %v3515 = vld [vmem:[%s3501 + $0x34] sm:$0xf]
      %v3516 = vld [vmem:[%s3501 + $0x38] sm:$0xf]
      %v3517 = vld [vmem:[%s3501 + $0x3c] sm:$0xf]
      %v3534 = vunpack.c.l.b16 %v3502
      %v3535 = vunpack.c.l.b16 %v3503
      %v3536 = vunpack.c.l.b16 %v3504
      %v3537 = vunpack.c.l.b16 %v3505
      %v3538 = vunpack.c.l.b16 %v3506
      %v3539 = vunpack.c.l.b16 %v3507
      %v3540 = vunpack.c.l.b16 %v3508
      %v3541 = vunpack.c.l.b16 %v3509
      %v3542 = vunpack.c.l.b16 %v3510
      %v3543 = vunpack.c.l.b16 %v3511
      %v3544 = vunpack.c.l.b16 %v3512
      %v3545 = vunpack.c.l.b16 %v3513
      %v3546 = vunpack.c.l.b16 %v3514
      %v3547 = vunpack.c.l.b16 %v3515
      %v3548 = vunpack.c.l.b16 %v3516
      %v3549 = vunpack.c.l.b16 %v3517
      %v3550 = vpack.c.b16 %v3535, %v3534
      %v3551 = vpack.c.b16 %v3537, %v3536
      %v3552 = vpack.c.b16 %v3539, %v3538
      %v3553 = vpack.c.b16 %v3541, %v3540
      %v3554 = vpack.c.b16 %v3543, %v3542
      %v3555 = vpack.c.b16 %v3545, %v3544
      %v3556 = vpack.c.b16 %v3547, %v3546
      %v3557 = vpack.c.b16 %v3549, %v3548
      %3566 = vmatprep.subr.bf16.mxu0 0
      %3567 = vmatpush1.bf16.msra.mxu0 %v3550
      %3568 = vmatprep.subr.bf16.mxu0 0
      %3569 = vmatpush1.bf16.msra.mxu0 %v3551
      %3570 = vmatprep.subr.bf16.mxu0 0
      %3571 = vmatpush1.bf16.msra.mxu0 %v3552
      %3572 = vmatprep.subr.bf16.mxu0 0
      %3573 = vmatpush1.bf16.msra.mxu0 %v3553
      %3574 = vmatprep.subr.bf16.mxu0 0
      %3575 = vmatpush1.bf16.msra.mxu0 %v3554
      %3576 = vmatprep.subr.bf16.mxu0 0
      %3577 = vmatpush1.bf16.msra.mxu0 %v3555
      %3578 = vmatprep.subr.bf16.mxu0 0
      %3579 = vmatpush1.bf16.msra.mxu0 %v3556
      %3580 = vmatprep.subr.bf16.mxu0 0
      %3581 = vmatpush1.bf16.msra.mxu0 %v3557
      %3582 = vmatprep.subr.bf16.mxu0 0
      %3583 = vmatpush1.bf16.msra.mxu0 0
      %3584 = vmatprep.subr.bf16.mxu0 0
      %3585 = vmatpush1.bf16.msra.mxu0 0
      %3586 = vmatprep.subr.bf16.mxu0 0
      %3587 = vmatpush1.bf16.msra.mxu0 0
      %3588 = vmatprep.subr.bf16.mxu0 0
      %3589 = vmatpush1.bf16.msra.mxu0 0
      %3590 = vmatprep.subr.bf16.mxu0 0
      %3591 = vmatpush1.bf16.msra.mxu0 0
      %3592 = vmatprep.subr.bf16.mxu0 0
      %3593 = vmatpush1.bf16.msra.mxu0 0
      %3594 = vmatprep.subr.bf16.mxu0 0
      %3595 = vmatpush1.bf16.msra.mxu0 0
      %3596 = vmatprep.subr.bf16.mxu0 0
      %3597 = vmatpush1.bf16.msra.mxu0 0
      %3598 = vmatprep.mubr.bf16.mxu0 0
      %3599 = vmatmul.mubr.bf16.gmra.mrb[0].mxu0 %v1678
      %v3600 = vpop.f32.mrb[0].mxu0
      %v3601 = vadd.f32 0.0, %v3600
      %v3602 = vpop.f32.mrb[0].mxu0
      %v3603 = vpop.f32.mrb[0].mxu0
      %v3604 = vadd.f32 0.0, %v3603
      %v3605 = vpop.f32.mrb[0].mxu0
      %3606 = vmatprep.mubr.bf16.mxu0 0
      %3607 = vmatmul.mubr.bf16.gmra.mrb[0].mxu0 %v1679
      %v3608 = vpop.f32.mrb[0].mxu0
      %v3609 = vadd.f32 0.0, %v3608
      %v3610 = vpop.f32.mrb[0].mxu0
      %v3611 = vpop.f32.mrb[0].mxu0
      %v3612 = vadd.f32 0.0, %v3611
      %v3613 = vpop.f32.mrb[0].mxu0
      %3614 = vmatprep.mubr.bf16.mxu0 0
      %3615 = vmatmul.mubr.bf16.gmra.mrb[0].mxu0 %v1680
      %v3616 = vpop.f32.mrb[0].mxu0
      %v3617 = vadd.f32 0.0, %v3616
      %v3618 = vpop.f32.mrb[0].mxu0
      %v3619 = vpop.f32.mrb[0].mxu0
      %v3620 = vadd.f32 0.0, %v3619
      %v3621 = vpop.f32.mrb[0].mxu0
      %3622 = vmatprep.mubr.bf16.mxu0 0
      %3623 = vmatmul.mubr.bf16.gmra.mrb[0].mxu0 %v1681
      %v3624 = vpop.f32.mrb[0].mxu0
      %v3625 = vadd.f32 0.0, %v3624
      %v3626 = vpop.f32.mrb[0].mxu0
      %v3627 = vpop.f32.mrb[0].mxu0
      %v3628 = vadd.f32 0.0, %v3627
      %v3629 = vpop.f32.mrb[0].mxu0
      %3630 = vmatprep.mubr.bf16.mxu0 0
      %3631 = vmatmul.mubr.bf16.gmra.mrb[0].mxu0 %v1682
      %v3632 = vpop.f32.mrb[0].mxu0
      %v3633 = vadd.f32 0.0, %v3632
      %v3634 = vpop.f32.mrb[0].mxu0
      %v3635 = vpop.f32.mrb[0].mxu0
      %v3636 = vadd.f32 0.0, %v3635
      %v3637 = vpop.f32.mrb[0].mxu0
      %3638 = vmatprep.mubr.bf16.mxu0 0
      %3639 = vmatmul.mubr.bf16.gmra.mrb[0].mxu0 %v1683
      %v3640 = vpop.f32.mrb[0].mxu0
      %v3641 = vadd.f32 0.0, %v3640
      %v3642 = vpop.f32.mrb[0].mxu0
      %v3643 = vpop.f32.mrb[0].mxu0
      %v3644 = vadd.f32 0.0, %v3643
      %v3645 = vpop.f32.mrb[0].mxu0
      %3646 = vmatprep.mubr.bf16.mxu0 0
      %3647 = vmatmul.mubr.bf16.gmra.mrb[0].mxu0 %v1684
      %v3648 = vpop.f32.mrb[0].mxu0
      %v3649 = vadd.f32 0.0, %v3648
      %v3650 = vpop.f32.mrb[0].mxu0
      %v3651 = vpop.f32.mrb[0].mxu0
      %v3652 = vadd.f32 0.0, %v3651
      %v3653 = vpop.f32.mrb[0].mxu0
      %3654 = vmatprep.mubr.bf16.mxu0 0
      %3655 = vmatmul.mubr.bf16.gmra.mrb[0].mxu0 %v1685
      %v3656 = vpop.f32.mrb[0].mxu0
      %v3657 = vadd.f32 0.0, %v3656
      %v3658 = vpop.f32.mrb[0].mxu0
      %v3659 = vpop.f32.mrb[0].mxu0
      %v3660 = vadd.f32 0.0, %v3659
      %v3661 = vpop.f32.mrb[0].mxu0
      %3662 = vmatprep.mubr.bf16.mxu0 0
      %3663 = vmatmul.mubr.bf16.gmra.mrb[0].mxu0 %v1686
      %v3664 = vpop.f32.mrb[0].mxu0
      %v3665 = vadd.f32 0.0, %v3664
      %v3666 = vpop.f32.mrb[0].mxu0
      %v3667 = vpop.f32.mrb[0].mxu0
      %v3668 = vadd.f32 0.0, %v3667
      %v3669 = vpop.f32.mrb[0].mxu0
      %3670 = vmatprep.mubr.bf16.mxu0 0
      %3671 = vmatmul.mubr.bf16.gmra.mrb[0].mxu0 %v1687
      %v3672 = vpop.f32.mrb[0].mxu0
      %v3673 = vadd.f32 0.0, %v3672
      %v3674 = vpop.f32.mrb[0].mxu0
      %v3675 = vpop.f32.mrb[0].mxu0
      %v3676 = vadd.f32 0.0, %v3675
      %v3677 = vpop.f32.mrb[0].mxu0
      %3678 = vmatprep.mubr.bf16.mxu0 0
      %3679 = vmatmul.mubr.bf16.gmra.mrb[0].mxu0 %v1688
      %v3680 = vpop.f32.mrb[0].mxu0
      %v3681 = vadd.f32 0.0, %v3680
      %v3682 = vpop.f32.mrb[0].mxu0
      %v3683 = vpop.f32.mrb[0].mxu0
      %v3684 = vadd.f32 0.0, %v3683
      %v3685 = vpop.f32.mrb[0].mxu0
      %3686 = vmatprep.mubr.bf16.mxu0 0
      %3687 = vmatmul.mubr.bf16.gmra.mrb[0].mxu0 %v1689
      %v3688 = vpop.f32.mrb[0].mxu0
      %v3689 = vadd.f32 0.0, %v3688
      %v3690 = vpop.f32.mrb[0].mxu0
      %v3691 = vpop.f32.mrb[0].mxu0
      %v3692 = vadd.f32 0.0, %v3691
      %v3693 = vpop.f32.mrb[0].mxu0
      %3694 = vmatprep.mubr.bf16.mxu0 0
      %3695 = vmatmul.mubr.bf16.gmra.mrb[0].mxu0 %v1690
      %v3696 = vpop.f32.mrb[0].mxu0
      %v3697 = vadd.f32 0.0, %v3696
      %v3698 = vpop.f32.mrb[0].mxu0
      %v3699 = vpop.f32.mrb[0].mxu0
      %v3700 = vadd.f32 0.0, %v3699
      %v3701 = vpop.f32.mrb[0].mxu0
      %3702 = vmatprep.mubr.bf16.mxu0 0
      %3703 = vmatmul.mubr.bf16.gmra.mrb[0].mxu0 %v1691
      %v3704 = vpop.f32.mrb[0].mxu0
      %v3705 = vadd.f32 0.0, %v3704
      %v3706 = vpop.f32.mrb[0].mxu0
      %v3707 = vpop.f32.mrb[0].mxu0
      %v3708 = vadd.f32 0.0, %v3707
      %v3709 = vpop.f32.mrb[0].mxu0
      %3710 = vmatprep.mubr.bf16.mxu0 0
      %3711 = vmatmul.mubr.bf16.gmra.mrb[0].mxu0 %v2706
      %v3712 = vpop.f32.mrb[0].mxu0
      %v3713 = vadd.f32 0.0, %v3712
      %v3714 = vpop.f32.mrb[0].mxu0
      %v3715 = vpop.f32.mrb[0].mxu0
      %v3716 = vadd.f32 0.0, %v3715
      %v3717 = vpop.f32.mrb[0].mxu0
      %3718 = vmatprep.mubr.bf16.mxu0 0
      %3719 = vmatmul.mubr.bf16.gmra.mrb[0].mxu0 %v3500
      %v3720 = vpop.f32.mrb[0].mxu0
      %v3721 = vadd.f32 0.0, %v3720
      %v3722 = vpop.f32.mrb[0].mxu0
      %v3723 = vpop.f32.mrb[0].mxu0
      %v3724 = vadd.f32 0.0, %v3723
      %v3725 = vpop.f32.mrb[0].mxu0
      %3726 = vdwg.mxu0
      %v3727 = vadd.f32 %v3468, %v3601
      %v3728 = vadd.f32 %v3469, %v3604
      %v3729 = vadd.f32 %v3470, %v3609
      %v3730 = vadd.f32 %v3471, %v3612
      %v3731 = vadd.f32 %v3472, %v3617
      %v3732 = vadd.f32 %v3473, %v3620
      %v3733 = vadd.f32 %v3474, %v3625
      %v3734 = vadd.f32 %v3475, %v3628
      %v3735 = vadd.f32 %v3476, %v3633
      %v3736 = vadd.f32 %v3477, %v3636
      %v3737 = vadd.f32 %v3478, %v3641
      %v3738 = vadd.f32 %v3479, %v3644
      %v3739 = vadd.f32 %v3480, %v3649
      %v3740 = vadd.f32 %v3481, %v3652
      %v3741 = vadd.f32 %v3482, %v3657
      %v3742 = vadd.f32 %v3483, %v3660
      %v3743 = vadd.f32 %v3484, %v3665
      %v3744 = vadd.f32 %v3485, %v3668
      %v3745 = vadd.f32 %v3486, %v3673
      %v3746 = vadd.f32 %v3487, %v3676
      %v3747 = vadd.f32 %v3488, %v3681
      %v3748 = vadd.f32 %v3489, %v3684
      %v3749 = vadd.f32 %v3490, %v3689
      %v3750 = vadd.f32 %v3491, %v3692
      %v3751 = vadd.f32 %v3492, %v3697
      %v3752 = vadd.f32 %v3493, %v3700
      %v3753 = vadd.f32 %v3494, %v3705
      %v3754 = vadd.f32 %v3495, %v3708
      %v3755 = vadd.f32 %v3496, %v3713
      %v3756 = vadd.f32 %v3497, %v3716
      %v3757 = vadd.f32 %v3498, %v3721
      %v3758 = vadd.f32 %v3499, %v3724
      %v3762 = vrot.slane %v1673, 1
      %v3763 = vrot.slane %v1674, 1
      %v3764 = vsel %vm1448, %v3762, %v3763
      %v3765 = vrot.slane %v1675, 1
      %v3766 = vsel %vm1448, %v3763, %v3765
      %v3769 = vpack.c.bf16 %v3766, %v3764
      %s3770 = scalar_lea.vmem %s8, 448
      %v3771 = vld [vmem:[%s3770] sm:$0xf]
      %v3772 = vld [vmem:[%s3770 + $0x4] sm:$0xf]
      %v3773 = vld [vmem:[%s3770 + $0x8] sm:$0xf]
      %v3774 = vld [vmem:[%s3770 + $0xc] sm:$0xf]
      %v3775 = vld [vmem:[%s3770 + $0x10] sm:$0xf]
      %v3776 = vld [vmem:[%s3770 + $0x14] sm:$0xf]
      %v3777 = vld [vmem:[%s3770 + $0x18] sm:$0xf]
      %v3778 = vld [vmem:[%s3770 + $0x1c] sm:$0xf]
      %v3779 = vld [vmem:[%s3770 + $0x20] sm:$0xf]
      %v3780 = vld [vmem:[%s3770 + $0x24] sm:$0xf]
      %v3781 = vld [vmem:[%s3770 + $0x28] sm:$0xf]
      %v3782 = vld [vmem:[%s3770 + $0x2c] sm:$0xf]
      %v3783 = vld [vmem:[%s3770 + $0x30] sm:$0xf]
      %v3784 = vld [vmem:[%s3770 + $0x34] sm:$0xf]
      %v3785 = vld [vmem:[%s3770 + $0x38] sm:$0xf]
      %v3786 = vld [vmem:[%s3770 + $0x3c] sm:$0xf]
      %v3803 = vunpack.c.l.b16 %v3771
      %v3804 = vunpack.c.l.b16 %v3772
      %v3805 = vunpack.c.l.b16 %v3773
      %v3806 = vunpack.c.l.b16 %v3774
      %v3807 = vunpack.c.l.b16 %v3775
      %v3808 = vunpack.c.l.b16 %v3776
      %v3809 = vunpack.c.l.b16 %v3777
      %v3810 = vunpack.c.l.b16 %v3778
      %v3811 = vunpack.c.l.b16 %v3779
      %v3812 = vunpack.c.l.b16 %v3780
      %v3813 = vunpack.c.l.b16 %v3781
      %v3814 = vunpack.c.l.b16 %v3782
      %v3815 = vunpack.c.l.b16 %v3783
      %v3816 = vunpack.c.l.b16 %v3784
      %v3817 = vunpack.c.l.b16 %v3785
      %v3818 = vunpack.c.l.b16 %v3786
      %v3819 = vpack.c.b16 %v3804, %v3803
      %v3820 = vpack.c.b16 %v3806, %v3805
      %v3821 = vpack.c.b16 %v3808, %v3807
      %v3822 = vpack.c.b16 %v3810, %v3809
      %v3823 = vpack.c.b16 %v3812, %v3811
      %v3824 = vpack.c.b16 %v3814, %v3813
      %v3825 = vpack.c.b16 %v3816, %v3815
      %v3826 = vpack.c.b16 %v3818, %v3817
      %3835 = vmatprep.subr.bf16.mxu0 0
      %3836 = vmatpush1.bf16.msra.mxu0 %v3819
      %3837 = vmatprep.subr.bf16.mxu0 0
      %3838 = vmatpush1.bf16.msra.mxu0 %v3820
      %3839 = vmatprep.subr.bf16.mxu0 0
      %3840 = vmatpush1.bf16.msra.mxu0 %v3821
      %3841 = vmatprep.subr.bf16.mxu0 0
      %3842 = vmatpush1.bf16.msra.mxu0 %v3822
      %3843 = vmatprep.subr.bf16.mxu0 0
      %3844 = vmatpush1.bf16.msra.mxu0 %v3823
      %3845 = vmatprep.subr.bf16.mxu0 0
      %3846 = vmatpush1.bf16.msra.mxu0 %v3824
      %3847 = vmatprep.subr.bf16.mxu0 0
      %3848 = vmatpush1.bf16.msra.mxu0 %v3825
      %3849 = vmatprep.subr.bf16.mxu0 0
      %3850 = vmatpush1.bf16.msra.mxu0 %v3826
      %3851 = vmatprep.subr.bf16.mxu0 0
      %3852 = vmatpush1.bf16.msra.mxu0 0
      %3853 = vmatprep.subr.bf16.mxu0 0
      %3854 = vmatpush1.bf16.msra.mxu0 0
      %3855 = vmatprep.subr.bf16.mxu0 0
      %3856 = vmatpush1.bf16.msra.mxu0 0
      %3857 = vmatprep.subr.bf16.mxu0 0
      %3858 = vmatpush1.bf16.msra.mxu0 0
      %3859 = vmatprep.subr.bf16.mxu0 0
      %3860 = vmatpush1.bf16.msra.mxu0 0
      %3861 = vmatprep.subr.bf16.mxu0 0
      %3862 = vmatpush1.bf16.msra.mxu0 0
      %3863 = vmatprep.subr.bf16.mxu0 0
      %3864 = vmatpush1.bf16.msra.mxu0 0
      %3865 = vmatprep.subr.bf16.mxu0 0
      %3866 = vmatpush1.bf16.msra.mxu0 0
      %3867 = vmatprep.mubr.bf16.mxu0 0
      %3868 = vmatmul.mubr.bf16.gmra.mrb[0].mxu0 %v1870
      %v3869 = vpop.f32.mrb[0].mxu0
      %v3870 = vadd.f32 0.0, %v3869
      %v3871 = vpop.f32.mrb[0].mxu0
      %v3872 = vpop.f32.mrb[0].mxu0
      %v3873 = vadd.f32 0.0, %v3872
      %v3874 = vpop.f32.mrb[0].mxu0
      %3875 = vmatprep.mubr.bf16.mxu0 0
      %3876 = vmatmul.mubr.bf16.gmra.mrb[0].mxu0 %v1871
      %v3877 = vpop.f32.mrb[0].mxu0
      %v3878 = vadd.f32 0.0, %v3877
      %v3879 = vpop.f32.mrb[0].mxu0
      %v3880 = vpop.f32.mrb[0].mxu0
      %v3881 = vadd.f32 0.0, %v3880
      %v3882 = vpop.f32.mrb[0].mxu0
      %3883 = vmatprep.mubr.bf16.mxu0 0
      %3884 = vmatmul.mubr.bf16.gmra.mrb[0].mxu0 %v1872
      %v3885 = vpop.f32.mrb[0].mxu0
      %v3886 = vadd.f32 0.0, %v3885
      %v3887 = vpop.f32.mrb[0].mxu0
      %v3888 = vpop.f32.mrb[0].mxu0
      %v3889 = vadd.f32 0.0, %v3888
      %v3890 = vpop.f32.mrb[0].mxu0
      %3891 = vmatprep.mubr.bf16.mxu0 0
      %3892 = vmatmul.mubr.bf16.gmra.mrb[0].mxu0 %v1873
      %v3893 = vpop.f32.mrb[0].mxu0
      %v3894 = vadd.f32 0.0, %v3893
      %v3895 = vpop.f32.mrb[0].mxu0
      %v3896 = vpop.f32.mrb[0].mxu0
      %v3897 = vadd.f32 0.0, %v3896
      %v3898 = vpop.f32.mrb[0].mxu0
      %3899 = vmatprep.mubr.bf16.mxu0 0
      %3900 = vmatmul.mubr.bf16.gmra.mrb[0].mxu0 %v1874
      %v3901 = vpop.f32.mrb[0].mxu0
      %v3902 = vadd.f32 0.0, %v3901
      %v3903 = vpop.f32.mrb[0].mxu0
      %v3904 = vpop.f32.mrb[0].mxu0
      %v3905 = vadd.f32 0.0, %v3904
      %v3906 = vpop.f32.mrb[0].mxu0
      %3907 = vmatprep.mubr.bf16.mxu0 0
      %3908 = vmatmul.mubr.bf16.gmra.mrb[0].mxu0 %v1875
      %v3909 = vpop.f32.mrb[0].mxu0
      %v3910 = vadd.f32 0.0, %v3909
      %v3911 = vpop.f32.mrb[0].mxu0
      %v3912 = vpop.f32.mrb[0].mxu0
      %v3913 = vadd.f32 0.0, %v3912
      %v3914 = vpop.f32.mrb[0].mxu0
      %3915 = vmatprep.mubr.bf16.mxu0 0
      %3916 = vmatmul.mubr.bf16.gmra.mrb[0].mxu0 %v1876
      %v3917 = vpop.f32.mrb[0].mxu0
      %v3918 = vadd.f32 0.0, %v3917
      %v3919 = vpop.f32.mrb[0].mxu0
      %v3920 = vpop.f32.mrb[0].mxu0
      %v3921 = vadd.f32 0.0, %v3920
      %v3922 = vpop.f32.mrb[0].mxu0
      %3923 = vmatprep.mubr.bf16.mxu0 0
      %3924 = vmatmul.mubr.bf16.gmra.mrb[0].mxu0 %v1877
      %v3925 = vpop.f32.mrb[0].mxu0
      %v3926 = vadd.f32 0.0, %v3925
      %v3927 = vpop.f32.mrb[0].mxu0
      %v3928 = vpop.f32.mrb[0].mxu0
      %v3929 = vadd.f32 0.0, %v3928
      %v3930 = vpop.f32.mrb[0].mxu0
      %3931 = vmatprep.mubr.bf16.mxu0 0
      %3932 = vmatmul.mubr.bf16.gmra.mrb[0].mxu0 %v1878
      %v3933 = vpop.f32.mrb[0].mxu0
      %v3934 = vadd.f32 0.0, %v3933
      %v3935 = vpop.f32.mrb[0].mxu0
      %v3936 = vpop.f32.mrb[0].mxu0
      %v3937 = vadd.f32 0.0, %v3936
      %v3938 = vpop.f32.mrb[0].mxu0
      %3939 = vmatprep.mubr.bf16.mxu0 0
      %3940 = vmatmul.mubr.bf16.gmra.mrb[0].mxu0 %v1879
      %v3941 = vpop.f32.mrb[0].mxu0
      %v3942 = vadd.f32 0.0, %v3941
      %v3943 = vpop.f32.mrb[0].mxu0
      %v3944 = vpop.f32.mrb[0].mxu0
      %v3945 = vadd.f32 0.0, %v3944
      %v3946 = vpop.f32.mrb[0].mxu0
      %3947 = vmatprep.mubr.bf16.mxu0 0
      %3948 = vmatmul.mubr.bf16.gmra.mrb[0].mxu0 %v1880
      %v3949 = vpop.f32.mrb[0].mxu0
      %v3950 = vadd.f32 0.0, %v3949
      %v3951 = vpop.f32.mrb[0].mxu0
      %v3952 = vpop.f32.mrb[0].mxu0
      %v3953 = vadd.f32 0.0, %v3952
      %v3954 = vpop.f32.mrb[0].mxu0
      %3955 = vmatprep.mubr.bf16.mxu0 0
      %3956 = vmatmul.mubr.bf16.gmra.mrb[0].mxu0 %v1881
      %v3957 = vpop.f32.mrb[0].mxu0
      %v3958 = vadd.f32 0.0, %v3957
      %v3959 = vpop.f32.mrb[0].mxu0
      %v3960 = vpop.f32.mrb[0].mxu0
      %v3961 = vadd.f32 0.0, %v3960
      %v3962 = vpop.f32.mrb[0].mxu0
      %3963 = vmatprep.mubr.bf16.mxu0 0
      %3964 = vmatmul.mubr.bf16.gmra.mrb[0].mxu0 %v1882
      %v3965 = vpop.f32.mrb[0].mxu0
      %v3966 = vadd.f32 0.0, %v3965
      %v3967 = vpop.f32.mrb[0].mxu0
      %v3968 = vpop.f32.mrb[0].mxu0
      %v3969 = vadd.f32 0.0, %v3968
      %v3970 = vpop.f32.mrb[0].mxu0
      %3971 = vmatprep.mubr.bf16.mxu0 0
      %3972 = vmatmul.mubr.bf16.gmra.mrb[0].mxu0 %v1883
      %v3973 = vpop.f32.mrb[0].mxu0
      %v3974 = vadd.f32 0.0, %v3973
      %v3975 = vpop.f32.mrb[0].mxu0
      %v3976 = vpop.f32.mrb[0].mxu0
      %v3977 = vadd.f32 0.0, %v3976
      %v3978 = vpop.f32.mrb[0].mxu0
      %3979 = vmatprep.mubr.bf16.mxu0 0
      %3980 = vmatmul.mubr.bf16.gmra.mrb[0].mxu0 %v2975
      %v3981 = vpop.f32.mrb[0].mxu0
      %v3982 = vadd.f32 0.0, %v3981
      %v3983 = vpop.f32.mrb[0].mxu0
      %v3984 = vpop.f32.mrb[0].mxu0
      %v3985 = vadd.f32 0.0, %v3984
      %v3986 = vpop.f32.mrb[0].mxu0
      %3987 = vmatprep.mubr.bf16.mxu0 0
      %3988 = vmatmul.mubr.bf16.gmra.mrb[0].mxu0 %v3769
      %v3989 = vpop.f32.mrb[0].mxu0
      %v3990 = vadd.f32 0.0, %v3989
      %v3991 = vpop.f32.mrb[0].mxu0
      %v3992 = vpop.f32.mrb[0].mxu0
      %v3993 = vadd.f32 0.0, %v3992
      %v3994 = vpop.f32.mrb[0].mxu0
      %3995 = vdwg.mxu0
      %v3996 = vadd.f32 %v3727, %v3870
      %v3997 = vadd.f32 %v3728, %v3873
      %v3998 = vadd.f32 %v3729, %v3878
      %v3999 = vadd.f32 %v3730, %v3881
      %v4000 = vadd.f32 %v3731, %v3886
      %v4001 = vadd.f32 %v3732, %v3889
      %v4002 = vadd.f32 %v3733, %v3894
      %v4003 = vadd.f32 %v3734, %v3897
      %v4004 = vadd.f32 %v3735, %v3902
      %v4005 = vadd.f32 %v3736, %v3905
      %v4006 = vadd.f32 %v3737, %v3910
      %v4007 = vadd.f32 %v3738, %v3913
      %v4008 = vadd.f32 %v3739, %v3918
      %v4009 = vadd.f32 %v3740, %v3921
      %v4010 = vadd.f32 %v3741, %v3926
      %v4011 = vadd.f32 %v3742, %v3929
      %v4012 = vadd.f32 %v3743, %v3934
      %v4013 = vadd.f32 %v3744, %v3937
      %v4014 = vadd.f32 %v3745, %v3942
      %v4015 = vadd.f32 %v3746, %v3945
      %v4016 = vadd.f32 %v3747, %v3950
      %v4017 = vadd.f32 %v3748, %v3953
      %v4018 = vadd.f32 %v3749, %v3958
      %v4019 = vadd.f32 %v3750, %v3961
      %v4020 = vadd.f32 %v3751, %v3966
      %v4021 = vadd.f32 %v3752, %v3969
      %v4022 = vadd.f32 %v3753, %v3974
      %v4023 = vadd.f32 %v3754, %v3977
      %v4024 = vadd.f32 %v3755, %v3982
      %v4025 = vadd.f32 %v3756, %v3985
      %v4026 = vadd.f32 %v3757, %v3990
      %v4027 = vadd.f32 %v3758, %v3993
      %v4028 = vrot.slane %v1673, 2
      %v4029 = vrot.slane %v1674, 2
      %v4030 = vsel %vm2319, %v4028, %v4029
      %v4031 = vrot.slane %v1675, 2
      %v4032 = vsel %vm2319, %v4029, %v4031
      %v4035 = vpack.c.bf16 %v4032, %v4030
      %s4036 = scalar_lea.vmem %s8, 512
      %v4037 = vld [vmem:[%s4036] sm:$0xf]
      %v4038 = vld [vmem:[%s4036 + $0x4] sm:$0xf]
      %v4039 = vld [vmem:[%s4036 + $0x8] sm:$0xf]
      %v4040 = vld [vmem:[%s4036 + $0xc] sm:$0xf]
      %v4041 = vld [vmem:[%s4036 + $0x10] sm:$0xf]
      %v4042 = vld [vmem:[%s4036 + $0x14] sm:$0xf]
      %v4043 = vld [vmem:[%s4036 + $0x18] sm:$0xf]
      %v4044 = vld [vmem:[%s4036 + $0x1c] sm:$0xf]
      %v4045 = vld [vmem:[%s4036 + $0x20] sm:$0xf]
      %v4046 = vld [vmem:[%s4036 + $0x24] sm:$0xf]
      %v4047 = vld [vmem:[%s4036 + $0x28] sm:$0xf]
      %v4048 = vld [vmem:[%s4036 + $0x2c] sm:$0xf]
      %v4049 = vld [vmem:[%s4036 + $0x30] sm:$0xf]
      %v4050 = vld [vmem:[%s4036 + $0x34] sm:$0xf]
      %v4051 = vld [vmem:[%s4036 + $0x38] sm:$0xf]
      %v4052 = vld [vmem:[%s4036 + $0x3c] sm:$0xf]
      %v4069 = vunpack.c.l.b16 %v4037
      %v4070 = vunpack.c.l.b16 %v4038
      %v4071 = vunpack.c.l.b16 %v4039
      %v4072 = vunpack.c.l.b16 %v4040
      %v4073 = vunpack.c.l.b16 %v4041
      %v4074 = vunpack.c.l.b16 %v4042
      %v4075 = vunpack.c.l.b16 %v4043
      %v4076 = vunpack.c.l.b16 %v4044
      %v4077 = vunpack.c.l.b16 %v4045
      %v4078 = vunpack.c.l.b16 %v4046
      %v4079 = vunpack.c.l.b16 %v4047
      %v4080 = vunpack.c.l.b16 %v4048
      %v4081 = vunpack.c.l.b16 %v4049
      %v4082 = vunpack.c.l.b16 %v4050
      %v4083 = vunpack.c.l.b16 %v4051
      %v4084 = vunpack.c.l.b16 %v4052
      %v4085 = vpack.c.b16 %v4070, %v4069
      %v4086 = vpack.c.b16 %v4072, %v4071
      %v4087 = vpack.c.b16 %v4074, %v4073
      %v4088 = vpack.c.b16 %v4076, %v4075
      %v4089 = vpack.c.b16 %v4078, %v4077
      %v4090 = vpack.c.b16 %v4080, %v4079
      %v4091 = vpack.c.b16 %v4082, %v4081
      %v4092 = vpack.c.b16 %v4084, %v4083
      %4101 = vmatprep.subr.bf16.mxu0 0
      %4102 = vmatpush1.bf16.msra.mxu0 %v4085
      %4103 = vmatprep.subr.bf16.mxu0 0
      %4104 = vmatpush1.bf16.msra.mxu0 %v4086
      %4105 = vmatprep.subr.bf16.mxu0 0
      %4106 = vmatpush1.bf16.msra.mxu0 %v4087
      %4107 = vmatprep.subr.bf16.mxu0 0
      %4108 = vmatpush1.bf16.msra.mxu0 %v4088
      %4109 = vmatprep.subr.bf16.mxu0 0
      %4110 = vmatpush1.bf16.msra.mxu0 %v4089
      %4111 = vmatprep.subr.bf16.mxu0 0
      %4112 = vmatpush1.bf16.msra.mxu0 %v4090
      %4113 = vmatprep.subr.bf16.mxu0 0
      %4114 = vmatpush1.bf16.msra.mxu0 %v4091
      %4115 = vmatprep.subr.bf16.mxu0 0
      %4116 = vmatpush1.bf16.msra.mxu0 %v4092
      %4117 = vmatprep.subr.bf16.mxu0 0
      %4118 = vmatpush1.bf16.msra.mxu0 0
      %4119 = vmatprep.subr.bf16.mxu0 0
      %4120 = vmatpush1.bf16.msra.mxu0 0
      %4121 = vmatprep.subr.bf16.mxu0 0
      %4122 = vmatpush1.bf16.msra.mxu0 0
      %4123 = vmatprep.subr.bf16.mxu0 0
      %4124 = vmatpush1.bf16.msra.mxu0 0
      %4125 = vmatprep.subr.bf16.mxu0 0
      %4126 = vmatpush1.bf16.msra.mxu0 0
      %4127 = vmatprep.subr.bf16.mxu0 0
      %4128 = vmatpush1.bf16.msra.mxu0 0
      %4129 = vmatprep.subr.bf16.mxu0 0
      %4130 = vmatpush1.bf16.msra.mxu0 0
      %4131 = vmatprep.subr.bf16.mxu0 0
      %4132 = vmatpush1.bf16.msra.mxu0 0
      %4133 = vmatprep.mubr.bf16.mxu0 0
      %4134 = vmatmul.mubr.bf16.gmra.mrb[0].mxu0 %v2434
      %v4135 = vpop.f32.mrb[0].mxu0
      %v4136 = vadd.f32 0.0, %v4135
      %v4137 = vpop.f32.mrb[0].mxu0
      %v4138 = vpop.f32.mrb[0].mxu0
      %v4139 = vadd.f32 0.0, %v4138
      %v4140 = vpop.f32.mrb[0].mxu0
      %4141 = vmatprep.mubr.bf16.mxu0 0
      %4142 = vmatmul.mubr.bf16.gmra.mrb[0].mxu0 %v2435
      %v4143 = vpop.f32.mrb[0].mxu0
      %v4144 = vadd.f32 0.0, %v4143
      %v4145 = vpop.f32.mrb[0].mxu0
      %v4146 = vpop.f32.mrb[0].mxu0
      %v4147 = vadd.f32 0.0, %v4146
      %v4148 = vpop.f32.mrb[0].mxu0
      %4149 = vmatprep.mubr.bf16.mxu0 0
      %4150 = vmatmul.mubr.bf16.gmra.mrb[0].mxu0 %v2436
      %v4151 = vpop.f32.mrb[0].mxu0
      %v4152 = vadd.f32 0.0, %v4151
      %v4153 = vpop.f32.mrb[0].mxu0
      %v4154 = vpop.f32.mrb[0].mxu0
      %v4155 = vadd.f32 0.0, %v4154
      %v4156 = vpop.f32.mrb[0].mxu0
      %4157 = vmatprep.mubr.bf16.mxu0 0
      %4158 = vmatmul.mubr.bf16.gmra.mrb[0].mxu0 %v2437
      %v4159 = vpop.f32.mrb[0].mxu0
      %v4160 = vadd.f32 0.0, %v4159
      %v4161 = vpop.f32.mrb[0].mxu0
      %v4162 = vpop.f32.mrb[0].mxu0
      %v4163 = vadd.f32 0.0, %v4162
      %v4164 = vpop.f32.mrb[0].mxu0
      %4165 = vmatprep.mubr.bf16.mxu0 0
      %4166 = vmatmul.mubr.bf16.gmra.mrb[0].mxu0 %v2438
      %v4167 = vpop.f32.mrb[0].mxu0
      %v4168 = vadd.f32 0.0, %v4167
      %v4169 = vpop.f32.mrb[0].mxu0
      %v4170 = vpop.f32.mrb[0].mxu0
      %v4171 = vadd.f32 0.0, %v4170
      %v4172 = vpop.f32.mrb[0].mxu0
      %4173 = vmatprep.mubr.bf16.mxu0 0
      %4174 = vmatmul.mubr.bf16.gmra.mrb[0].mxu0 %v2439
      %v4175 = vpop.f32.mrb[0].mxu0
      %v4176 = vadd.f32 0.0, %v4175
      %v4177 = vpop.f32.mrb[0].mxu0
      %v4178 = vpop.f32.mrb[0].mxu0
      %v4179 = vadd.f32 0.0, %v4178
      %v4180 = vpop.f32.mrb[0].mxu0
      %4181 = vmatprep.mubr.bf16.mxu0 0
      %4182 = vmatmul.mubr.bf16.gmra.mrb[0].mxu0 %v2440
      %v4183 = vpop.f32.mrb[0].mxu0
      %v4184 = vadd.f32 0.0, %v4183
      %v4185 = vpop.f32.mrb[0].mxu0
      %v4186 = vpop.f32.mrb[0].mxu0
      %v4187 = vadd.f32 0.0, %v4186
      %v4188 = vpop.f32.mrb[0].mxu0
      %4189 = vmatprep.mubr.bf16.mxu0 0
      %4190 = vmatmul.mubr.bf16.gmra.mrb[0].mxu0 %v2441
      %v4191 = vpop.f32.mrb[0].mxu0
      %v4192 = vadd.f32 0.0, %v4191
      %v4193 = vpop.f32.mrb[0].mxu0
      %v4194 = vpop.f32.mrb[0].mxu0
      %v4195 = vadd.f32 0.0, %v4194
      %v4196 = vpop.f32.mrb[0].mxu0
      %4197 = vmatprep.mubr.bf16.mxu0 0
      %4198 = vmatmul.mubr.bf16.gmra.mrb[0].mxu0 %v2442
      %v4199 = vpop.f32.mrb[0].mxu0
      %v4200 = vadd.f32 0.0, %v4199
      %v4201 = vpop.f32.mrb[0].mxu0
      %v4202 = vpop.f32.mrb[0].mxu0
      %v4203 = vadd.f32 0.0, %v4202
      %v4204 = vpop.f32.mrb[0].mxu0
      %4205 = vmatprep.mubr.bf16.mxu0 0
      %4206 = vmatmul.mubr.bf16.gmra.mrb[0].mxu0 %v2443
      %v4207 = vpop.f32.mrb[0].mxu0
      %v4208 = vadd.f32 0.0, %v4207
      %v4209 = vpop.f32.mrb[0].mxu0
      %v4210 = vpop.f32.mrb[0].mxu0
      %v4211 = vadd.f32 0.0, %v4210
      %v4212 = vpop.f32.mrb[0].mxu0
      %4213 = vmatprep.mubr.bf16.mxu0 0
      %4214 = vmatmul.mubr.bf16.gmra.mrb[0].mxu0 %v2444
      %v4215 = vpop.f32.mrb[0].mxu0
      %v4216 = vadd.f32 0.0, %v4215
      %v4217 = vpop.f32.mrb[0].mxu0
      %v4218 = vpop.f32.mrb[0].mxu0
      %v4219 = vadd.f32 0.0, %v4218
      %v4220 = vpop.f32.mrb[0].mxu0
      %4221 = vmatprep.mubr.bf16.mxu0 0
      %4222 = vmatmul.mubr.bf16.gmra.mrb[0].mxu0 %v2445
      %v4223 = vpop.f32.mrb[0].mxu0
      %v4224 = vadd.f32 0.0, %v4223
      %v4225 = vpop.f32.mrb[0].mxu0
      %v4226 = vpop.f32.mrb[0].mxu0
      %v4227 = vadd.f32 0.0, %v4226
      %v4228 = vpop.f32.mrb[0].mxu0
      %4229 = vmatprep.mubr.bf16.mxu0 0
      %4230 = vmatmul.mubr.bf16.gmra.mrb[0].mxu0 %v2446
      %v4231 = vpop.f32.mrb[0].mxu0
      %v4232 = vadd.f32 0.0, %v4231
      %v4233 = vpop.f32.mrb[0].mxu0
      %v4234 = vpop.f32.mrb[0].mxu0
      %v4235 = vadd.f32 0.0, %v4234
      %v4236 = vpop.f32.mrb[0].mxu0
      %4237 = vmatprep.mubr.bf16.mxu0 0
      %4238 = vmatmul.mubr.bf16.gmra.mrb[0].mxu0 %v2447
      %v4239 = vpop.f32.mrb[0].mxu0
      %v4240 = vadd.f32 0.0, %v4239
      %v4241 = vpop.f32.mrb[0].mxu0
      %v4242 = vpop.f32.mrb[0].mxu0
      %v4243 = vadd.f32 0.0, %v4242
      %v4244 = vpop.f32.mrb[0].mxu0
      %4245 = vmatprep.mubr.bf16.mxu0 0
      %4246 = vmatmul.mubr.bf16.gmra.mrb[0].mxu0 %v3241
      %v4247 = vpop.f32.mrb[0].mxu0
      %v4248 = vadd.f32 0.0, %v4247
      %v4249 = vpop.f32.mrb[0].mxu0
      %v4250 = vpop.f32.mrb[0].mxu0
      %v4251 = vadd.f32 0.0, %v4250
      %v4252 = vpop.f32.mrb[0].mxu0
      %4253 = vmatprep.mubr.bf16.mxu0 0
      %4254 = vmatmul.mubr.bf16.gmra.mrb[0].mxu0 %v4035
      %v4255 = vpop.f32.mrb[0].mxu0
      %v4256 = vadd.f32 0.0, %v4255
      %v4257 = vpop.f32.mrb[0].mxu0
      %v4258 = vpop.f32.mrb[0].mxu0
      %v4259 = vadd.f32 0.0, %v4258
      %v4260 = vpop.f32.mrb[0].mxu0
      %4261 = vdwg.mxu0
      %v4262 = vadd.f32 %v3996, %v4136
      %v4263 = vadd.f32 %v3997, %v4139
      %v4264 = vadd.f32 %v3998, %v4144
      %v4265 = vadd.f32 %v3999, %v4147
      %v4266 = vadd.f32 %v4000, %v4152
      %v4267 = vadd.f32 %v4001, %v4155
      %v4268 = vadd.f32 %v4002, %v4160
      %v4269 = vadd.f32 %v4003, %v4163
      %v4270 = vadd.f32 %v4004, %v4168
      %v4271 = vadd.f32 %v4005, %v4171
      %v4272 = vadd.f32 %v4006, %v4176
      %v4273 = vadd.f32 %v4007, %v4179
      %v4274 = vadd.f32 %v4008, %v4184
      %v4275 = vadd.f32 %v4009, %v4187
      %v4276 = vadd.f32 %v4010, %v4192
      %v4277 = vadd.f32 %v4011, %v4195
      %v4278 = vadd.f32 %v4012, %v4200
      %v4279 = vadd.f32 %v4013, %v4203
      %v4280 = vadd.f32 %v4014, %v4208
      %v4281 = vadd.f32 %v4015, %v4211
      %v4282 = vadd.f32 %v4016, %v4216
      %v4283 = vadd.f32 %v4017, %v4219
      %v4284 = vadd.f32 %v4018, %v4224
      %v4285 = vadd.f32 %v4019, %v4227
      %v4286 = vadd.f32 %v4020, %v4232
      %v4287 = vadd.f32 %v4021, %v4235
      %v4288 = vadd.f32 %v4022, %v4240
      %v4289 = vadd.f32 %v4023, %v4243
      %v4290 = vadd.f32 %v4024, %v4248
      %v4291 = vadd.f32 %v4025, %v4251
      %v4292 = vadd.f32 %v4026, %v4256
      %v4293 = vadd.f32 %v4027, %v4259
      %v4294 = vld [vmem:[%s6] sm:$0x1]
      %v4296 = vlaneseq
      %v4297 = vshrl.u32 %v4296, 7
      %v4298 = vsub.s32 0, %v4297
      %v4299 = vrot.slane %v4294, %v4298
      %v4301 = vmul.f32 %v4262, %v4299
      %v4302 = vmul.f32 %v4263, %v4299
      %v4303 = vmul.f32 %v4264, %v4299
      %v4304 = vmul.f32 %v4265, %v4299
      %v4305 = vmul.f32 %v4266, %v4299
      %v4306 = vmul.f32 %v4267, %v4299
      %v4307 = vmul.f32 %v4268, %v4299
      %v4308 = vmul.f32 %v4269, %v4299
      %v4309 = vmul.f32 %v4270, %v4299
      %v4310 = vmul.f32 %v4271, %v4299
      %v4311 = vmul.f32 %v4272, %v4299
      %v4312 = vmul.f32 %v4273, %v4299
      %v4313 = vmul.f32 %v4274, %v4299
      %v4314 = vmul.f32 %v4275, %v4299
      %v4315 = vmul.f32 %v4276, %v4299
      %v4316 = vmul.f32 %v4277, %v4299
      %v4317 = vmul.f32 %v4278, %v4299
      %v4318 = vmul.f32 %v4279, %v4299
      %v4319 = vmul.f32 %v4280, %v4299
      %v4320 = vmul.f32 %v4281, %v4299
      %v4321 = vmul.f32 %v4282, %v4299
      %v4322 = vmul.f32 %v4283, %v4299
      %v4323 = vmul.f32 %v4284, %v4299
      %v4324 = vmul.f32 %v4285, %v4299
      %v4325 = vmul.f32 %v4286, %v4299
      %v4326 = vmul.f32 %v4287, %v4299
      %v4327 = vmul.f32 %v4288, %v4299
      %v4328 = vmul.f32 %v4289, %v4299
      %v4329 = vmul.f32 %v4290, %v4299
      %v4330 = vmul.f32 %v4291, %v4299
      %v4331 = vmul.f32 %v4292, %v4299
      %v4332 = vmul.f32 %v4293, %v4299
      %v4333 = vld [vmem:[%s7] sm:$0x1]
      %v4335 = vlaneseq
      %v4336 = vshrl.u32 %v4335, 7
      %v4337 = vsub.s32 0, %v4336
      %v4338 = vrot.slane %v4333, %v4337
      %v4340 = vadd.f32 %v4301, %v4338
      %v4341 = vadd.f32 %v4302, %v4338
      %v4342 = vadd.f32 %v4303, %v4338
      %v4343 = vadd.f32 %v4304, %v4338
      %v4344 = vadd.f32 %v4305, %v4338
      %v4345 = vadd.f32 %v4306, %v4338
      %v4346 = vadd.f32 %v4307, %v4338
      %v4347 = vadd.f32 %v4308, %v4338
      %v4348 = vadd.f32 %v4309, %v4338
      %v4349 = vadd.f32 %v4310, %v4338
      %v4350 = vadd.f32 %v4311, %v4338
      %v4351 = vadd.f32 %v4312, %v4338
      %v4352 = vadd.f32 %v4313, %v4338
      %v4353 = vadd.f32 %v4314, %v4338
      %v4354 = vadd.f32 %v4315, %v4338
      %v4355 = vadd.f32 %v4316, %v4338
      %v4356 = vadd.f32 %v4317, %v4338
      %v4357 = vadd.f32 %v4318, %v4338
      %v4358 = vadd.f32 %v4319, %v4338
      %v4359 = vadd.f32 %v4320, %v4338
      %v4360 = vadd.f32 %v4321, %v4338
      %v4361 = vadd.f32 %v4322, %v4338
      %v4362 = vadd.f32 %v4323, %v4338
      %v4363 = vadd.f32 %v4324, %v4338
      %v4364 = vadd.f32 %v4325, %v4338
      %v4365 = vadd.f32 %v4326, %v4338
      %v4366 = vadd.f32 %v4327, %v4338
      %v4367 = vadd.f32 %v4328, %v4338
      %v4368 = vadd.f32 %v4329, %v4338
      %v4369 = vadd.f32 %v4330, %v4338
      %v4370 = vadd.f32 %v4331, %v4338
      %v4371 = vadd.f32 %v4332, %v4338
      %v4372 = vmax.f32 %v4340, 0.0
      %v4373 = vmax.f32 %v4341, 0.0
      %v4374 = vmax.f32 %v4342, 0.0
      %v4375 = vmax.f32 %v4343, 0.0
      %v4376 = vmax.f32 %v4344, 0.0
      %v4377 = vmax.f32 %v4345, 0.0
      %v4378 = vmax.f32 %v4346, 0.0
      %v4379 = vmax.f32 %v4347, 0.0
      %v4380 = vmax.f32 %v4348, 0.0
      %v4381 = vmax.f32 %v4349, 0.0
      %v4382 = vmax.f32 %v4350, 0.0
      %v4383 = vmax.f32 %v4351, 0.0
      %v4384 = vmax.f32 %v4352, 0.0
      %v4385 = vmax.f32 %v4353, 0.0
      %v4386 = vmax.f32 %v4354, 0.0
      %v4387 = vmax.f32 %v4355, 0.0
      %v4388 = vmax.f32 %v4356, 0.0
      %v4389 = vmax.f32 %v4357, 0.0
      %v4390 = vmax.f32 %v4358, 0.0
      %v4391 = vmax.f32 %v4359, 0.0
      %v4392 = vmax.f32 %v4360, 0.0
      %v4393 = vmax.f32 %v4361, 0.0
      %v4394 = vmax.f32 %v4362, 0.0
      %v4395 = vmax.f32 %v4363, 0.0
      %v4396 = vmax.f32 %v4364, 0.0
      %v4397 = vmax.f32 %v4365, 0.0
      %v4398 = vmax.f32 %v4366, 0.0
      %v4399 = vmax.f32 %v4367, 0.0
      %v4400 = vmax.f32 %v4368, 0.0
      %v4401 = vmax.f32 %v4369, 0.0
      %v4402 = vmax.f32 %v4370, 0.0
      %v4403 = vmax.f32 %v4371, 0.0
      %v4404 = vadd.f32 %v4372, %v4373
      %v4405 = vadd.f32 %v4404, %v4374
      %v4406 = vadd.f32 %v4405, %v4375
      %v4407 = vadd.f32 %v4406, %v4376
      %v4408 = vadd.f32 %v4407, %v4377
      %v4409 = vadd.f32 %v4408, %v4378
      %v4410 = vadd.f32 %v4409, %v4379
      %v4411 = vadd.f32 %v4410, %v4380
      %v4412 = vadd.f32 %v4411, %v4381
      %v4413 = vadd.f32 %v4412, %v4382
      %v4414 = vadd.f32 %v4413, %v4383
      %v4415 = vadd.f32 %v4414, %v4384
      %v4416 = vadd.f32 %v4415, %v4385
      %v4417 = vadd.f32 %v4416, %v4386
      %v4418 = vadd.f32 %v4417, %v4387
      %v4419 = vadd.f32 %v4418, %v4388
      %v4420 = vadd.f32 %v4419, %v4389
      %v4421 = vadd.f32 %v4420, %v4390
      %v4422 = vadd.f32 %v4421, %v4391
      %v4423 = vadd.f32 %v4422, %v4392
      %v4424 = vadd.f32 %v4423, %v4393
      %v4425 = vadd.f32 %v4424, %v4394
      %v4426 = vadd.f32 %v4425, %v4395
      %v4427 = vadd.f32 %v4426, %v4396
      %v4428 = vadd.f32 %v4427, %v4397
      %v4429 = vadd.f32 %v4428, %v4398
      %v4430 = vadd.f32 %v4429, %v4399
      %v4431 = vadd.f32 %v4430, %v4400
      %v4432 = vadd.f32 %v4431, %v4401
      %v4433 = vadd.f32 %v4432, %v4402
      %v4434 = vadd.f32 %v4433, %v4403
      %v4435 = vrot.slane %v4434, 4
      %v4436 = vadd.f32 %v4434, %v4435
      %v4437 = vrot.slane %v4436, 2
      %v4438 = vadd.f32 %v4436, %v4437
      %v4439 = vrot.slane %v4438, 1
      %v4440 = vadd.f32 %v4438, %v4439
      %v4441 = vrcp.pop 256.0
      %v4442 = vmul.f32 %v4440, %v4441
      %v4443 = vmax.f32 %v4372, %v4376
      %v4444 = vmax.f32 %v4373, %v4377
      %v4445 = vmax.f32 %v4374, %v4378
      %v4446 = vmax.f32 %v4375, %v4379
      %v4447 = vmax.f32 %v4443, %v4380
      %v4448 = vmax.f32 %v4444, %v4381
      %v4449 = vmax.f32 %v4445, %v4382
      %v4450 = vmax.f32 %v4446, %v4383
      %v4451 = vmax.f32 %v4447, %v4384
      %v4452 = vmax.f32 %v4448, %v4385
      %v4453 = vmax.f32 %v4449, %v4386
      %v4454 = vmax.f32 %v4450, %v4387
      %v4455 = vmax.f32 %v4451, %v4388
      %v4456 = vmax.f32 %v4452, %v4389
      %v4457 = vmax.f32 %v4453, %v4390
      %v4458 = vmax.f32 %v4454, %v4391
      %v4459 = vmax.f32 %v4455, %v4392
      %v4460 = vmax.f32 %v4456, %v4393
      %v4461 = vmax.f32 %v4457, %v4394
      %v4462 = vmax.f32 %v4458, %v4395
      %v4463 = vmax.f32 %v4459, %v4396
      %v4464 = vmax.f32 %v4460, %v4397
      %v4465 = vmax.f32 %v4461, %v4398
      %v4466 = vmax.f32 %v4462, %v4399
      %v4467 = vmax.f32 %v4463, %v4400
      %v4468 = vmax.f32 %v4464, %v4401
      %v4469 = vmax.f32 %v4465, %v4402
      %v4470 = vmax.f32 %v4466, %v4403
      %v4471 = vmax.f32 %v4467, %v4468
      %v4472 = vmax.f32 %v4469, %v4470
      %v4473 = vmax.f32 %v4471, %v4472
      %v4474 = vrot.slane %v4473, 4
      %v4475 = vmax.f32 %v4473, %v4474
      %v4476 = vrot.slane %v4475, 2
      %v4477 = vmax.f32 %v4475, %v4476
      %v4478 = vrot.slane %v4477, 1
      %v4479 = vmax.f32 %v4477, %v4478
      %v4480 = vld [vmem:[%s9] sm:$0xff]
      %v4481 = vld [vmem:[%s9 + $0x8] sm:$0xff]
      %v4482 = vld [vmem:[%s9 + $0x10] sm:$0xff]
      %v4483 = vld [vmem:[%s9 + $0x18] sm:$0xff]
      %v4484 = vld [vmem:[%s9 + $0x20] sm:$0xff]
      %v4485 = vld [vmem:[%s9 + $0x28] sm:$0xff]
      %v4486 = vld [vmem:[%s9 + $0x30] sm:$0xff]
      %v4487 = vld [vmem:[%s9 + $0x38] sm:$0xff]
      %v4488 = vld [vmem:[%s9 + $0x40] sm:$0xff]
      %v4489 = vld [vmem:[%s9 + $0x48] sm:$0xff]
      %v4490 = vld [vmem:[%s9 + $0x50] sm:$0xff]
      %v4491 = vld [vmem:[%s9 + $0x58] sm:$0xff]
      %v4492 = vld [vmem:[%s9 + $0x60] sm:$0xff]
      %v4493 = vld [vmem:[%s9 + $0x68] sm:$0xff]
      %v4494 = vld [vmem:[%s9 + $0x70] sm:$0xff]
      %v4495 = vld [vmem:[%s9 + $0x78] sm:$0xff]
      %v4496 = vld [vmem:[%s9 + $0x80] sm:$0xff]
      %v4497 = vld [vmem:[%s9 + $0x88] sm:$0xff]
      %v4498 = vld [vmem:[%s9 + $0x90] sm:$0xff]
      %v4499 = vld [vmem:[%s9 + $0x98] sm:$0xff]
      %v4500 = vld [vmem:[%s9 + $0xa0] sm:$0xff]
      %v4501 = vld [vmem:[%s9 + $0xa8] sm:$0xff]
      %v4502 = vld [vmem:[%s9 + $0xb0] sm:$0xff]
      %v4503 = vld [vmem:[%s9 + $0xb8] sm:$0xff]
      %v4504 = vld [vmem:[%s9 + $0xc0] sm:$0xff]
      %v4505 = vld [vmem:[%s9 + $0xc8] sm:$0xff]
      %v4506 = vld [vmem:[%s9 + $0xd0] sm:$0xff]
      %v4507 = vld [vmem:[%s9 + $0xd8] sm:$0xff]
      %v4508 = vld [vmem:[%s9 + $0xe0] sm:$0xff]
      %v4509 = vld [vmem:[%s9 + $0xe8] sm:$0xff]
      %v4510 = vld [vmem:[%s9 + $0xf0] sm:$0xff]
      %v4511 = vld [vmem:[%s9 + $0xf8] sm:$0xff]
      %4512 = vmatprep.subr.mxu0 0.0
      %4513 = vmatpush1.msra.mxu0 %v4480
      %4514 = vmatprep.subr.mxu0 0.0
      %4515 = vmatpush1.msra.mxu0 %v4481
      %4516 = vmatprep.subr.mxu0 0.0
      %4517 = vmatpush1.msra.mxu0 %v4482
      %4518 = vmatprep.subr.mxu0 0.0
      %4519 = vmatpush1.msra.mxu0 %v4483
      %4520 = vmatprep.subr.mxu0 0.0
      %4521 = vmatpush1.msra.mxu0 %v4484
      %4522 = vmatprep.subr.mxu0 0.0
      %4523 = vmatpush1.msra.mxu0 %v4485
      %4524 = vmatprep.subr.mxu0 0.0
      %4525 = vmatpush1.msra.mxu0 %v4486
      %4526 = vmatprep.subr.mxu0 0.0
      %4527 = vmatpush1.msra.mxu0 %v4487
      %4528 = vmatprep.subr.mxu0 0.0
      %4529 = vmatpush1.msra.mxu0 %v4488
      %4530 = vmatprep.subr.mxu0 0.0
      %4531 = vmatpush1.msra.mxu0 %v4489
      %4532 = vmatprep.subr.mxu0 0.0
      %4533 = vmatpush1.msra.mxu0 %v4490
      %4534 = vmatprep.subr.mxu0 0.0
      %4535 = vmatpush1.msra.mxu0 %v4491
      %4536 = vmatprep.subr.mxu0 0.0
      %4537 = vmatpush1.msra.mxu0 %v4492
      %4538 = vmatprep.subr.mxu0 0.0
      %4539 = vmatpush1.msra.mxu0 %v4493
      %4540 = vmatprep.subr.mxu0 0.0
      %4541 = vmatpush1.msra.mxu0 %v4494
      %4542 = vmatprep.subr.mxu0 0.0
      %4543 = vmatpush1.msra.mxu0 %v4495
      %4544 = vmatprep.subr.mxu0 0.0
      %4545 = vmatpush1.msra.mxu0 %v4496
      %4546 = vmatprep.subr.mxu0 0.0
      %4547 = vmatpush1.msra.mxu0 %v4497
      %4548 = vmatprep.subr.mxu0 0.0
      %4549 = vmatpush1.msra.mxu0 %v4498
      %4550 = vmatprep.subr.mxu0 0.0
      %4551 = vmatpush1.msra.mxu0 %v4499
      %4552 = vmatprep.subr.mxu0 0.0
      %4553 = vmatpush1.msra.mxu0 %v4500
      %4554 = vmatprep.subr.mxu0 0.0
      %4555 = vmatpush1.msra.mxu0 %v4501
      %4556 = vmatprep.subr.mxu0 0.0
      %4557 = vmatpush1.msra.mxu0 %v4502
      %4558 = vmatprep.subr.mxu0 0.0
      %4559 = vmatpush1.msra.mxu0 %v4503
      %4560 = vmatprep.subr.mxu0 0.0
      %4561 = vmatpush1.msra.mxu0 %v4504
      %4562 = vmatprep.subr.mxu0 0.0
      %4563 = vmatpush1.msra.mxu0 %v4505
      %4564 = vmatprep.subr.mxu0 0.0
      %4565 = vmatpush1.msra.mxu0 %v4506
      %4566 = vmatprep.subr.mxu0 0.0
      %4567 = vmatpush1.msra.mxu0 %v4507
      %4568 = vmatprep.subr.mxu0 0.0
      %4569 = vmatpush1.msra.mxu0 %v4508
      %4570 = vmatprep.subr.mxu0 0.0
      %4571 = vmatpush1.msra.mxu0 %v4509
      %4572 = vmatprep.subr.mxu0 0.0
      %4573 = vmatpush1.msra.mxu0 %v4510
      %4574 = vmatprep.subr.mxu0 0.0
      %4575 = vmatpush1.msra.mxu0 %v4511
      %4576 = vmatprep.mubr.f32.mxu0 %v4479
      %4577 = vmatmul.mubr.f32.gmra.mrb[0].mxu0 %v4442
      %v4578 = vpop.f32.mrb[0].mxu0
      %v4579 = vadd.f32 0.0, %v4578
      %v4580 = vpop.f32.mrb[0].mxu0
      %4581 = vdwg.mxu0
      %v4582 = vmax.f32 %v4579, 0.0
      %v4583 = vld [vmem:[%s10] sm:$0x3]
      %vm4584 = vcmask 15360
      %v4586 = vsel %vm4584, %v4582, 0
      %vm4588 = vcmask 1041408
      %v4590 = vsel %vm4588, %v4583, 0
      %4592 = vmatprep.subr.mxu0 0.0
      %4593 = vmatpush1.msra.mxu0 %v4590
      %4594 = vmatprep.subr.mxu0 0.0
      %4595 = vmatpush1.msra.mxu0 0.0
      %4596 = vmatprep.subr.mxu0 0.0
      %4597 = vmatpush1.msra.mxu0 0.0
      %4598 = vmatprep.subr.mxu0 0.0
      %4599 = vmatpush1.msra.mxu0 0.0
      %4600 = vmatprep.subr.mxu0 0.0
      %4601 = vmatpush1.msra.mxu0 0.0
      %4602 = vmatprep.subr.mxu0 0.0
      %4603 = vmatpush1.msra.mxu0 0.0
      %4604 = vmatprep.subr.mxu0 0.0
      %4605 = vmatpush1.msra.mxu0 0.0
      %4606 = vmatprep.subr.mxu0 0.0
      %4607 = vmatpush1.msra.mxu0 0.0
      %4608 = vmatprep.subr.mxu0 0.0
      %4609 = vmatpush1.msra.mxu0 0.0
      %4610 = vmatprep.subr.mxu0 0.0
      %4611 = vmatpush1.msra.mxu0 0.0
      %4612 = vmatprep.subr.mxu0 0.0
      %4613 = vmatpush1.msra.mxu0 0.0
      %4614 = vmatprep.subr.mxu0 0.0
      %4615 = vmatpush1.msra.mxu0 0.0
      %4616 = vmatprep.subr.mxu0 0.0
      %4617 = vmatpush1.msra.mxu0 0.0
      %4618 = vmatprep.subr.mxu0 0.0
      %4619 = vmatpush1.msra.mxu0 0.0
      %4620 = vmatprep.subr.mxu0 0.0
      %4621 = vmatpush1.msra.mxu0 0.0
      %4622 = vmatprep.subr.mxu0 0.0
      %4623 = vmatpush1.msra.mxu0 0.0
      %4624 = vmatprep.subr.mxu0 0.0
      %4625 = vmatpush1.msra.mxu0 0.0
      %4626 = vmatprep.subr.mxu0 0.0
      %4627 = vmatpush1.msra.mxu0 0.0
      %4628 = vmatprep.subr.mxu0 0.0
      %4629 = vmatpush1.msra.mxu0 0.0
      %4630 = vmatprep.subr.mxu0 0.0
      %4631 = vmatpush1.msra.mxu0 0.0
      %4632 = vmatprep.subr.mxu0 0.0
      %4633 = vmatpush1.msra.mxu0 0.0
      %4634 = vmatprep.subr.mxu0 0.0
      %4635 = vmatpush1.msra.mxu0 0.0
      %4636 = vmatprep.subr.mxu0 0.0
      %4637 = vmatpush1.msra.mxu0 0.0
      %4638 = vmatprep.subr.mxu0 0.0
      %4639 = vmatpush1.msra.mxu0 0.0
      %4640 = vmatprep.subr.mxu0 0.0
      %4641 = vmatpush1.msra.mxu0 0.0
      %4642 = vmatprep.subr.mxu0 0.0
      %4643 = vmatpush1.msra.mxu0 0.0
      %4644 = vmatprep.subr.mxu0 0.0
      %4645 = vmatpush1.msra.mxu0 0.0
      %4646 = vmatprep.subr.mxu0 0.0
      %4647 = vmatpush1.msra.mxu0 0.0
      %4648 = vmatprep.subr.mxu0 0.0
      %4649 = vmatpush1.msra.mxu0 0.0
      %4650 = vmatprep.subr.mxu0 0.0
      %4651 = vmatpush1.msra.mxu0 0.0
      %4652 = vmatprep.subr.mxu0 0.0
      %4653 = vmatpush1.msra.mxu0 0.0
      %4654 = vmatprep.subr.mxu0 0.0
      %4655 = vmatpush1.msra.mxu0 0.0
      %4656 = vmatprep.mubr.f32.mxu0 0.0
      %4657 = vmatmul.mubr.f32.gmra.mrb[0].mxu0 %v4586
      %v4658 = vpop.f32.mrb[0].mxu0
      %v4659 = vadd.f32 0.0, %v4658
      %v4660 = vpop.f32.mrb[0].mxu0
      %4661 = vdwg.mxu0
      %v4662 = vxor.u32 %v4659, 2147483648
      %v4663 = vmul.f32 %v4662, 1.442695
      %v4664 = vpow.pop %v4663
      %v4665 = vadd.f32 %v4664, 1.0
      %v4666 = vrcp.pop %v4665
      %v4667 = vmul.f32 1.0, %v4666
      %v4668 = vlaneseq
      %v4669 = vshrl.u32 %v4668, 7
      %v4670 = vsub.s32 0, %v4669
      %v4671 = vrot.slane %v4667, %v4670
      %v4672 = vmul.f32 %v4372, %v4671
      %v4673 = vmul.f32 %v4373, %v4671
      %v4674 = vmul.f32 %v4374, %v4671
      %v4675 = vmul.f32 %v4375, %v4671
      %v4676 = vmul.f32 %v4376, %v4671
      %v4677 = vmul.f32 %v4377, %v4671
      %v4678 = vmul.f32 %v4378, %v4671
      %v4679 = vmul.f32 %v4379, %v4671
      %v4680 = vmul.f32 %v4380, %v4671
      %v4681 = vmul.f32 %v4381, %v4671
      %v4682 = vmul.f32 %v4382, %v4671
      %v4683 = vmul.f32 %v4383, %v4671
      %v4684 = vmul.f32 %v4384, %v4671
      %v4685 = vmul.f32 %v4385, %v4671
      %v4686 = vmul.f32 %v4386, %v4671
      %v4687 = vmul.f32 %v4387, %v4671
      %v4688 = vmul.f32 %v4388, %v4671
      %v4689 = vmul.f32 %v4389, %v4671
      %v4690 = vmul.f32 %v4390, %v4671
      %v4691 = vmul.f32 %v4391, %v4671
      %v4692 = vmul.f32 %v4392, %v4671
      %v4693 = vmul.f32 %v4393, %v4671
      %v4694 = vmul.f32 %v4394, %v4671
      %v4695 = vmul.f32 %v4395, %v4671
      %v4696 = vmul.f32 %v4396, %v4671
      %v4697 = vmul.f32 %v4397, %v4671
      %v4698 = vmul.f32 %v4398, %v4671
      %v4699 = vmul.f32 %v4399, %v4671
      %v4700 = vmul.f32 %v4400, %v4671
      %v4701 = vmul.f32 %v4401, %v4671
      %v4702 = vmul.f32 %v4402, %v4671
      %v4703 = vmul.f32 %v4403, %v4671
      %v4704 = vadd.f32 %v4672, %v1568
      %v4705 = vadd.f32 %v4673, %v1569
      %v4706 = vadd.f32 %v4674, %v1570
      %v4707 = vadd.f32 %v4675, %v1571
      %v4708 = vadd.f32 %v4676, %v1572
      %v4709 = vadd.f32 %v4677, %v1573
      %v4710 = vadd.f32 %v4678, %v1574
      %v4711 = vadd.f32 %v4679, %v1575
      %v4712 = vadd.f32 %v4680, %v1576
      %v4713 = vadd.f32 %v4681, %v1577
      %v4714 = vadd.f32 %v4682, %v1578
      %v4715 = vadd.f32 %v4683, %v1579
      %v4716 = vadd.f32 %v4684, %v1580
      %v4717 = vadd.f32 %v4685, %v1581
      %v4718 = vadd.f32 %v4686, %v1582
      %v4719 = vadd.f32 %v4687, %v1583
      %v4720 = vadd.f32 %v4688, %v1584
      %v4721 = vadd.f32 %v4689, %v1585
      %v4722 = vadd.f32 %v4690, %v1586
      %v4723 = vadd.f32 %v4691, %v1587
      %v4724 = vadd.f32 %v4692, %v1588
      %v4725 = vadd.f32 %v4693, %v1589
      %v4726 = vadd.f32 %v4694, %v1590
      %v4727 = vadd.f32 %v4695, %v1591
      %v4728 = vadd.f32 %v4696, %v1592
      %v4729 = vadd.f32 %v4697, %v1593
      %v4730 = vadd.f32 %v4698, %v1594
      %v4731 = vadd.f32 %v4699, %v1595
      %v4732 = vadd.f32 %v4700, %v1596
      %v4733 = vadd.f32 %v4701, %v1597
      %v4734 = vadd.f32 %v4702, %v1598
      %v4735 = vadd.f32 %v4703, %v1599
      %v4736 = vmax.f32 %v4704, 0.0
      %v4737 = vmax.f32 %v4705, 0.0
      %v4738 = vmax.f32 %v4706, 0.0
      %v4739 = vmax.f32 %v4707, 0.0
      %v4740 = vmax.f32 %v4708, 0.0
      %v4741 = vmax.f32 %v4709, 0.0
      %v4742 = vmax.f32 %v4710, 0.0
      %v4743 = vmax.f32 %v4711, 0.0
      %v4744 = vmax.f32 %v4712, 0.0
      %v4745 = vmax.f32 %v4713, 0.0
      %v4746 = vmax.f32 %v4714, 0.0
      %v4747 = vmax.f32 %v4715, 0.0
      %v4748 = vmax.f32 %v4716, 0.0
      %v4749 = vmax.f32 %v4717, 0.0
      %v4750 = vmax.f32 %v4718, 0.0
      %v4751 = vmax.f32 %v4719, 0.0
      %v4752 = vmax.f32 %v4720, 0.0
      %v4753 = vmax.f32 %v4721, 0.0
      %v4754 = vmax.f32 %v4722, 0.0
      %v4755 = vmax.f32 %v4723, 0.0
      %v4756 = vmax.f32 %v4724, 0.0
      %v4757 = vmax.f32 %v4725, 0.0
      %v4758 = vmax.f32 %v4726, 0.0
      %v4759 = vmax.f32 %v4727, 0.0
      %v4760 = vmax.f32 %v4728, 0.0
      %v4761 = vmax.f32 %v4729, 0.0
      %v4762 = vmax.f32 %v4730, 0.0
      %v4763 = vmax.f32 %v4731, 0.0
      %v4764 = vmax.f32 %v4732, 0.0
      %v4765 = vmax.f32 %v4733, 0.0
      %v4766 = vmax.f32 %v4734, 0.0
      %v4767 = vmax.f32 %v4735, 0.0
      %4768 = vst [vmem:[%s386] sm:$0xff] %v4736
      %4769 = vst [vmem:[%s386 + $0x8] sm:$0xff] %v4737
      %4770 = vst [vmem:[%s386 + $0x10] sm:$0xff] %v4738
      %4771 = vst [vmem:[%s386 + $0x18] sm:$0xff] %v4739
      %4772 = vst [vmem:[%s386 + $0x20] sm:$0xff] %v4740
      %4773 = vst [vmem:[%s386 + $0x28] sm:$0xff] %v4741
      %4774 = vst [vmem:[%s386 + $0x30] sm:$0xff] %v4742
      %4775 = vst [vmem:[%s386 + $0x38] sm:$0xff] %v4743
      %4776 = vst [vmem:[%s386 + $0x40] sm:$0xff] %v4744
      %4777 = vst [vmem:[%s386 + $0x48] sm:$0xff] %v4745
      %4778 = vst [vmem:[%s386 + $0x50] sm:$0xff] %v4746
      %4779 = vst [vmem:[%s386 + $0x58] sm:$0xff] %v4747
      %4780 = vst [vmem:[%s386 + $0x60] sm:$0xff] %v4748
      %4781 = vst [vmem:[%s386 + $0x68] sm:$0xff] %v4749
      %4782 = vst [vmem:[%s386 + $0x70] sm:$0xff] %v4750
      %4783 = vst [vmem:[%s386 + $0x78] sm:$0xff] %v4751
      %4784 = vst [vmem:[%s386 + $0x80] sm:$0xff] %v4752
      %4785 = vst [vmem:[%s386 + $0x88] sm:$0xff] %v4753
      %4786 = vst [vmem:[%s386 + $0x90] sm:$0xff] %v4754
      %4787 = vst [vmem:[%s386 + $0x98] sm:$0xff] %v4755
      %4788 = vst [vmem:[%s386 + $0xa0] sm:$0xff] %v4756
      %4789 = vst [vmem:[%s386 + $0xa8] sm:$0xff] %v4757
      %4790 = vst [vmem:[%s386 + $0xb0] sm:$0xff] %v4758
      %4791 = vst [vmem:[%s386 + $0xb8] sm:$0xff] %v4759
      %4792 = vst [vmem:[%s386 + $0xc0] sm:$0xff] %v4760
      %4793 = vst [vmem:[%s386 + $0xc8] sm:$0xff] %v4761
      %4794 = vst [vmem:[%s386 + $0xd0] sm:$0xff] %v4762
      %4795 = vst [vmem:[%s386 + $0xd8] sm:$0xff] %v4763
      %4796 = vst [vmem:[%s386 + $0xe0] sm:$0xff] %v4764
      %4797 = vst [vmem:[%s386 + $0xe8] sm:$0xff] %v4765
      %4798 = vst [vmem:[%s386 + $0xf0] sm:$0xff] %v4766
      %4799 = vst [vmem:[%s386 + $0xf8] sm:$0xff] %v4767
      %p4800 = scmp.lt.s32.totalorder %s22, 1
      %s4801 = scalar_select %p4800, %s22, 1
      %s4802 = smul.addr %s4801, 32
      %s4803 = smul.addr %s4802, 8
      %s4804 = scalar_lea.vmem %s11, %s4803
      // Predicated region
      $region65: #{double_conv_forward.1} parent=63 // pred_check
        %p4805 = pneg %p276
      $region66: #{double_conv_forward.1} parent=63 // pred_check_branch
        %4807 = sbr.rel (%p4805) target = $region68
      $region67: #{double_conv_forward.1} parent=63 // pred_region
        _
      $region68: #{double_conv_forward.1} parent=63 // pred_fallthru
        _
    $region64: #{double_conv_forward.1} parent=5 // pred_fallthru
      _
    %p4808 = scmp.le.s32.totalorder 2, %s17
    // Predicated region
    $region69: #{double_conv_forward.1} parent=5 // pred_check
      %p4809 = pneg %p4808
    $region70: #{double_conv_forward.1} parent=5 // pred_check_branch
      %4811 = sbr.rel (%p4809) target = $region72
    $region71: #{double_conv_forward.1} parent=5 // pred_region
      %s4812 = ssub.s32 %s17, 2
      // Predicated region
      $region73: #{double_conv_forward.1} parent=71 // pred_check
        %p4813 = pneg %p282
      $region74: #{double_conv_forward.1} parent=71 // pred_check_branch
        %4815 = sbr.rel (%p4813) target = $region76
      $region75: #{double_conv_forward.1} parent=71 // pred_region
        %p4816 = scmp.lt.s32.totalorder %s23, 1
        %s4817 = scalar_select %p4816, %s23, 1
        %s4818 = smul.addr %s4817, 32
        %s4819 = smul.addr %s4818, 8
        %s4820 = scalar_lea.vmem %s11, %s4819
      $region76: #{double_conv_forward.1} parent=71 // pred_fallthru
        _
    $region72: #{double_conv_forward.1} parent=5 // pred_fallthru
      _
  $region6: #{double_conv_forward.1} parent=0 // loop_footer
    %s21 = sadd.s32 1, %s17
  $region7: #{double_conv_forward.1} parent=0 // loop_footer_branch
    %16 = sbr.rel target = $region3
  $region8: #{double_conv_forward.1} parent=0 // loop_exit
    _

</llo_original>
